<compile_context>
chip_gen: v7x
topology: tpu7x:2x2x1
jax: 0.10.0
libtpu: 0.0.40
codegen_flags: <defaults>
</compile_context>

<pallas_src>
import functools

import jax
import jax.numpy as jnp
from jax.experimental import pallas as pl
from jax.experimental.pallas import tpu as pltpu


# ----------------------------------------------------------------------------
# Fused kernel body (one batch tile per grid step):
#   fc1 -> ReLU -> fc1b -> ReLU -> vector_transform -> fc2
# Weights are bf16 VMEM-resident refs; scalar CustomLayer params live in SMEM.
# ----------------------------------------------------------------------------
def _fused_net_kernel(params_ref, x_ref, w1_ref, b1_ref, w1b_ref, b1b_ref,
                      w2_ref, b2_ref, o_ref, *, num_steps):
    # fc1 + ReLU  (bf16 x bf16 -> f32 accumulation on the MXU)
    h = jnp.dot(x_ref[...].astype(jnp.bfloat16), w1_ref[...],
                preferred_element_type=jnp.float32)
    h = jnp.maximum(h + b1_ref[...], 0.0)

    # fc1b + ReLU
    h = jnp.dot(h.astype(jnp.bfloat16), w1b_ref[...],
                preferred_element_type=jnp.float32)
    h = jnp.maximum(h + b1b_ref[...], 0.0)

    # vector_transform (explicit Euler oscillator).  All f32 on the VPU —
    # intentionally NOT bf16 (v5e has no bf16 VPU path).  The tuple update
    # uses the OLD y for the v update, matching `y, v = (y + v, v - y * dt)`.
    tune = params_ref[0]
    init_disp = params_ref[1]
    scale = params_ref[2]
    inv_steps = jnp.float32(1.0 / num_steps)          # multiply, not divide
    dt = (h + tune) * inv_steps
    y = jnp.zeros_like(h) + init_disp
    v = dt
    for _ in range(num_steps):                        # static unroll (19 steps)
        y, v = y + v, v - y * dt
    h = y * scale

    # fc2 (no activation)
    out = jnp.dot(h.astype(jnp.bfloat16), w2_ref[...],
                  preferred_element_type=jnp.float32)
    o_ref[...] = (out + b2_ref[...]).astype(o_ref.dtype)


# ----------------------------------------------------------------------------
# pallas_call wrapper: grid over batch tiles, weights resident across steps.
# ----------------------------------------------------------------------------
def fused_net_forward_pallas(x, kparams, *, num_steps=19, tile_m=8):
    B, fc1_in = x.shape
    n_out = kparams["w2"].shape[1]
    assert B % tile_m == 0, "pad batch to a multiple of tile_m before calling"
    grid = (B // tile_m,)

    operands = (kparams["custom"],                     # SMEM scalars
                x,                                     # per-step tile
                kparams["w1"], kparams["b1"],          # resident
                kparams["w1b"], kparams["b1b"],        # resident
                kparams["w2"], kparams["b2"])          # resident

    # Deliberate VMEM budget: resident weights/biases (possibly 2 buffers each)
    # + double-buffered x/out tiles + fixed headroom; capped well under v7x's
    # 64 MiB physical VMEM (also fine on v5e/v6e's 128 MiB).
    resident_bytes = sum(int(a.size) * a.dtype.itemsize for a in operands[2:])
    tile_bytes = tile_m * (fc1_in + n_out) * 4
    vmem_limit = int(min(2 * (resident_bytes + tile_bytes) + (8 << 20),
                         48 << 20))

    def const_spec(shape):
        # Full-array block, constant block index -> DMA'd once, VMEM-resident.
        return pl.BlockSpec(shape, lambda i: (0, 0))

    grid_spec = pltpu.PrefetchScalarGridSpec(
        num_scalar_prefetch=0,
        grid=grid,
        in_specs=[
            pl.BlockSpec(memory_space=pltpu.MemorySpace.SMEM),      # custom
            pl.BlockSpec((tile_m, fc1_in), lambda i: (i, 0)),       # x tile
            const_spec(kparams["w1"].shape), const_spec(kparams["b1"].shape),
            const_spec(kparams["w1b"].shape), const_spec(kparams["b1b"].shape),
            const_spec(kparams["w2"].shape), const_spec(kparams["b2"].shape),
        ],
        out_specs=pl.BlockSpec((tile_m, n_out), lambda i: (i, 0)),
    )

    return pl.pallas_call(
        functools.partial(_fused_net_kernel, num_steps=num_steps),
        out_shape=jax.ShapeDtypeStruct((B, n_out), jnp.float32),
        grid_spec=grid_spec,
        compiler_params=pltpu.CompilerParams(
            dimension_semantics=("parallel",),        # shard tiles across TCs on v7x
            vmem_limit_bytes=vmem_limit),
    )(*operands)


# ----------------------------------------------------------------------------
# Parameter init (deterministic, PyTorch-default-style uniform).
# Master weights are f32; kernel weights are a bf16 copy (storage dtype only).
# ----------------------------------------------------------------------------
def init_net_params(key, sample_size, input_channels=1, output_channels=1):
    net_size = sample_size * 8
    fc1_in = sample_size * input_channels
    k = jax.random.split(key, 6)

    def lin(kw, kb, fan_in, fan_out):
        bound = 1.0 / (fan_in ** 0.5)
        w = jax.random.uniform(kw, (fan_in, fan_out), jnp.float32, -bound, bound)
        b = jax.random.uniform(kb, (1, fan_out), jnp.float32, -bound, bound)
        return w, b

    w1, b1 = lin(k[0], k[1], fc1_in, net_size)
    w1b, b1b = lin(k[2], k[3], net_size, net_size)
    w2, b2 = lin(k[4], k[5], net_size, sample_size * output_channels)
    # CustomLayer parameters: tune=3.0, init_displacement=0.0, scaling_factor=1.0
    custom = jnp.array([3.0, 0.0, 1.0], dtype=jnp.float32)
    return dict(w1=w1, b1=b1, w1b=w1b, b1b=b1b, w2=w2, b2=b2, custom=custom)


def make_kernel_params(params):
    """bf16 weight storage for the kernel; biases/scalars stay f32."""
    # TODO(synk): on v6e int8 / on v7x fp8 weight storage would shrink DMA a
    # further 2x; kept bf16 here for a single portable code path.
    return dict(
        w1=params["w1"].astype(jnp.bfloat16),
        w1b=params["w1b"].astype(jnp.bfloat16),
        w2=params["w2"].astype(jnp.bfloat16),
        b1=params["b1"], b1b=params["b1b"], b2=params["b2"],
        custom=params["custom"],
    )


@functools.partial(jax.jit, static_argnames=("output_channels",))
def net_forward(x, kparams, output_channels=1):
    B = x.shape[0]
    h = x.reshape(B, -1)                       # flatten (B, S*Cin)
    tile_m = 8
    pad = (-B) % tile_m                        # static at trace time
    if pad:
        h = jnp.pad(h, ((0, pad), (0, 0)))
    out = fused_net_forward_pallas(h, kparams, num_steps=19, tile_m=tile_m)
    out = out[:B]
    return out.reshape(B, -1, output_channels)  # (B, S, Cout)


# ----------------------------------------------------------------------------
# Pure-JAX reference for correctness checking (same bf16 weight storage,
# f32 math at HIGHEST precision).
# ----------------------------------------------------------------------------
def net_forward_ref(x, kparams, num_steps=19, output_channels=1):
    hp = jax.lax.Precision.HIGHEST
    B = x.shape[0]
    h = x.reshape(B, -1)
    w1 = kparams["w1"].astype(jnp.float32)
    w1b = kparams["w1b"].astype(jnp.float32)
    w2 = kparams["w2"].astype(jnp.float32)
    h = jnp.maximum(jnp.dot(h, w1, precision=hp) + kparams["b1"], 0.0)
    h = jnp.maximum(jnp.dot(h, w1b, precision=hp) + kparams["b1b"], 0.0)
    tune, init_disp, scale = kparams["custom"]
    dt = (h + tune) / num_steps
    y = jnp.zeros_like(h) + init_disp
    v = dt
    for _ in range(num_steps):
        y, v = y + v, v - y * dt
    h = y * scale
    h = jnp.dot(h, w2, precision=hp) + kparams["b2"]
    return h.reshape(B, -1, output_channels)


if __name__ == "__main__":
    # Small-but-consistent shapes: sample_size=128 -> net_size=1024.
    # batch=16 with 8-row tiles -> grid=(2,): exercises weight residency
    # across grid steps and the parallel batch axis.
    sample_size = 128
    batch = 16

    key = jax.random.PRNGKey(0)
    k_param, k_x = jax.random.split(key)
    params = init_net_params(k_param, sample_size)
    kparams = make_kernel_params(params)
    x = jax.random.uniform(k_x, (batch, sample_size), dtype=jnp.float32)

    out = net_forward(x, kparams)
    out = jax.block_until_ready(out)
    assert out.shape == (batch, sample_size, 1)

    ref = net_forward_ref(x, kparams)
    max_err = float(jnp.max(jnp.abs(out - ref)))
    assert jnp.allclose(out, ref, rtol=2e-2, atol=2e-2), f"max abs err {max_err}"

    print("KERNEL_OK")
</pallas_src>

<mosaic_0001>
module attributes {stable_mosaic.version = 11 : i64} {
  func.func @_fused_net_kernel(%arg0: i32, %arg1: memref<3xf32, #tpu.memory_space<smem>>, %arg2: memref<8x128xf32, #tpu.memory_space<vmem>>, %arg3: memref<128x1024xbf16, #tpu.memory_space<vmem>>, %arg4: memref<1x1024xf32, #tpu.memory_space<vmem>>, %arg5: memref<1024x1024xbf16, #tpu.memory_space<vmem>>, %arg6: memref<1x1024xf32, #tpu.memory_space<vmem>>, %arg7: memref<1024x128xbf16, #tpu.memory_space<vmem>>, %arg8: memref<1x128xf32, #tpu.memory_space<vmem>>, %arg9: memref<8x128xf32, #tpu.memory_space<vmem>>) attributes {dimension_semantics = [#tpu.dimension_semantics<parallel>], iteration_bounds = array<i64: 2>, scalar_prefetch = 0 : i64, scratch_operands = 0 : i64, tpu.core_type = #tpu.core_type<tc>, window_params = [{transform_indices = @transform_0, window_bounds = array<i64: 3>}, {transform_indices = @transform_1, window_bounds = array<i64: 8, 128>}, {pipeline_mode = #tpu.pipeline_mode<synchronous>, transform_indices = @transform_2, window_bounds = array<i64: 128, 1024>}, {pipeline_mode = #tpu.pipeline_mode<synchronous>, transform_indices = @transform_3, window_bounds = array<i64: 1, 1024>}, {pipeline_mode = #tpu.pipeline_mode<synchronous>, transform_indices = @transform_4, window_bounds = array<i64: 1024, 1024>}, {pipeline_mode = #tpu.pipeline_mode<synchronous>, transform_indices = @transform_5, window_bounds = array<i64: 1, 1024>}, {pipeline_mode = #tpu.pipeline_mode<synchronous>, transform_indices = @transform_6, window_bounds = array<i64: 1024, 128>}, {pipeline_mode = #tpu.pipeline_mode<synchronous>, transform_indices = @transform_7, window_bounds = array<i64: 1, 128>}, {transform_indices = @transform_8, window_bounds = array<i64: 8, 128>}]} {
    %c0 = arith.constant 0 : index
    %c0_0 = arith.constant 0 : index
    %0 = vector.load %arg2[%c0, %c0_0] : memref<8x128xf32, #tpu.memory_space<vmem>>, vector<8x128xf32>
    %1 = arith.truncf %0 : vector<8x128xf32> to vector<8x128xbf16>
    %c0_1 = arith.constant 0 : index
    %c0_2 = arith.constant 0 : index
    %2 = vector.load %arg3[%c0_1, %c0_2] : memref<128x1024xbf16, #tpu.memory_space<vmem>>, vector<128x1024xbf16>
    %cst = arith.constant dense<0.000000e+00> : vector<8x1024xf32>
    %3 = tpu.matmul %1, %2, %cst {dimension_numbers = #tpu.dot_dimension_numbers<[1], [0], [0], [1], [0, 0, 1, 1], [], []>} : vector<8x128xbf16>, vector<128x1024xbf16>, vector<8x1024xf32> -> vector<8x1024xf32>
    %c0_3 = arith.constant 0 : index
    %c0_4 = arith.constant 0 : index
    %4 = vector.load %arg4[%c0_3, %c0_4] : memref<1x1024xf32, #tpu.memory_space<vmem>>, vector<1x1024xf32>
    %5 = vector.broadcast %4 : vector<1x1024xf32> to vector<8x1024xf32>
    %6 = arith.addf %3, %5 : vector<8x1024xf32>
    %cst_5 = arith.constant 0.000000e+00 : f32
    %7 = vector.broadcast %cst_5 : f32 to vector<8x1024xf32>
    %8 = arith.maximumf %6, %7 : vector<8x1024xf32>
    %9 = arith.truncf %8 : vector<8x1024xf32> to vector<8x1024xbf16>
    %c0_6 = arith.constant 0 : index
    %c0_7 = arith.constant 0 : index
    %10 = vector.load %arg5[%c0_6, %c0_7] : memref<1024x1024xbf16, #tpu.memory_space<vmem>>, vector<1024x1024xbf16>
    %cst_8 = arith.constant dense<0.000000e+00> : vector<8x1024xf32>
    %11 = tpu.matmul %9, %10, %cst_8 {dimension_numbers = #tpu.dot_dimension_numbers<[1], [0], [0], [1], [0, 0, 1, 1], [], []>} : vector<8x1024xbf16>, vector<1024x1024xbf16>, vector<8x1024xf32> -> vector<8x1024xf32>
    %c0_9 = arith.constant 0 : index
    %c0_10 = arith.constant 0 : index
    %12 = vector.load %arg6[%c0_9, %c0_10] : memref<1x1024xf32, #tpu.memory_space<vmem>>, vector<1x1024xf32>
    %13 = vector.broadcast %12 : vector<1x1024xf32> to vector<8x1024xf32>
    %14 = arith.addf %11, %13 : vector<8x1024xf32>
    %cst_11 = arith.constant 0.000000e+00 : f32
    %15 = vector.broadcast %cst_11 : f32 to vector<8x1024xf32>
    %16 = arith.maximumf %14, %15 : vector<8x1024xf32>
    %c0_12 = arith.constant 0 : index
    %17 = memref.load %arg1[%c0_12] : memref<3xf32, #tpu.memory_space<smem>>
    %c1 = arith.constant 1 : index
    %18 = memref.load %arg1[%c1] : memref<3xf32, #tpu.memory_space<smem>>
    %c2 = arith.constant 2 : index
    %19 = memref.load %arg1[%c2] : memref<3xf32, #tpu.memory_space<smem>>
    %20 = vector.broadcast %17 : f32 to vector<8x1024xf32>
    %21 = arith.addf %16, %20 : vector<8x1024xf32>
    %cst_13 = arith.constant 0.0526315793 : f32
    %22 = vector.broadcast %cst_13 : f32 to vector<8x1024xf32>
    %23 = arith.mulf %21, %22 : vector<8x1024xf32>
    %cst_14 = arith.constant 0.000000e+00 : f32
    %24 = vector.broadcast %cst_14 : f32 to vector<8x1024xf32>
    %25 = vector.broadcast %18 : f32 to vector<8x1024xf32>
    %26 = arith.addf %24, %25 : vector<8x1024xf32>
    %27 = arith.addf %26, %23 : vector<8x1024xf32>
    %28 = arith.mulf %26, %23 : vector<8x1024xf32>
    %29 = arith.subf %23, %28 : vector<8x1024xf32>
    %30 = arith.addf %27, %29 : vector<8x1024xf32>
    %31 = arith.mulf %27, %23 : vector<8x1024xf32>
    %32 = arith.subf %29, %31 : vector<8x1024xf32>
    %33 = arith.addf %30, %32 : vector<8x1024xf32>
    %34 = arith.mulf %30, %23 : vector<8x1024xf32>
    %35 = arith.subf %32, %34 : vector<8x1024xf32>
    %36 = arith.addf %33, %35 : vector<8x1024xf32>
    %37 = arith.mulf %33, %23 : vector<8x1024xf32>
    %38 = arith.subf %35, %37 : vector<8x1024xf32>
    %39 = arith.addf %36, %38 : vector<8x1024xf32>
    %40 = arith.mulf %36, %23 : vector<8x1024xf32>
    %41 = arith.subf %38, %40 : vector<8x1024xf32>
    %42 = arith.addf %39, %41 : vector<8x1024xf32>
    %43 = arith.mulf %39, %23 : vector<8x1024xf32>
    %44 = arith.subf %41, %43 : vector<8x1024xf32>
    %45 = arith.addf %42, %44 : vector<8x1024xf32>
    %46 = arith.mulf %42, %23 : vector<8x1024xf32>
    %47 = arith.subf %44, %46 : vector<8x1024xf32>
    %48 = arith.addf %45, %47 : vector<8x1024xf32>
    %49 = arith.mulf %45, %23 : vector<8x1024xf32>
    %50 = arith.subf %47, %49 : vector<8x1024xf32>
    %51 = arith.addf %48, %50 : vector<8x1024xf32>
    %52 = arith.mulf %48, %23 : vector<8x1024xf32>
    %53 = arith.subf %50, %52 : vector<8x1024xf32>
    %54 = arith.addf %51, %53 : vector<8x1024xf32>
    %55 = arith.mulf %51, %23 : vector<8x1024xf32>
    %56 = arith.subf %53, %55 : vector<8x1024xf32>
    %57 = arith.addf %54, %56 : vector<8x1024xf32>
    %58 = arith.mulf %54, %23 : vector<8x1024xf32>
    %59 = arith.subf %56, %58 : vector<8x1024xf32>
    %60 = arith.addf %57, %59 : vector<8x1024xf32>
    %61 = arith.mulf %57, %23 : vector<8x1024xf32>
    %62 = arith.subf %59, %61 : vector<8x1024xf32>
    %63 = arith.addf %60, %62 : vector<8x1024xf32>
    %64 = arith.mulf %60, %23 : vector<8x1024xf32>
    %65 = arith.subf %62, %64 : vector<8x1024xf32>
    %66 = arith.addf %63, %65 : vector<8x1024xf32>
    %67 = arith.mulf %63, %23 : vector<8x1024xf32>
    %68 = arith.subf %65, %67 : vector<8x1024xf32>
    %69 = arith.addf %66, %68 : vector<8x1024xf32>
    %70 = arith.mulf %66, %23 : vector<8x1024xf32>
    %71 = arith.subf %68, %70 : vector<8x1024xf32>
    %72 = arith.addf %69, %71 : vector<8x1024xf32>
    %73 = arith.mulf %69, %23 : vector<8x1024xf32>
    %74 = arith.subf %71, %73 : vector<8x1024xf32>
    %75 = arith.addf %72, %74 : vector<8x1024xf32>
    %76 = arith.mulf %72, %23 : vector<8x1024xf32>
    %77 = arith.subf %74, %76 : vector<8x1024xf32>
    %78 = arith.addf %75, %77 : vector<8x1024xf32>
    %79 = arith.mulf %75, %23 : vector<8x1024xf32>
    %80 = arith.subf %77, %79 : vector<8x1024xf32>
    %81 = arith.addf %78, %80 : vector<8x1024xf32>
    %82 = vector.broadcast %19 : f32 to vector<8x1024xf32>
    %83 = arith.mulf %81, %82 : vector<8x1024xf32>
    %84 = arith.truncf %83 : vector<8x1024xf32> to vector<8x1024xbf16>
    %c0_15 = arith.constant 0 : index
    %c0_16 = arith.constant 0 : index
    %85 = vector.load %arg7[%c0_15, %c0_16] : memref<1024x128xbf16, #tpu.memory_space<vmem>>, vector<1024x128xbf16>
    %cst_17 = arith.constant dense<0.000000e+00> : vector<8x128xf32>
    %86 = tpu.matmul %84, %85, %cst_17 {dimension_numbers = #tpu.dot_dimension_numbers<[1], [0], [0], [1], [0, 0, 1, 1], [], []>} : vector<8x1024xbf16>, vector<1024x128xbf16>, vector<8x128xf32> -> vector<8x128xf32>
    %c0_18 = arith.constant 0 : index
    %c0_19 = arith.constant 0 : index
    %87 = vector.load %arg8[%c0_18, %c0_19] : memref<1x128xf32, #tpu.memory_space<vmem>>, vector<1x128xf32>
    %88 = vector.broadcast %87 : vector<1x128xf32> to vector<8x128xf32>
    %89 = arith.addf %86, %88 : vector<8x128xf32>
    %c0_20 = arith.constant 0 : index
    %c0_21 = arith.constant 0 : index
    %90 = vector.load %arg9[%c0_20, %c0_21] : memref<8x128xf32, #tpu.memory_space<vmem>>, vector<8x128xf32>
    tpu.vector_store %arg9[%c0_20, %c0_21], %89 {strides = array<i32>} : memref<8x128xf32, #tpu.memory_space<vmem>>, vector<8x128xf32>,
    return
  }
  func.func @transform_0(%arg0: i32) -> i32 {
    %c0_i32 = arith.constant 0 : i32
    %c0_i32_0 = arith.constant 0 : i32
    return %c0_i32 : i32
  }
  func.func @transform_1(%arg0: i32) -> (i32, i32) {
    %c0_i32 = arith.constant 0 : i32
    %c0_i32_0 = arith.constant 0 : i32
    return %arg0, %c0_i32 : i32, i32
  }
  func.func @transform_2(%arg0: i32) -> (i32, i32) {
    %c0_i32 = arith.constant 0 : i32
    %c0_i32_0 = arith.constant 0 : i32
    %c0_i32_1 = arith.constant 0 : i32
    return %c0_i32, %c0_i32_0 : i32, i32
  }
  func.func @transform_3(%arg0: i32) -> (i32, i32) {
    %c0_i32 = arith.constant 0 : i32
    %c0_i32_0 = arith.constant 0 : i32
    %c0_i32_1 = arith.constant 0 : i32
    return %c0_i32, %c0_i32_0 : i32, i32
  }
  func.func @transform_4(%arg0: i32) -> (i32, i32) {
    %c0_i32 = arith.constant 0 : i32
    %c0_i32_0 = arith.constant 0 : i32
    %c0_i32_1 = arith.constant 0 : i32
    return %c0_i32, %c0_i32_0 : i32, i32
  }
  func.func @transform_5(%arg0: i32) -> (i32, i32) {
    %c0_i32 = arith.constant 0 : i32
    %c0_i32_0 = arith.constant 0 : i32
    %c0_i32_1 = arith.constant 0 : i32
    return %c0_i32, %c0_i32_0 : i32, i32
  }
  func.func @transform_6(%arg0: i32) -> (i32, i32) {
    %c0_i32 = arith.constant 0 : i32
    %c0_i32_0 = arith.constant 0 : i32
    %c0_i32_1 = arith.constant 0 : i32
    return %c0_i32, %c0_i32_0 : i32, i32
  }
  func.func @transform_7(%arg0: i32) -> (i32, i32) {
    %c0_i32 = arith.constant 0 : i32
    %c0_i32_0 = arith.constant 0 : i32
    %c0_i32_1 = arith.constant 0 : i32
    return %c0_i32, %c0_i32_0 : i32, i32
  }
  func.func @transform_8(%arg0: i32) -> (i32, i32) {
    %c0_i32 = arith.constant 0 : i32
    %c0_i32_0 = arith.constant 0 : i32
    return %arg0, %c0_i32 : i32, i32
  }
}

</mosaic_0001>

<llo_original>
// kernel: net_forward.1
$region0: #{net_forward.1}
  #allocation0 [shape = 'u32[]', space=smem, size = 0x4, offset = 0x4, fixed_abs, tag = 'smem constant byte address 0x4 - core index']
  #allocation1 [shape = 'u32[144,128]{1,0:T(1,128)}', space=vmem, size = 0x12000, scoped, tag = 'internal scratch']
  %s0 = inlined_call_operand.hbm [shape: f32[3], index: 0, kind: input, shape index: {}]
  %s1 = inlined_call_operand.hbm [shape: f32[16,128], index: 1, kind: input, shape index: {}]
  %s2 = inlined_call_operand.hbm [shape: bf16[128,1024], index: 2, kind: input, shape index: {}]
  %s3 = inlined_call_operand.hbm [shape: f32[1,1024], index: 3, kind: input, shape index: {}]
  %s4 = inlined_call_operand.hbm [shape: bf16[1024,1024], index: 4, kind: input, shape index: {}]
  %s5 = inlined_call_operand.hbm [shape: f32[1,1024], index: 5, kind: input, shape index: {}]
  %s6 = inlined_call_operand.hbm [shape: bf16[1024,128], index: 6, kind: input, shape index: {}]
  %s7 = inlined_call_operand.hbm [shape: f32[1,128], index: 7, kind: input, shape index: {}]
  %s8 = inlined_call_operand.hbm [shape: f32[16,128], index: 8, kind: output, shape index: {}]
  %s9 = sld [smem:[#allocation0]]
  $region97: #{net_forward.1} parent=0
    _
  %s11 = ssub.s32 1, %s9
  %s12 = scalar_select 0, %s11, %s9
  $region1: #{net_forward.1} parent=0
    #allocation2 [shape = 'u8[512]{0}', space=smem, size = 0x200, scoped, tag = 'input window, operand 0, single buffered']
    #allocation3 [shape = 's32[2]{0}', space=sflag, size = 0x8, scoped, tag = 'scoped memory for net_forward.1']
    #allocation4 [shape = 's32[2]{0}', space=sflag, size = 0x8, scoped, tag = 'scoped memory for net_forward.1']
    #allocation5 [shape = 's32[2]{0}', space=sflag, size = 0x8, scoped, tag = 'scoped memory for net_forward.1']
    #allocation6 [shape = 'u8[8192]{0}', space=vmem, size = 0x2000, scoped, tag = 'input window, operand 1']
    #allocation7 [shape = 'u8[262144]{0}', space=vmem, size = 0x40000, scoped, tag = 'input window, operand 2, single buffered']
    #allocation8 [shape = 's32[1]{0}', space=sflag, size = 0x4, scoped, tag = 'scoped memory for net_forward.1']
    #allocation9 [shape = 'u8[4096]{0}', space=vmem, size = 0x1000, scoped, tag = 'input window, operand 3, single buffered']
    #allocation10 [shape = 'u8[2097152]{0}', space=vmem, size = 0x200000, scoped, tag = 'input window, operand 4, single buffered']
    #allocation11 [shape = 's32[1]{0}', space=sflag, size = 0x4, scoped, tag = 'scoped memory for net_forward.1']
    #allocation12 [shape = 'u8[4096]{0}', space=vmem, size = 0x1000, scoped, tag = 'input window, operand 5, single buffered']
    #allocation13 [shape = 'u8[262144]{0}', space=vmem, size = 0x40000, scoped, tag = 'input window, operand 6, single buffered']
    #allocation14 [shape = 's32[1]{0}', space=sflag, size = 0x4, scoped, tag = 'scoped memory for net_forward.1']
    #allocation15 [shape = 'u8[512]{0}', space=vmem, size = 0x400, scoped, tag = 'input window, operand 7, single buffered']
    #allocation16 [shape = 'u8[8192]{0}', space=vmem, size = 0x2000, scoped, tag = 'output window, operand 0']
    %13 = vsyncpa [#allocation5], 0
    %14 = vsyncpa [#allocation3], 0
    %s15 = scalar_lea.sflag [#allocation3], 1
    %16 = vsyncpa %s15, 0
    %17 = vsyncpa [#allocation8], 0
    %18 = vsyncpa [#allocation11], 0
    %19 = vsyncpa [#allocation14], 0
    %20 = vsyncpa [#allocation4], 0
    %s21 = scalar_lea.sflag [#allocation4], 1
    %22 = vsyncpa %s21, 0
    loop: start=0, step=1, limit=4
    $region2: #{net_forward.1} parent=1 // loop_pre_header
      _
    $region3: #{net_forward.1} parent=1 // loop_header
      %s24 = sphi 0, %s28
      %p25 = scmp.ge.s32.totalorder %s24, 4
      %s32 = sphi 0, %s32
      %s34 = sphi 0, %s32
      %s35 = sphi 0, %s34
      %s49 = sphi 0, %s35
      %s55 = sphi 0, %s57
      %s58 = sphi 0, %s55
      %s59 = sphi 0, %s58
      %s75 = sphi 0, %s59
      %s79 = sphi 0, %s79
      %s81 = sphi 0, %s79
      %s82 = sphi 0, %s81
      %s96 = sphi 0, %s82
      %s100 = sphi 0, %s100
      %s102 = sphi 0, %s100
      %s103 = sphi 0, %s102
      %s117 = sphi 0, %s103
      %s121 = sphi 0, %s121
      %s123 = sphi 0, %s121
      %s124 = sphi 0, %s123
      %s138 = sphi 0, %s124
      %s142 = sphi 0, %s142
      %s144 = sphi 0, %s142
      %s145 = sphi 0, %s144
      %s159 = sphi 0, %s145
      %s163 = sphi 0, %s163
      %s165 = sphi 0, %s163
      %s166 = sphi 0, %s165
      %s180 = sphi 0, %s166
      %s184 = sphi 0, %s184
      %s186 = sphi 0, %s184
      %s187 = sphi 0, %s186
      %s201 = sphi 0, %s187
      %s207 = sphi 0, %s209
      %s210 = sphi 0, %s207
      %s211 = sphi 0, %s210
      %s227 = sphi 0, %s211
    $region4: #{net_forward.1} parent=1 // loop_header_branch
      %27 = sbr.rel (%p25) target = $region8
    $region5: #{net_forward.1} parent=1 // loop_body
      %s29 = ssub.s32 %s24, 1
      %s30 = ssub.s32 %s24, 2
      %s31 = sadd.s32 %s24, 1
      %s33 = sadd.s32 %s32, 1
      %p36 = scmp.eq.s32.totalorder %s24, 1
      %p37 = scmp.ne.s32.totalorder %s32, %s34
      %p38 = scmp.eq.s32.totalorder %s24, 0
      %p39 = por %p37, %p38
      %p40 = scmp.ne.s32.totalorder %s32, %s34
      %p41 = scmp.eq.s32.totalorder %s29, 1
      %p42 = por %p40, %p41
      %p43 = scmp.ne.s32.totalorder %s34, %s35
      %p44 = scmp.eq.s32.totalorder %s29, 0
      %p45 = por %p43, %p44
      %p46 = scmp.ne.s32.totalorder %s34, %s35
      %p47 = scmp.eq.s32.totalorder %s30, 1
      %p48 = por %p46, %p47
      %p50 = scmp.ne.s32.totalorder %s35, %s49
      %p51 = scmp.eq.s32.totalorder %s30, 0
      %p52 = por %p50, %p51
      %s53 = ssub.s32 %s24, %s31
      %p54 = scmp.eq.s32.totalorder %s53, 0
      %s56 = sadd.s32 %s55, 1
      %s57 = scalar_select %p54, %s55, %s56
      %p60 = pneg %p54
      %p61 = scmp.eq.s32.totalorder %s24, 1
      %p62 = por %p60, %p61
      %p63 = scmp.ne.s32.totalorder %s55, %s58
      %p64 = scmp.eq.s32.totalorder %s24, 0
      %p65 = por %p63, %p64
      %p66 = scmp.ne.s32.totalorder %s55, %s58
      %p67 = scmp.eq.s32.totalorder %s29, 1
      %p68 = por %p66, %p67
      %p69 = scmp.ne.s32.totalorder %s58, %s59
      %p70 = scmp.eq.s32.totalorder %s29, 0
      %p71 = por %p69, %p70
      %p72 = scmp.ne.s32.totalorder %s58, %s59
      %p73 = scmp.eq.s32.totalorder %s30, 1
      %p74 = por %p72, %p73
      %p76 = scmp.ne.s32.totalorder %s59, %s75
      %p77 = scmp.eq.s32.totalorder %s30, 0
      %p78 = por %p76, %p77
      %s80 = sadd.s32 %s79, 1
      %p83 = scmp.eq.s32.totalorder %s24, 1
      %p84 = scmp.ne.s32.totalorder %s79, %s81
      %p85 = scmp.eq.s32.totalorder %s24, 0
      %p86 = por %p84, %p85
      %p87 = scmp.ne.s32.totalorder %s79, %s81
      %p88 = scmp.eq.s32.totalorder %s29, 1
      %p89 = por %p87, %p88
      %p90 = scmp.ne.s32.totalorder %s81, %s82
      %p91 = scmp.eq.s32.totalorder %s29, 0
      %p92 = por %p90, %p91
      %p93 = scmp.ne.s32.totalorder %s81, %s82
      %p94 = scmp.eq.s32.totalorder %s30, 1
      %p95 = por %p93, %p94
      %p97 = scmp.ne.s32.totalorder %s82, %s96
      %p98 = scmp.eq.s32.totalorder %s30, 0
      %p99 = por %p97, %p98
      %s101 = sadd.s32 %s100, 1
      %p104 = scmp.eq.s32.totalorder %s24, 1
      %p105 = scmp.ne.s32.totalorder %s100, %s102
      %p106 = scmp.eq.s32.totalorder %s24, 0
      %p107 = por %p105, %p106
      %p108 = scmp.ne.s32.totalorder %s100, %s102
      %p109 = scmp.eq.s32.totalorder %s29, 1
      %p110 = por %p108, %p109
      %p111 = scmp.ne.s32.totalorder %s102, %s103
      %p112 = scmp.eq.s32.totalorder %s29, 0
      %p113 = por %p111, %p112
      %p114 = scmp.ne.s32.totalorder %s102, %s103
      %p115 = scmp.eq.s32.totalorder %s30, 1
      %p116 = por %p114, %p115
      %p118 = scmp.ne.s32.totalorder %s103, %s117
      %p119 = scmp.eq.s32.totalorder %s30, 0
      %p120 = por %p118, %p119
      %s122 = sadd.s32 %s121, 1
      %p125 = scmp.eq.s32.totalorder %s24, 1
      %p126 = scmp.ne.s32.totalorder %s121, %s123
      %p127 = scmp.eq.s32.totalorder %s24, 0
      %p128 = por %p126, %p127
      %p129 = scmp.ne.s32.totalorder %s121, %s123
      %p130 = scmp.eq.s32.totalorder %s29, 1
      %p131 = por %p129, %p130
      %p132 = scmp.ne.s32.totalorder %s123, %s124
      %p133 = scmp.eq.s32.totalorder %s29, 0
      %p134 = por %p132, %p133
      %p135 = scmp.ne.s32.totalorder %s123, %s124
      %p136 = scmp.eq.s32.totalorder %s30, 1
      %p137 = por %p135, %p136
      %p139 = scmp.ne.s32.totalorder %s124, %s138
      %p140 = scmp.eq.s32.totalorder %s30, 0
      %p141 = por %p139, %p140
      %s143 = sadd.s32 %s142, 1
      %p146 = scmp.eq.s32.totalorder %s24, 1
      %p147 = scmp.ne.s32.totalorder %s142, %s144
      %p148 = scmp.eq.s32.totalorder %s24, 0
      %p149 = por %p147, %p148
      %p150 = scmp.ne.s32.totalorder %s142, %s144
      %p151 = scmp.eq.s32.totalorder %s29, 1
      %p152 = por %p150, %p151
      %p153 = scmp.ne.s32.totalorder %s144, %s145
      %p154 = scmp.eq.s32.totalorder %s29, 0
      %p155 = por %p153, %p154
      %p156 = scmp.ne.s32.totalorder %s144, %s145
      %p157 = scmp.eq.s32.totalorder %s30, 1
      %p158 = por %p156, %p157
      %p160 = scmp.ne.s32.totalorder %s145, %s159
      %p161 = scmp.eq.s32.totalorder %s30, 0
      %p162 = por %p160, %p161
      %s164 = sadd.s32 %s163, 1
      %p167 = scmp.eq.s32.totalorder %s24, 1
      %p168 = scmp.ne.s32.totalorder %s163, %s165
      %p169 = scmp.eq.s32.totalorder %s24, 0
      %p170 = por %p168, %p169
      %p171 = scmp.ne.s32.totalorder %s163, %s165
      %p172 = scmp.eq.s32.totalorder %s29, 1
      %p173 = por %p171, %p172
      %p174 = scmp.ne.s32.totalorder %s165, %s166
      %p175 = scmp.eq.s32.totalorder %s29, 0
      %p176 = por %p174, %p175
      %p177 = scmp.ne.s32.totalorder %s165, %s166
      %p178 = scmp.eq.s32.totalorder %s30, 1
      %p179 = por %p177, %p178
      %p181 = scmp.ne.s32.totalorder %s166, %s180
      %p182 = scmp.eq.s32.totalorder %s30, 0
      %p183 = por %p181, %p182
      %s185 = sadd.s32 %s184, 1
      %p188 = scmp.eq.s32.totalorder %s24, 1
      %p189 = scmp.ne.s32.totalorder %s184, %s186
      %p190 = scmp.eq.s32.totalorder %s24, 0
      %p191 = por %p189, %p190
      %p192 = scmp.ne.s32.totalorder %s184, %s186
      %p193 = scmp.eq.s32.totalorder %s29, 1
      %p194 = por %p192, %p193
      %p195 = scmp.ne.s32.totalorder %s186, %s187
      %p196 = scmp.eq.s32.totalorder %s29, 0
      %p197 = por %p195, %p196
      %p198 = scmp.ne.s32.totalorder %s186, %s187
      %p199 = scmp.eq.s32.totalorder %s30, 1
      %p200 = por %p198, %p199
      %p202 = scmp.ne.s32.totalorder %s187, %s201
      %p203 = scmp.eq.s32.totalorder %s30, 0
      %p204 = por %p202, %p203
      %s205 = ssub.s32 %s24, %s31
      %p206 = scmp.eq.s32.totalorder %s205, 0
      %s208 = sadd.s32 %s207, 1
      %s209 = scalar_select %p206, %s207, %s208
      %p212 = pneg %p206
      %p213 = scmp.eq.s32.totalorder %s24, 1
      %p214 = por %p212, %p213
      %p215 = scmp.ne.s32.totalorder %s207, %s210
      %p216 = scmp.eq.s32.totalorder %s24, 0
      %p217 = por %p215, %p216
      %p218 = scmp.ne.s32.totalorder %s207, %s210
      %p219 = scmp.eq.s32.totalorder %s29, 1
      %p220 = por %p218, %p219
      %p221 = scmp.ne.s32.totalorder %s210, %s211
      %p222 = scmp.eq.s32.totalorder %s29, 0
      %p223 = por %p221, %p222
      %p224 = scmp.ne.s32.totalorder %s210, %s211
      %p225 = scmp.eq.s32.totalorder %s30, 1
      %p226 = por %p224, %p225
      %p228 = scmp.ne.s32.totalorder %s211, %s227
      %p229 = scmp.eq.s32.totalorder %s30, 0
      %p230 = por %p228, %p229
      %p231 = scmp.le.s32.totalorder 1, %s24
      %p232 = scmp.lt.s32.totalorder %s24, 3
      %p233 = pnand %p231, %p232
      %p234 = pneg %p233
      // Predicated region
      $region9: #{net_forward.1} parent=5 // pred_check
        _
      $region10: #{net_forward.1} parent=5 // pred_check_branch
        %236 = sbr.rel (%p233) target = $region12
      $region11: #{net_forward.1} parent=5 // pred_region
        %s237 = ssub.s32 %s24, 1
        // Predicated region
        $region13: #{net_forward.1} parent=11 // pred_check
          %p238 = pneg %p45
        $region14: #{net_forward.1} parent=11 // pred_check_branch
          %240 = sbr.rel (%p238) target = $region16
        $region15: #{net_forward.1} parent=11 // pred_region
          %s242 = ssub.s32 16, 16
          %243 = vsyncadd [#allocation5], %s242
          %246 = dma.hbm_to_smem %s0, 16, [#allocation2], [#allocation5]
        $region16: #{net_forward.1} parent=11 // pred_fallthru
          _
        // Predicated region
        $region17: #{net_forward.1} parent=11 // pred_check
          %p247 = pneg %p92
        $region18: #{net_forward.1} parent=11 // pred_check_branch
          %249 = sbr.rel (%p247) target = $region20
        $region19: #{net_forward.1} parent=11 // pred_region
          %s251 = ssub.s32 8192, 8192
          %252 = vsyncadd [#allocation8], %s251
          %s253 = sshll.u32 [#allocation7], 4
          %s254 = int_to_ptr.vmem [resolvable:$true] %s253
          %259 = dma.hbm_to_vmem [thread:$0]  %s2, 8192, %s254, [#allocation8], 512, 512, 32
        $region20: #{net_forward.1} parent=11 // pred_fallthru
          _
        // Predicated region
        $region21: #{net_forward.1} parent=11 // pred_check
          %p260 = pneg %p113
        $region22: #{net_forward.1} parent=11 // pred_check_branch
          %262 = sbr.rel (%p260) target = $region24
        $region23: #{net_forward.1} parent=11 // pred_region
          %s264 = ssub.s32 128, 128
          %265 = vsyncadd [#allocation8], %s264
          %s267 = sshll.u32 [#allocation9], 4
          %s268 = int_to_ptr.vmem [resolvable:$true] %s267
          %270 = dma.hbm_to_vmem [thread:$0]  %s3, 128, %s268, [#allocation8]
        $region24: #{net_forward.1} parent=11 // pred_fallthru
          _
        // Predicated region
        $region25: #{net_forward.1} parent=11 // pred_check
          %p271 = pneg %p134
        $region26: #{net_forward.1} parent=11 // pred_check_branch
          %273 = sbr.rel (%p271) target = $region28
        $region27: #{net_forward.1} parent=11 // pred_region
          %s275 = ssub.s32 65536, 65536
          %276 = vsyncadd [#allocation11], %s275
          %s277 = sshll.u32 [#allocation10], 4
          %s278 = int_to_ptr.vmem [resolvable:$true] %s277
          %283 = dma.hbm_to_vmem [thread:$0]  %s4, 65536, %s278, [#allocation11], 512, 512, 32
        $region28: #{net_forward.1} parent=11 // pred_fallthru
          _
        // Predicated region
        $region29: #{net_forward.1} parent=11 // pred_check
          %p284 = pneg %p155
        $region30: #{net_forward.1} parent=11 // pred_check_branch
          %286 = sbr.rel (%p284) target = $region32
        $region31: #{net_forward.1} parent=11 // pred_region
          %s288 = ssub.s32 128, 128
          %289 = vsyncadd [#allocation11], %s288
          %s291 = sshll.u32 [#allocation12], 4
          %s292 = int_to_ptr.vmem [resolvable:$true] %s291
          %294 = dma.hbm_to_vmem [thread:$0]  %s5, 128, %s292, [#allocation11]
        $region32: #{net_forward.1} parent=11 // pred_fallthru
          _
        // Predicated region
        $region33: #{net_forward.1} parent=11 // pred_check
          %p295 = pneg %p176
        $region34: #{net_forward.1} parent=11 // pred_check_branch
          %297 = sbr.rel (%p295) target = $region36
        $region35: #{net_forward.1} parent=11 // pred_region
          %s299 = ssub.s32 8192, 8192
          %300 = vsyncadd [#allocation14], %s299
          %s301 = sshll.u32 [#allocation13], 4
          %s302 = int_to_ptr.vmem [resolvable:$true] %s301
          %307 = dma.hbm_to_vmem [thread:$0]  %s6, 8192, %s302, [#allocation14], 64, 64, 4
        $region36: #{net_forward.1} parent=11 // pred_fallthru
          _
        // Predicated region
        $region37: #{net_forward.1} parent=11 // pred_check
          %p308 = pneg %p197
        $region38: #{net_forward.1} parent=11 // pred_check_branch
          %310 = sbr.rel (%p308) target = $region40
        $region39: #{net_forward.1} parent=11 // pred_region
          %s312 = ssub.s32 16, 16
          %313 = vsyncadd [#allocation14], %s312
          %s315 = sshll.u32 [#allocation15], 4
          %s316 = int_to_ptr.vmem [resolvable:$true] %s315
          %318 = dma.hbm_to_vmem [thread:$0]  %s7, 16, %s316, [#allocation14]
        $region40: #{net_forward.1} parent=11 // pred_fallthru
          _
      $region12: #{net_forward.1} parent=5 // pred_fallthru
        _
      %p319 = scmp.lt.s32.totalorder %s24, 2
      // Predicated region
      $region41: #{net_forward.1} parent=5 // pred_check
        %p320 = pneg %p319
      $region42: #{net_forward.1} parent=5 // pred_check_branch
        %322 = sbr.rel (%p320) target = $region44
      $region43: #{net_forward.1} parent=5 // pred_region
        // Predicated region
        $region45: #{net_forward.1} parent=43 // pred_check
          %p323 = pneg %p65
        $region46: #{net_forward.1} parent=43 // pred_check_branch
          %325 = sbr.rel (%p323) target = $region48
        $region47: #{net_forward.1} parent=43 // pred_region
          %s326 = sand.u32 %s55, 1
          %s327 = scalar_lea.sflag [#allocation3], %s326
          %s328 = sand.u32 %s55, 1
          %s329 = smul.addr %s328, 8
          %s330 = scalar_lea.vmem [#allocation6], %s329
          %s332 = ssub.s32 128, 128
          %333 = vsyncadd %s327, %s332
          %s334 = smul.addr %s24, 128
          %s335 = scalar_lea.hbm %s1, %s334
          %s337 = sshll.u32 %s330, 4
          %s338 = int_to_ptr.vmem [resolvable:$true] %s337
          %340 = dma.hbm_to_vmem [thread:$0]  %s335, 128, %s338, %s327
        $region48: #{net_forward.1} parent=43 // pred_fallthru
          _
      $region44: #{net_forward.1} parent=5 // pred_fallthru
        _
      %p341 = scmp.le.s32.totalorder 1, %s24
      %p342 = scmp.lt.s32.totalorder %s24, 3
      %p343 = pnand %p341, %p342
      %p344 = pneg %p343
      // Predicated region
      $region49: #{net_forward.1} parent=5 // pred_check
        _
      $region50: #{net_forward.1} parent=5 // pred_check_branch
        %346 = sbr.rel (%p343) target = $region52
      $region51: #{net_forward.1} parent=5 // pred_region
        %s347 = ssub.s32 %s24, 1
        // Predicated region
        $region53: #{net_forward.1} parent=51 // pred_check
          %p348 = pneg %p45
        $region54: #{net_forward.1} parent=51 // pred_check_branch
          %350 = sbr.rel (%p348) target = $region56
        $region55: #{net_forward.1} parent=51 // pred_region
          %351 = dma.done [#allocation5], 16
        $region56: #{net_forward.1} parent=51 // pred_fallthru
          _
        %s352 = sand.u32 %s58, 1
        %s353 = scalar_lea.sflag [#allocation3], %s352
        %s354 = sand.u32 %s58, 1
        %s355 = smul.addr %s354, 8
        %s356 = scalar_lea.vmem [#allocation6], %s355
        // Predicated region
        $region57: #{net_forward.1} parent=51 // pred_check
          %p357 = pneg %p71
        $region58: #{net_forward.1} parent=51 // pred_check_branch
          %359 = sbr.rel (%p357) target = $region60
        $region59: #{net_forward.1} parent=51 // pred_region
          %360 = dma.done %s353, 128
        $region60: #{net_forward.1} parent=51 // pred_fallthru
          _
        // Predicated region
        $region61: #{net_forward.1} parent=51 // pred_check
          %p361 = pneg %p92
        $region62: #{net_forward.1} parent=51 // pred_check_branch
          %363 = sbr.rel (%p361) target = $region64
        $region63: #{net_forward.1} parent=51 // pred_region
          %364 = dma.done [#allocation8], 8192
        $region64: #{net_forward.1} parent=51 // pred_fallthru
          _
        // Predicated region
        $region65: #{net_forward.1} parent=51 // pred_check
          %p365 = pneg %p113
        $region66: #{net_forward.1} parent=51 // pred_check_branch
          %367 = sbr.rel (%p365) target = $region68
        $region67: #{net_forward.1} parent=51 // pred_region
          %368 = dma.done [#allocation8], 128
        $region68: #{net_forward.1} parent=51 // pred_fallthru
          _
        // Predicated region
        $region69: #{net_forward.1} parent=51 // pred_check
          %p369 = pneg %p134
        $region70: #{net_forward.1} parent=51 // pred_check_branch
          %371 = sbr.rel (%p369) target = $region72
        $region71: #{net_forward.1} parent=51 // pred_region
          %372 = dma.done [#allocation11], 65536
        $region72: #{net_forward.1} parent=51 // pred_fallthru
          _
        // Predicated region
        $region73: #{net_forward.1} parent=51 // pred_check
          %p373 = pneg %p155
        $region74: #{net_forward.1} parent=51 // pred_check_branch
          %375 = sbr.rel (%p373) target = $region76
        $region75: #{net_forward.1} parent=51 // pred_region
          %376 = dma.done [#allocation11], 128
        $region76: #{net_forward.1} parent=51 // pred_fallthru
          _
        // Predicated region
        $region77: #{net_forward.1} parent=51 // pred_check
          %p377 = pneg %p176
        $region78: #{net_forward.1} parent=51 // pred_check_branch
          %379 = sbr.rel (%p377) target = $region80
        $region79: #{net_forward.1} parent=51 // pred_region
          %380 = dma.done [#allocation14], 8192
        $region80: #{net_forward.1} parent=51 // pred_fallthru
          _
        // Predicated region
        $region81: #{net_forward.1} parent=51 // pred_check
          %p381 = pneg %p197
        $region82: #{net_forward.1} parent=51 // pred_check_branch
          %383 = sbr.rel (%p381) target = $region84
        $region83: #{net_forward.1} parent=51 // pred_region
          %384 = dma.done [#allocation14], 16
        $region84: #{net_forward.1} parent=51 // pred_fallthru
          _
        %385 = sfence
        %p386 = pneg %p45
        %p387 = pneg %p42
        %s388 = sand.u32 %s58, 1
        %s389 = scalar_lea.sflag [#allocation3], %s388
        %s390 = sand.u32 %s58, 1
        %s391 = smul.addr %s390, 8
        %s392 = scalar_lea.vmem [#allocation6], %s391
        %p393 = pneg %p71
        %p394 = pneg %p68
        %p395 = pneg %p92
        %p396 = pneg %p89
        %p397 = pneg %p113
        %p398 = pneg %p110
        %p399 = pneg %p134
        %p400 = pneg %p131
        %p401 = pneg %p155
        %p402 = pneg %p152
        %p403 = pneg %p176
        %p404 = pneg %p173
        %p405 = pneg %p197
        %p406 = pneg %p194
        %p407 = pneg %p223
        %p408 = pneg %p220
        %s409 = sand.u32 %s210, 1
        %s410 = scalar_lea.sflag [#allocation4], %s409
        %s411 = sand.u32 %s210, 1
        %s412 = smul.addr %s411, 8
        %s413 = scalar_lea.vmem [#allocation16], %s412
        %v415 = vld [vmem:[%s356] sm:$0xff]
        %v416 = vpack.c.bf16 %v415, %v415
        %v417 = vld [vmem:[#allocation7] sm:$0xff]
        %v418 = vld [vmem:[#allocation7 + $0x8] sm:$0xff]
        %v419 = vld [vmem:[#allocation7 + $0x10] sm:$0xff]
        %v420 = vld [vmem:[#allocation7 + $0x18] sm:$0xff]
        %v421 = vld [vmem:[#allocation7 + $0x20] sm:$0xff]
        %v422 = vld [vmem:[#allocation7 + $0x28] sm:$0xff]
        %v423 = vld [vmem:[#allocation7 + $0x30] sm:$0xff]
        %v424 = vld [vmem:[#allocation7 + $0x38] sm:$0xff]
        %v425 = vld [vmem:[#allocation7 + $0x40] sm:$0xff]
        %v426 = vld [vmem:[#allocation7 + $0x48] sm:$0xff]
        %v427 = vld [vmem:[#allocation7 + $0x50] sm:$0xff]
        %v428 = vld [vmem:[#allocation7 + $0x58] sm:$0xff]
        %v429 = vld [vmem:[#allocation7 + $0x60] sm:$0xff]
        %v430 = vld [vmem:[#allocation7 + $0x68] sm:$0xff]
        %v431 = vld [vmem:[#allocation7 + $0x70] sm:$0xff]
        %v432 = vld [vmem:[#allocation7 + $0x78] sm:$0xff]
        %v433 = vld [vmem:[#allocation7 + $0x80] sm:$0xff]
        %v434 = vld [vmem:[#allocation7 + $0x88] sm:$0xff]
        %v435 = vld [vmem:[#allocation7 + $0x90] sm:$0xff]
        %v436 = vld [vmem:[#allocation7 + $0x98] sm:$0xff]
        %v437 = vld [vmem:[#allocation7 + $0xa0] sm:$0xff]
        %v438 = vld [vmem:[#allocation7 + $0xa8] sm:$0xff]
        %v439 = vld [vmem:[#allocation7 + $0xb0] sm:$0xff]
        %v440 = vld [vmem:[#allocation7 + $0xb8] sm:$0xff]
        %v441 = vld [vmem:[#allocation7 + $0xc0] sm:$0xff]
        %v442 = vld [vmem:[#allocation7 + $0xc8] sm:$0xff]
        %v443 = vld [vmem:[#allocation7 + $0xd0] sm:$0xff]
        %v444 = vld [vmem:[#allocation7 + $0xd8] sm:$0xff]
        %v445 = vld [vmem:[#allocation7 + $0xe0] sm:$0xff]
        %v446 = vld [vmem:[#allocation7 + $0xe8] sm:$0xff]
        %v447 = vld [vmem:[#allocation7 + $0xf0] sm:$0xff]
        %v448 = vld [vmem:[#allocation7 + $0xf8] sm:$0xff]
        %v449 = vld [vmem:[#allocation7 + $0x100] sm:$0xff]
        %v450 = vld [vmem:[#allocation7 + $0x108] sm:$0xff]
        %v451 = vld [vmem:[#allocation7 + $0x110] sm:$0xff]
        %v452 = vld [vmem:[#allocation7 + $0x118] sm:$0xff]
        %v453 = vld [vmem:[#allocation7 + $0x120] sm:$0xff]
        %v454 = vld [vmem:[#allocation7 + $0x128] sm:$0xff]
        %v455 = vld [vmem:[#allocation7 + $0x130] sm:$0xff]
        %v456 = vld [vmem:[#allocation7 + $0x138] sm:$0xff]
        %v457 = vld [vmem:[#allocation7 + $0x140] sm:$0xff]
        %v458 = vld [vmem:[#allocation7 + $0x148] sm:$0xff]
        %v459 = vld [vmem:[#allocation7 + $0x150] sm:$0xff]
        %v460 = vld [vmem:[#allocation7 + $0x158] sm:$0xff]
        %v461 = vld [vmem:[#allocation7 + $0x160] sm:$0xff]
        %v462 = vld [vmem:[#allocation7 + $0x168] sm:$0xff]
        %v463 = vld [vmem:[#allocation7 + $0x170] sm:$0xff]
        %v464 = vld [vmem:[#allocation7 + $0x178] sm:$0xff]
        %v465 = vld [vmem:[#allocation7 + $0x180] sm:$0xff]
        %v466 = vld [vmem:[#allocation7 + $0x188] sm:$0xff]
        %v467 = vld [vmem:[#allocation7 + $0x190] sm:$0xff]
        %v468 = vld [vmem:[#allocation7 + $0x198] sm:$0xff]
        %v469 = vld [vmem:[#allocation7 + $0x1a0] sm:$0xff]
        %v470 = vld [vmem:[#allocation7 + $0x1a8] sm:$0xff]
        %v471 = vld [vmem:[#allocation7 + $0x1b0] sm:$0xff]
        %v472 = vld [vmem:[#allocation7 + $0x1b8] sm:$0xff]
        %v473 = vld [vmem:[#allocation7 + $0x1c0] sm:$0xff]
        %v474 = vld [vmem:[#allocation7 + $0x1c8] sm:$0xff]
        %v475 = vld [vmem:[#allocation7 + $0x1d0] sm:$0xff]
        %v476 = vld [vmem:[#allocation7 + $0x1d8] sm:$0xff]
        %v477 = vld [vmem:[#allocation7 + $0x1e0] sm:$0xff]
        %v478 = vld [vmem:[#allocation7 + $0x1e8] sm:$0xff]
        %v479 = vld [vmem:[#allocation7 + $0x1f0] sm:$0xff]
        %v480 = vld [vmem:[#allocation7 + $0x1f8] sm:$0xff]
        %v481 = vld [vmem:[#allocation9] sm:$0xff]
        %v483 = vlaneseq
        %v484 = vshrl.u32 %v483, 7
        %v485 = vsub.s32 0, %v484
        %v486 = vrot.slane %v481, %v485
        %v487 = vlaneseq
        %v488 = vshrl.u32 %v487, 7
        %v489 = vsub.s32 1, %v488
        %v490 = vrot.slane %v481, %v489
        %v491 = vlaneseq
        %v492 = vshrl.u32 %v491, 7
        %v493 = vsub.s32 2, %v492
        %v494 = vrot.slane %v481, %v493
        %v495 = vlaneseq
        %v496 = vshrl.u32 %v495, 7
        %v497 = vsub.s32 3, %v496
        %v498 = vrot.slane %v481, %v497
        %v499 = vlaneseq
        %v500 = vshrl.u32 %v499, 7
        %v501 = vsub.s32 4, %v500
        %v502 = vrot.slane %v481, %v501
        %v503 = vlaneseq
        %v504 = vshrl.u32 %v503, 7
        %v505 = vsub.s32 5, %v504
        %v506 = vrot.slane %v481, %v505
        %v507 = vlaneseq
        %v508 = vshrl.u32 %v507, 7
        %v509 = vsub.s32 6, %v508
        %v510 = vrot.slane %v481, %v509
        %v511 = vlaneseq
        %v512 = vshrl.u32 %v511, 7
        %v513 = vsub.s32 7, %v512
        %v514 = vrot.slane %v481, %v513
        %v587 = vunpack.c.l.b16 %v417
        %v588 = vunpack.c.h.b16 %v417
        %v589 = vunpack.c.l.b16 %v418
        %v590 = vunpack.c.h.b16 %v418
        %v591 = vunpack.c.l.b16 %v419
        %v592 = vunpack.c.h.b16 %v419
        %v593 = vunpack.c.l.b16 %v420
        %v594 = vunpack.c.h.b16 %v420
        %v595 = vunpack.c.l.b16 %v421
        %v596 = vunpack.c.h.b16 %v421
        %v597 = vunpack.c.l.b16 %v422
        %v598 = vunpack.c.h.b16 %v422
        %v599 = vunpack.c.l.b16 %v423
        %v600 = vunpack.c.h.b16 %v423
        %v601 = vunpack.c.l.b16 %v424
        %v602 = vunpack.c.h.b16 %v424
        %v603 = vunpack.c.l.b16 %v425
        %v604 = vunpack.c.h.b16 %v425
        %v605 = vunpack.c.l.b16 %v426
        %v606 = vunpack.c.h.b16 %v426
        %v607 = vunpack.c.l.b16 %v427
        %v608 = vunpack.c.h.b16 %v427
        %v609 = vunpack.c.l.b16 %v428
        %v610 = vunpack.c.h.b16 %v428
        %v611 = vunpack.c.l.b16 %v429
        %v612 = vunpack.c.h.b16 %v429
        %v613 = vunpack.c.l.b16 %v430
        %v614 = vunpack.c.h.b16 %v430
        %v615 = vunpack.c.l.b16 %v431
        %v616 = vunpack.c.h.b16 %v431
        %v617 = vunpack.c.l.b16 %v432
        %v618 = vunpack.c.h.b16 %v432
        %v619 = vunpack.c.l.b16 %v433
        %v620 = vunpack.c.h.b16 %v433
        %v621 = vunpack.c.l.b16 %v434
        %v622 = vunpack.c.h.b16 %v434
        %v623 = vunpack.c.l.b16 %v435
        %v624 = vunpack.c.h.b16 %v435
        %v625 = vunpack.c.l.b16 %v436
        %v626 = vunpack.c.h.b16 %v436
        %v627 = vunpack.c.l.b16 %v437
        %v628 = vunpack.c.h.b16 %v437
        %v629 = vunpack.c.l.b16 %v438
        %v630 = vunpack.c.h.b16 %v438
        %v631 = vunpack.c.l.b16 %v439
        %v632 = vunpack.c.h.b16 %v439
        %v633 = vunpack.c.l.b16 %v440
        %v634 = vunpack.c.h.b16 %v440
        %v635 = vunpack.c.l.b16 %v441
        %v636 = vunpack.c.h.b16 %v441
        %v637 = vunpack.c.l.b16 %v442
        %v638 = vunpack.c.h.b16 %v442
        %v639 = vunpack.c.l.b16 %v443
        %v640 = vunpack.c.h.b16 %v443
        %v641 = vunpack.c.l.b16 %v444
        %v642 = vunpack.c.h.b16 %v444
        %v643 = vunpack.c.l.b16 %v445
        %v644 = vunpack.c.h.b16 %v445
        %v645 = vunpack.c.l.b16 %v446
        %v646 = vunpack.c.h.b16 %v446
        %v647 = vunpack.c.l.b16 %v447
        %v648 = vunpack.c.h.b16 %v447
        %v649 = vunpack.c.l.b16 %v448
        %v650 = vunpack.c.h.b16 %v448
        %v651 = vunpack.c.l.b16 %v449
        %v652 = vunpack.c.h.b16 %v449
        %v653 = vunpack.c.l.b16 %v450
        %v654 = vunpack.c.h.b16 %v450
        %v655 = vunpack.c.l.b16 %v451
        %v656 = vunpack.c.h.b16 %v451
        %v657 = vunpack.c.l.b16 %v452
        %v658 = vunpack.c.h.b16 %v452
        %v659 = vunpack.c.l.b16 %v453
        %v660 = vunpack.c.h.b16 %v453
        %v661 = vunpack.c.l.b16 %v454
        %v662 = vunpack.c.h.b16 %v454
        %v663 = vunpack.c.l.b16 %v455
        %v664 = vunpack.c.h.b16 %v455
        %v665 = vunpack.c.l.b16 %v456
        %v666 = vunpack.c.h.b16 %v456
        %v667 = vunpack.c.l.b16 %v457
        %v668 = vunpack.c.h.b16 %v457
        %v669 = vunpack.c.l.b16 %v458
        %v670 = vunpack.c.h.b16 %v458
        %v671 = vunpack.c.l.b16 %v459
        %v672 = vunpack.c.h.b16 %v459
        %v673 = vunpack.c.l.b16 %v460
        %v674 = vunpack.c.h.b16 %v460
        %v675 = vunpack.c.l.b16 %v461
        %v676 = vunpack.c.h.b16 %v461
        %v677 = vunpack.c.l.b16 %v462
        %v678 = vunpack.c.h.b16 %v462
        %v679 = vunpack.c.l.b16 %v463
        %v680 = vunpack.c.h.b16 %v463
        %v681 = vunpack.c.l.b16 %v464
        %v682 = vunpack.c.h.b16 %v464
        %v683 = vunpack.c.l.b16 %v465
        %v684 = vunpack.c.h.b16 %v465
        %v685 = vunpack.c.l.b16 %v466
        %v686 = vunpack.c.h.b16 %v466
        %v687 = vunpack.c.l.b16 %v467
        %v688 = vunpack.c.h.b16 %v467
        %v689 = vunpack.c.l.b16 %v468
        %v690 = vunpack.c.h.b16 %v468
        %v691 = vunpack.c.l.b16 %v469
        %v692 = vunpack.c.h.b16 %v469
        %v693 = vunpack.c.l.b16 %v470
        %v694 = vunpack.c.h.b16 %v470
        %v695 = vunpack.c.l.b16 %v471
        %v696 = vunpack.c.h.b16 %v471
        %v697 = vunpack.c.l.b16 %v472
        %v698 = vunpack.c.h.b16 %v472
        %v699 = vunpack.c.l.b16 %v473
        %v700 = vunpack.c.h.b16 %v473
        %v701 = vunpack.c.l.b16 %v474
        %v702 = vunpack.c.h.b16 %v474
        %v703 = vunpack.c.l.b16 %v475
        %v704 = vunpack.c.h.b16 %v475
        %v705 = vunpack.c.l.b16 %v476
        %v706 = vunpack.c.h.b16 %v476
        %v707 = vunpack.c.l.b16 %v477
        %v708 = vunpack.c.h.b16 %v477
        %v709 = vunpack.c.l.b16 %v478
        %v710 = vunpack.c.h.b16 %v478
        %v711 = vunpack.c.l.b16 %v479
        %v712 = vunpack.c.h.b16 %v479
        %v713 = vunpack.c.l.b16 %v480
        %v714 = vunpack.c.h.b16 %v480
        %v715 = vpack.c.b16 %v595, %v587
        %v716 = vpack.c.b16 %v596, %v588
        %v717 = vpack.c.b16 %v597, %v589
        %v718 = vpack.c.b16 %v598, %v590
        %v719 = vpack.c.b16 %v599, %v591
        %v720 = vpack.c.b16 %v600, %v592
        %v721 = vpack.c.b16 %v601, %v593
        %v722 = vpack.c.b16 %v602, %v594
        %v723 = vpack.c.b16 %v611, %v603
        %v724 = vpack.c.b16 %v612, %v604
        %v725 = vpack.c.b16 %v613, %v605
        %v726 = vpack.c.b16 %v614, %v606
        %v727 = vpack.c.b16 %v615, %v607
        %v728 = vpack.c.b16 %v616, %v608
        %v729 = vpack.c.b16 %v617, %v609
        %v730 = vpack.c.b16 %v618, %v610
        %v731 = vpack.c.b16 %v627, %v619
        %v732 = vpack.c.b16 %v628, %v620
        %v733 = vpack.c.b16 %v629, %v621
        %v734 = vpack.c.b16 %v630, %v622
        %v735 = vpack.c.b16 %v631, %v623
        %v736 = vpack.c.b16 %v632, %v624
        %v737 = vpack.c.b16 %v633, %v625
        %v738 = vpack.c.b16 %v634, %v626
        %v739 = vpack.c.b16 %v643, %v635
        %v740 = vpack.c.b16 %v644, %v636
        %v741 = vpack.c.b16 %v645, %v637
        %v742 = vpack.c.b16 %v646, %v638
        %v743 = vpack.c.b16 %v647, %v639
        %v744 = vpack.c.b16 %v648, %v640
        %v745 = vpack.c.b16 %v649, %v641
        %v746 = vpack.c.b16 %v650, %v642
        %v747 = vpack.c.b16 %v659, %v651
        %v748 = vpack.c.b16 %v660, %v652
        %v749 = vpack.c.b16 %v661, %v653
        %v750 = vpack.c.b16 %v662, %v654
        %v751 = vpack.c.b16 %v663, %v655
        %v752 = vpack.c.b16 %v664, %v656
        %v753 = vpack.c.b16 %v665, %v657
        %v754 = vpack.c.b16 %v666, %v658
        %v755 = vpack.c.b16 %v675, %v667
        %v756 = vpack.c.b16 %v676, %v668
        %v757 = vpack.c.b16 %v677, %v669
        %v758 = vpack.c.b16 %v678, %v670
        %v759 = vpack.c.b16 %v679, %v671
        %v760 = vpack.c.b16 %v680, %v672
        %v761 = vpack.c.b16 %v681, %v673
        %v762 = vpack.c.b16 %v682, %v674
        %v763 = vpack.c.b16 %v691, %v683
        %v764 = vpack.c.b16 %v692, %v684
        %v765 = vpack.c.b16 %v693, %v685
        %v766 = vpack.c.b16 %v694, %v686
        %v767 = vpack.c.b16 %v695, %v687
        %v768 = vpack.c.b16 %v696, %v688
        %v769 = vpack.c.b16 %v697, %v689
        %v770 = vpack.c.b16 %v698, %v690
        %v771 = vpack.c.b16 %v707, %v699
        %v772 = vpack.c.b16 %v708, %v700
        %v773 = vpack.c.b16 %v709, %v701
        %v774 = vpack.c.b16 %v710, %v702
        %v775 = vpack.c.b16 %v711, %v703
        %v776 = vpack.c.b16 %v712, %v704
        %v777 = vpack.c.b16 %v713, %v705
        %v778 = vpack.c.b16 %v714, %v706
        %843 = vmatprep.subr.bf16.mxu0 %v716
        %844 = vmatpush1.bf16.msra.mxu0 %v715
        %845 = vmatprep.subr.bf16.mxu0 %v724
        %846 = vmatpush1.bf16.msra.mxu0 %v723
        %847 = vmatprep.subr.bf16.mxu0 %v732
        %848 = vmatpush1.bf16.msra.mxu0 %v731
        %849 = vmatprep.subr.bf16.mxu0 %v740
        %850 = vmatpush1.bf16.msra.mxu0 %v739
        %851 = vmatprep.subr.bf16.mxu0 %v748
        %852 = vmatpush1.bf16.msra.mxu0 %v747
        %853 = vmatprep.subr.bf16.mxu0 %v756
        %854 = vmatpush1.bf16.msra.mxu0 %v755
        %855 = vmatprep.subr.bf16.mxu0 %v764
        %856 = vmatpush1.bf16.msra.mxu0 %v763
        %857 = vmatprep.subr.bf16.mxu0 %v772
        %858 = vmatpush1.bf16.msra.mxu0 %v771
        %859 = vmatprep.subr.bf16.mxu0 0
        %860 = vmatpush1.bf16.msra.mxu0 0
        %861 = vmatprep.subr.bf16.mxu0 0
        %862 = vmatpush1.bf16.msra.mxu0 0
        %863 = vmatprep.subr.bf16.mxu0 0
        %864 = vmatpush1.bf16.msra.mxu0 0
        %865 = vmatprep.subr.bf16.mxu0 0
        %866 = vmatpush1.bf16.msra.mxu0 0
        %867 = vmatprep.subr.bf16.mxu0 0
        %868 = vmatpush1.bf16.msra.mxu0 0
        %869 = vmatprep.subr.bf16.mxu0 0
        %870 = vmatpush1.bf16.msra.mxu0 0
        %871 = vmatprep.subr.bf16.mxu0 0
        %872 = vmatpush1.bf16.msra.mxu0 0
        %873 = vmatprep.subr.bf16.mxu0 0
        %874 = vmatpush1.bf16.msra.mxu0 0
        %875 = vmatprep.mubr.bf16.mxu0 0
        %876 = vmatmul.mubr.bf16.gmra.mrb[0].mxu0 %v416
        %v877 = vpop.f32.mrb[0].mxu0
        %v878 = vadd.f32 %v486, %v877
        %v879 = vpop.f32.mrb[0].mxu0
        %v880 = vadd.f32 %v490, %v879
        %v881 = vpop.f32.mrb[0].mxu0
        %v882 = vpop.f32.mrb[0].mxu0
        %883 = vdwg.mxu0
        %884 = vmatprep.subr.bf16.mxu0 %v718
        %885 = vmatpush1.bf16.msra.mxu0 %v717
        %886 = vmatprep.subr.bf16.mxu0 %v726
        %887 = vmatpush1.bf16.msra.mxu0 %v725
        %888 = vmatprep.subr.bf16.mxu0 %v734
        %889 = vmatpush1.bf16.msra.mxu0 %v733
        %890 = vmatprep.subr.bf16.mxu0 %v742
        %891 = vmatpush1.bf16.msra.mxu0 %v741
        %892 = vmatprep.subr.bf16.mxu0 %v750
        %893 = vmatpush1.bf16.msra.mxu0 %v749
        %894 = vmatprep.subr.bf16.mxu0 %v758
        %895 = vmatpush1.bf16.msra.mxu0 %v757
        %896 = vmatprep.subr.bf16.mxu0 %v766
        %897 = vmatpush1.bf16.msra.mxu0 %v765
        %898 = vmatprep.subr.bf16.mxu0 %v774
        %899 = vmatpush1.bf16.msra.mxu0 %v773
        %900 = vmatprep.subr.bf16.mxu0 0
        %901 = vmatpush1.bf16.msra.mxu0 0
        %902 = vmatprep.subr.bf16.mxu0 0
        %903 = vmatpush1.bf16.msra.mxu0 0
        %904 = vmatprep.subr.bf16.mxu0 0
        %905 = vmatpush1.bf16.msra.mxu0 0
        %906 = vmatprep.subr.bf16.mxu0 0
        %907 = vmatpush1.bf16.msra.mxu0 0
        %908 = vmatprep.subr.bf16.mxu0 0
        %909 = vmatpush1.bf16.msra.mxu0 0
        %910 = vmatprep.subr.bf16.mxu0 0
        %911 = vmatpush1.bf16.msra.mxu0 0
        %912 = vmatprep.subr.bf16.mxu0 0
        %913 = vmatpush1.bf16.msra.mxu0 0
        %914 = vmatprep.subr.bf16.mxu0 0
        %915 = vmatpush1.bf16.msra.mxu0 0
        %916 = vmatprep.mubr.bf16.mxu0 0
        %917 = vmatmul.mubr.bf16.gmra.mrb[0].mxu0 %v416
        %v918 = vpop.f32.mrb[0].mxu0
        %v919 = vadd.f32 %v494, %v918
        %v920 = vpop.f32.mrb[0].mxu0
        %v921 = vadd.f32 %v498, %v920
        %v922 = vpop.f32.mrb[0].mxu0
        %v923 = vpop.f32.mrb[0].mxu0
        %924 = vdwg.mxu0
        %925 = vmatprep.subr.bf16.mxu0 %v720
        %926 = vmatpush1.bf16.msra.mxu0 %v719
        %927 = vmatprep.subr.bf16.mxu0 %v728
        %928 = vmatpush1.bf16.msra.mxu0 %v727
        %929 = vmatprep.subr.bf16.mxu0 %v736
        %930 = vmatpush1.bf16.msra.mxu0 %v735
        %931 = vmatprep.subr.bf16.mxu0 %v744
        %932 = vmatpush1.bf16.msra.mxu0 %v743
        %933 = vmatprep.subr.bf16.mxu0 %v752
        %934 = vmatpush1.bf16.msra.mxu0 %v751
        %935 = vmatprep.subr.bf16.mxu0 %v760
        %936 = vmatpush1.bf16.msra.mxu0 %v759
        %937 = vmatprep.subr.bf16.mxu0 %v768
        %938 = vmatpush1.bf16.msra.mxu0 %v767
        %939 = vmatprep.subr.bf16.mxu0 %v776
        %940 = vmatpush1.bf16.msra.mxu0 %v775
        %941 = vmatprep.subr.bf16.mxu0 0
        %942 = vmatpush1.bf16.msra.mxu0 0
        %943 = vmatprep.subr.bf16.mxu0 0
        %944 = vmatpush1.bf16.msra.mxu0 0
        %945 = vmatprep.subr.bf16.mxu0 0
        %946 = vmatpush1.bf16.msra.mxu0 0
        %947 = vmatprep.subr.bf16.mxu0 0
        %948 = vmatpush1.bf16.msra.mxu0 0
        %949 = vmatprep.subr.bf16.mxu0 0
        %950 = vmatpush1.bf16.msra.mxu0 0
        %951 = vmatprep.subr.bf16.mxu0 0
        %952 = vmatpush1.bf16.msra.mxu0 0
        %953 = vmatprep.subr.bf16.mxu0 0
        %954 = vmatpush1.bf16.msra.mxu0 0
        %955 = vmatprep.subr.bf16.mxu0 0
        %956 = vmatpush1.bf16.msra.mxu0 0
        %957 = vmatprep.mubr.bf16.mxu0 0
        %958 = vmatmul.mubr.bf16.gmra.mrb[0].mxu0 %v416
        %v959 = vpop.f32.mrb[0].mxu0
        %v960 = vadd.f32 %v502, %v959
        %v961 = vpop.f32.mrb[0].mxu0
        %v962 = vadd.f32 %v506, %v961
        %v963 = vpop.f32.mrb[0].mxu0
        %v964 = vpop.f32.mrb[0].mxu0
        %965 = vdwg.mxu0
        %966 = vmatprep.subr.bf16.mxu0 %v722
        %967 = vmatpush1.bf16.msra.mxu0 %v721
        %968 = vmatprep.subr.bf16.mxu0 %v730
        %969 = vmatpush1.bf16.msra.mxu0 %v729
        %970 = vmatprep.subr.bf16.mxu0 %v738
        %971 = vmatpush1.bf16.msra.mxu0 %v737
        %972 = vmatprep.subr.bf16.mxu0 %v746
        %973 = vmatpush1.bf16.msra.mxu0 %v745
        %974 = vmatprep.subr.bf16.mxu0 %v754
        %975 = vmatpush1.bf16.msra.mxu0 %v753
        %976 = vmatprep.subr.bf16.mxu0 %v762
        %977 = vmatpush1.bf16.msra.mxu0 %v761
        %978 = vmatprep.subr.bf16.mxu0 %v770
        %979 = vmatpush1.bf16.msra.mxu0 %v769
        %980 = vmatprep.subr.bf16.mxu0 %v778
        %981 = vmatpush1.bf16.msra.mxu0 %v777
        %982 = vmatprep.subr.bf16.mxu0 0
        %983 = vmatpush1.bf16.msra.mxu0 0
        %984 = vmatprep.subr.bf16.mxu0 0
        %985 = vmatpush1.bf16.msra.mxu0 0
        %986 = vmatprep.subr.bf16.mxu0 0
        %987 = vmatpush1.bf16.msra.mxu0 0
        %988 = vmatprep.subr.bf16.mxu0 0
        %989 = vmatpush1.bf16.msra.mxu0 0
        %990 = vmatprep.subr.bf16.mxu0 0
        %991 = vmatpush1.bf16.msra.mxu0 0
        %992 = vmatprep.subr.bf16.mxu0 0
        %993 = vmatpush1.bf16.msra.mxu0 0
        %994 = vmatprep.subr.bf16.mxu0 0
        %995 = vmatpush1.bf16.msra.mxu0 0
        %996 = vmatprep.subr.bf16.mxu0 0
        %997 = vmatpush1.bf16.msra.mxu0 0
        %998 = vmatprep.mubr.bf16.mxu0 0
        %999 = vmatmul.mubr.bf16.gmra.mrb[0].mxu0 %v416
        %v1000 = vpop.f32.mrb[0].mxu0
        %v1001 = vadd.f32 %v510, %v1000
        %v1002 = vpop.f32.mrb[0].mxu0
        %v1003 = vadd.f32 %v514, %v1002
        %v1004 = vpop.f32.mrb[0].mxu0
        %v1005 = vpop.f32.mrb[0].mxu0
        %1006 = vdwg.mxu0
        %v1007 = vmax.f32 %v878, 0.0
        %v1008 = vmax.f32 %v880, 0.0
        %v1009 = vmax.f32 %v919, 0.0
        %v1010 = vmax.f32 %v921, 0.0
        %v1011 = vmax.f32 %v960, 0.0
        %v1012 = vmax.f32 %v962, 0.0
        %v1013 = vmax.f32 %v1001, 0.0
        %v1014 = vmax.f32 %v1003, 0.0
        %v1015 = vpack.c.bf16 %v1007, %v1007
        %v1016 = vpack.c.bf16 %v1008, %v1008
        %v1017 = vpack.c.bf16 %v1009, %v1009
        %v1018 = vpack.c.bf16 %v1010, %v1010
        %v1019 = vpack.c.bf16 %v1011, %v1011
        %v1020 = vpack.c.bf16 %v1012, %v1012
        %v1021 = vpack.c.bf16 %v1013, %v1013
        %v1022 = vpack.c.bf16 %v1014, %v1014
        %v1023 = vld [vmem:[#allocation10] sm:$0xff]
        %v1024 = vld [vmem:[#allocation10 + $0x8] sm:$0xff]
        %v1025 = vld [vmem:[#allocation10 + $0x10] sm:$0xff]
        %v1026 = vld [vmem:[#allocation10 + $0x18] sm:$0xff]
        %v1027 = vld [vmem:[#allocation10 + $0x20] sm:$0xff]
        %v1028 = vld [vmem:[#allocation10 + $0x28] sm:$0xff]
        %v1029 = vld [vmem:[#allocation10 + $0x30] sm:$0xff]
        %v1030 = vld [vmem:[#allocation10 + $0x38] sm:$0xff]
        %v1031 = vld [vmem:[#allocation10 + $0x40] sm:$0xff]
        %v1032 = vld [vmem:[#allocation10 + $0x48] sm:$0xff]
        %v1033 = vld [vmem:[#allocation10 + $0x50] sm:$0xff]
        %v1034 = vld [vmem:[#allocation10 + $0x58] sm:$0xff]
        %v1035 = vld [vmem:[#allocation10 + $0x60] sm:$0xff]
        %v1036 = vld [vmem:[#allocation10 + $0x68] sm:$0xff]
        %v1037 = vld [vmem:[#allocation10 + $0x70] sm:$0xff]
        %v1038 = vld [vmem:[#allocation10 + $0x78] sm:$0xff]
        %v1039 = vld [vmem:[#allocation10 + $0x80] sm:$0xff]
        %v1040 = vld [vmem:[#allocation10 + $0x88] sm:$0xff]
        %v1041 = vld [vmem:[#allocation10 + $0x90] sm:$0xff]
        %v1042 = vld [vmem:[#allocation10 + $0x98] sm:$0xff]
        %v1043 = vld [vmem:[#allocation10 + $0xa0] sm:$0xff]
        %v1044 = vld [vmem:[#allocation10 + $0xa8] sm:$0xff]
        %v1045 = vld [vmem:[#allocation10 + $0xb0] sm:$0xff]
        %v1046 = vld [vmem:[#allocation10 + $0xb8] sm:$0xff]
        %v1047 = vld [vmem:[#allocation10 + $0xc0] sm:$0xff]
        %v1048 = vld [vmem:[#allocation10 + $0xc8] sm:$0xff]
        %v1049 = vld [vmem:[#allocation10 + $0xd0] sm:$0xff]
        %v1050 = vld [vmem:[#allocation10 + $0xd8] sm:$0xff]
        %v1051 = vld [vmem:[#allocation10 + $0xe0] sm:$0xff]
        %v1052 = vld [vmem:[#allocation10 + $0xe8] sm:$0xff]
        %v1053 = vld [vmem:[#allocation10 + $0xf0] sm:$0xff]
        %v1054 = vld [vmem:[#allocation10 + $0xf8] sm:$0xff]
        %v1055 = vld [vmem:[#allocation10 + $0x100] sm:$0xff]
        %v1056 = vld [vmem:[#allocation10 + $0x108] sm:$0xff]
        %v1057 = vld [vmem:[#allocation10 + $0x110] sm:$0xff]
        %v1058 = vld [vmem:[#allocation10 + $0x118] sm:$0xff]
        %v1059 = vld [vmem:[#allocation10 + $0x120] sm:$0xff]
        %v1060 = vld [vmem:[#allocation10 + $0x128] sm:$0xff]
        %v1061 = vld [vmem:[#allocation10 + $0x130] sm:$0xff]
        %v1062 = vld [vmem:[#allocation10 + $0x138] sm:$0xff]
        %v1063 = vld [vmem:[#allocation10 + $0x140] sm:$0xff]
        %v1064 = vld [vmem:[#allocation10 + $0x148] sm:$0xff]
        %v1065 = vld [vmem:[#allocation10 + $0x150] sm:$0xff]
        %v1066 = vld [vmem:[#allocation10 + $0x158] sm:$0xff]
        %v1067 = vld [vmem:[#allocation10 + $0x160] sm:$0xff]
        %v1068 = vld [vmem:[#allocation10 + $0x168] sm:$0xff]
        %v1069 = vld [vmem:[#allocation10 + $0x170] sm:$0xff]
        %v1070 = vld [vmem:[#allocation10 + $0x178] sm:$0xff]
        %v1071 = vld [vmem:[#allocation10 + $0x180] sm:$0xff]
        %v1072 = vld [vmem:[#allocation10 + $0x188] sm:$0xff]
        %v1073 = vld [vmem:[#allocation10 + $0x190] sm:$0xff]
        %v1074 = vld [vmem:[#allocation10 + $0x198] sm:$0xff]
        %v1075 = vld [vmem:[#allocation10 + $0x1a0] sm:$0xff]
        %v1076 = vld [vmem:[#allocation10 + $0x1a8] sm:$0xff]
        %v1077 = vld [vmem:[#allocation10 + $0x1b0] sm:$0xff]
        %v1078 = vld [vmem:[#allocation10 + $0x1b8] sm:$0xff]
        %v1079 = vld [vmem:[#allocation10 + $0x1c0] sm:$0xff]
        %v1080 = vld [vmem:[#allocation10 + $0x1c8] sm:$0xff]
        %v1081 = vld [vmem:[#allocation10 + $0x1d0] sm:$0xff]
        %v1082 = vld [vmem:[#allocation10 + $0x1d8] sm:$0xff]
        %v1083 = vld [vmem:[#allocation10 + $0x1e0] sm:$0xff]
        %v1084 = vld [vmem:[#allocation10 + $0x1e8] sm:$0xff]
        %v1085 = vld [vmem:[#allocation10 + $0x1f0] sm:$0xff]
        %v1086 = vld [vmem:[#allocation10 + $0x1f8] sm:$0xff]
        %v1087 = vld [vmem:[#allocation10 + $0x200] sm:$0xff]
        %v1088 = vld [vmem:[#allocation10 + $0x208] sm:$0xff]
        %v1089 = vld [vmem:[#allocation10 + $0x210] sm:$0xff]
        %v1090 = vld [vmem:[#allocation10 + $0x218] sm:$0xff]
        %v1091 = vld [vmem:[#allocation10 + $0x220] sm:$0xff]
        %v1092 = vld [vmem:[#allocation10 + $0x228] sm:$0xff]
        %v1093 = vld [vmem:[#allocation10 + $0x230] sm:$0xff]
        %v1094 = vld [vmem:[#allocation10 + $0x238] sm:$0xff]
        %v1095 = vld [vmem:[#allocation10 + $0x240] sm:$0xff]
        %v1096 = vld [vmem:[#allocation10 + $0x248] sm:$0xff]
        %v1097 = vld [vmem:[#allocation10 + $0x250] sm:$0xff]
        %v1098 = vld [vmem:[#allocation10 + $0x258] sm:$0xff]
        %v1099 = vld [vmem:[#allocation10 + $0x260] sm:$0xff]
        %v1100 = vld [vmem:[#allocation10 + $0x268] sm:$0xff]
        %v1101 = vld [vmem:[#allocation10 + $0x270] sm:$0xff]
        %v1102 = vld [vmem:[#allocation10 + $0x278] sm:$0xff]
        %v1103 = vld [vmem:[#allocation10 + $0x280] sm:$0xff]
        %v1104 = vld [vmem:[#allocation10 + $0x288] sm:$0xff]
        %v1105 = vld [vmem:[#allocation10 + $0x290] sm:$0xff]
        %v1106 = vld [vmem:[#allocation10 + $0x298] sm:$0xff]
        %v1107 = vld [vmem:[#allocation10 + $0x2a0] sm:$0xff]
        %v1108 = vld [vmem:[#allocation10 + $0x2a8] sm:$0xff]
        %v1109 = vld [vmem:[#allocation10 + $0x2b0] sm:$0xff]
        %v1110 = vld [vmem:[#allocation10 + $0x2b8] sm:$0xff]
        %v1111 = vld [vmem:[#allocation10 + $0x2c0] sm:$0xff]
        %v1112 = vld [vmem:[#allocation10 + $0x2c8] sm:$0xff]
        %v1113 = vld [vmem:[#allocation10 + $0x2d0] sm:$0xff]
        %v1114 = vld [vmem:[#allocation10 + $0x2d8] sm:$0xff]
        %v1115 = vld [vmem:[#allocation10 + $0x2e0] sm:$0xff]
        %v1116 = vld [vmem:[#allocation10 + $0x2e8] sm:$0xff]
        %v1117 = vld [vmem:[#allocation10 + $0x2f0] sm:$0xff]
        %v1118 = vld [vmem:[#allocation10 + $0x2f8] sm:$0xff]
        %v1119 = vld [vmem:[#allocation10 + $0x300] sm:$0xff]
        %v1120 = vld [vmem:[#allocation10 + $0x308] sm:$0xff]
        %v1121 = vld [vmem:[#allocation10 + $0x310] sm:$0xff]
        %v1122 = vld [vmem:[#allocation10 + $0x318] sm:$0xff]
        %v1123 = vld [vmem:[#allocation10 + $0x320] sm:$0xff]
        %v1124 = vld [vmem:[#allocation10 + $0x328] sm:$0xff]
        %v1125 = vld [vmem:[#allocation10 + $0x330] sm:$0xff]
        %v1126 = vld [vmem:[#allocation10 + $0x338] sm:$0xff]
        %v1127 = vld [vmem:[#allocation10 + $0x340] sm:$0xff]
        %v1128 = vld [vmem:[#allocation10 + $0x348] sm:$0xff]
        %v1129 = vld [vmem:[#allocation10 + $0x350] sm:$0xff]
        %v1130 = vld [vmem:[#allocation10 + $0x358] sm:$0xff]
        %v1131 = vld [vmem:[#allocation10 + $0x360] sm:$0xff]
        %v1132 = vld [vmem:[#allocation10 + $0x368] sm:$0xff]
        %v1133 = vld [vmem:[#allocation10 + $0x370] sm:$0xff]
        %v1134 = vld [vmem:[#allocation10 + $0x378] sm:$0xff]
        %v1135 = vld [vmem:[#allocation10 + $0x380] sm:$0xff]
        %v1136 = vld [vmem:[#allocation10 + $0x388] sm:$0xff]
        %v1137 = vld [vmem:[#allocation10 + $0x390] sm:$0xff]
        %v1138 = vld [vmem:[#allocation10 + $0x398] sm:$0xff]
        %v1139 = vld [vmem:[#allocation10 + $0x3a0] sm:$0xff]
        %v1140 = vld [vmem:[#allocation10 + $0x3a8] sm:$0xff]
        %v1141 = vld [vmem:[#allocation10 + $0x3b0] sm:$0xff]
        %v1142 = vld [vmem:[#allocation10 + $0x3b8] sm:$0xff]
        %v1143 = vld [vmem:[#allocation10 + $0x3c0] sm:$0xff]
        %v1144 = vld [vmem:[#allocation10 + $0x3c8] sm:$0xff]
        %v1145 = vld [vmem:[#allocation10 + $0x3d0] sm:$0xff]
        %v1146 = vld [vmem:[#allocation10 + $0x3d8] sm:$0xff]
        %v1147 = vld [vmem:[#allocation10 + $0x3e0] sm:$0xff]
        %v1148 = vld [vmem:[#allocation10 + $0x3e8] sm:$0xff]
        %v1149 = vld [vmem:[#allocation10 + $0x3f0] sm:$0xff]
        %v1150 = vld [vmem:[#allocation10 + $0x3f8] sm:$0xff]
        %v1151 = vld [vmem:[#allocation10 + $0x400] sm:$0xff]
        %v1152 = vld [vmem:[#allocation10 + $0x408] sm:$0xff]
        %v1153 = vld [vmem:[#allocation10 + $0x410] sm:$0xff]
        %v1154 = vld [vmem:[#allocation10 + $0x418] sm:$0xff]
        %v1155 = vld [vmem:[#allocation10 + $0x420] sm:$0xff]
        %v1156 = vld [vmem:[#allocation10 + $0x428] sm:$0xff]
        %v1157 = vld [vmem:[#allocation10 + $0x430] sm:$0xff]
        %v1158 = vld [vmem:[#allocation10 + $0x438] sm:$0xff]
        %v1159 = vld [vmem:[#allocation10 + $0x440] sm:$0xff]
        %v1160 = vld [vmem:[#allocation10 + $0x448] sm:$0xff]
        %v1161 = vld [vmem:[#allocation10 + $0x450] sm:$0xff]
        %v1162 = vld [vmem:[#allocation10 + $0x458] sm:$0xff]
        %v1163 = vld [vmem:[#allocation10 + $0x460] sm:$0xff]
        %v1164 = vld [vmem:[#allocation10 + $0x468] sm:$0xff]
        %v1165 = vld [vmem:[#allocation10 + $0x470] sm:$0xff]
        %v1166 = vld [vmem:[#allocation10 + $0x478] sm:$0xff]
        %v1167 = vld [vmem:[#allocation10 + $0x480] sm:$0xff]
        %v1168 = vld [vmem:[#allocation10 + $0x488] sm:$0xff]
        %v1169 = vld [vmem:[#allocation10 + $0x490] sm:$0xff]
        %v1170 = vld [vmem:[#allocation10 + $0x498] sm:$0xff]
        %v1171 = vld [vmem:[#allocation10 + $0x4a0] sm:$0xff]
        %v1172 = vld [vmem:[#allocation10 + $0x4a8] sm:$0xff]
        %v1173 = vld [vmem:[#allocation10 + $0x4b0] sm:$0xff]
        %v1174 = vld [vmem:[#allocation10 + $0x4b8] sm:$0xff]
        %v1175 = vld [vmem:[#allocation10 + $0x4c0] sm:$0xff]
        %v1176 = vld [vmem:[#allocation10 + $0x4c8] sm:$0xff]
        %v1177 = vld [vmem:[#allocation10 + $0x4d0] sm:$0xff]
        %v1178 = vld [vmem:[#allocation10 + $0x4d8] sm:$0xff]
        %v1179 = vld [vmem:[#allocation10 + $0x4e0] sm:$0xff]
        %v1180 = vld [vmem:[#allocation10 + $0x4e8] sm:$0xff]
        %v1181 = vld [vmem:[#allocation10 + $0x4f0] sm:$0xff]
        %v1182 = vld [vmem:[#allocation10 + $0x4f8] sm:$0xff]
        %v1183 = vld [vmem:[#allocation10 + $0x500] sm:$0xff]
        %v1184 = vld [vmem:[#allocation10 + $0x508] sm:$0xff]
        %v1185 = vld [vmem:[#allocation10 + $0x510] sm:$0xff]
        %v1186 = vld [vmem:[#allocation10 + $0x518] sm:$0xff]
        %v1187 = vld [vmem:[#allocation10 + $0x520] sm:$0xff]
        %v1188 = vld [vmem:[#allocation10 + $0x528] sm:$0xff]
        %v1189 = vld [vmem:[#allocation10 + $0x530] sm:$0xff]
        %v1190 = vld [vmem:[#allocation10 + $0x538] sm:$0xff]
        %v1191 = vld [vmem:[#allocation10 + $0x540] sm:$0xff]
        %v1192 = vld [vmem:[#allocation10 + $0x548] sm:$0xff]
        %v1193 = vld [vmem:[#allocation10 + $0x550] sm:$0xff]
        %v1194 = vld [vmem:[#allocation10 + $0x558] sm:$0xff]
        %v1195 = vld [vmem:[#allocation10 + $0x560] sm:$0xff]
        %v1196 = vld [vmem:[#allocation10 + $0x568] sm:$0xff]
        %v1197 = vld [vmem:[#allocation10 + $0x570] sm:$0xff]
        %v1198 = vld [vmem:[#allocation10 + $0x578] sm:$0xff]
        %v1199 = vld [vmem:[#allocation10 + $0x580] sm:$0xff]
        %v1200 = vld [vmem:[#allocation10 + $0x588] sm:$0xff]
        %v1201 = vld [vmem:[#allocation10 + $0x590] sm:$0xff]
        %v1202 = vld [vmem:[#allocation10 + $0x598] sm:$0xff]
        %v1203 = vld [vmem:[#allocation10 + $0x5a0] sm:$0xff]
        %v1204 = vld [vmem:[#allocation10 + $0x5a8] sm:$0xff]
        %v1205 = vld [vmem:[#allocation10 + $0x5b0] sm:$0xff]
        %v1206 = vld [vmem:[#allocation10 + $0x5b8] sm:$0xff]
        %v1207 = vld [vmem:[#allocation10 + $0x5c0] sm:$0xff]
        %v1208 = vld [vmem:[#allocation10 + $0x5c8] sm:$0xff]
        %v1209 = vld [vmem:[#allocation10 + $0x5d0] sm:$0xff]
        %v1210 = vld [vmem:[#allocation10 + $0x5d8] sm:$0xff]
        %v1211 = vld [vmem:[#allocation10 + $0x5e0] sm:$0xff]
        %v1212 = vld [vmem:[#allocation10 + $0x5e8] sm:$0xff]
        %v1213 = vld [vmem:[#allocation10 + $0x5f0] sm:$0xff]
        %v1214 = vld [vmem:[#allocation10 + $0x5f8] sm:$0xff]
        %v1215 = vld [vmem:[#allocation10 + $0x600] sm:$0xff]
        %v1216 = vld [vmem:[#allocation10 + $0x608] sm:$0xff]
        %v1217 = vld [vmem:[#allocation10 + $0x610] sm:$0xff]
        %v1218 = vld [vmem:[#allocation10 + $0x618] sm:$0xff]
        %v1219 = vld [vmem:[#allocation10 + $0x620] sm:$0xff]
        %v1220 = vld [vmem:[#allocation10 + $0x628] sm:$0xff]
        %v1221 = vld [vmem:[#allocation10 + $0x630] sm:$0xff]
        %v1222 = vld [vmem:[#allocation10 + $0x638] sm:$0xff]
        %v1223 = vld [vmem:[#allocation10 + $0x640] sm:$0xff]
        %v1224 = vld [vmem:[#allocation10 + $0x648] sm:$0xff]
        %v1225 = vld [vmem:[#allocation10 + $0x650] sm:$0xff]
        %v1226 = vld [vmem:[#allocation10 + $0x658] sm:$0xff]
        %v1227 = vld [vmem:[#allocation10 + $0x660] sm:$0xff]
        %v1228 = vld [vmem:[#allocation10 + $0x668] sm:$0xff]
        %v1229 = vld [vmem:[#allocation10 + $0x670] sm:$0xff]
        %v1230 = vld [vmem:[#allocation10 + $0x678] sm:$0xff]
        %v1231 = vld [vmem:[#allocation10 + $0x680] sm:$0xff]
        %v1232 = vld [vmem:[#allocation10 + $0x688] sm:$0xff]
        %v1233 = vld [vmem:[#allocation10 + $0x690] sm:$0xff]
        %v1234 = vld [vmem:[#allocation10 + $0x698] sm:$0xff]
        %v1235 = vld [vmem:[#allocation10 + $0x6a0] sm:$0xff]
        %v1236 = vld [vmem:[#allocation10 + $0x6a8] sm:$0xff]
        %v1237 = vld [vmem:[#allocation10 + $0x6b0] sm:$0xff]
        %v1238 = vld [vmem:[#allocation10 + $0x6b8] sm:$0xff]
        %v1239 = vld [vmem:[#allocation10 + $0x6c0] sm:$0xff]
        %v1240 = vld [vmem:[#allocation10 + $0x6c8] sm:$0xff]
        %v1241 = vld [vmem:[#allocation10 + $0x6d0] sm:$0xff]
        %v1242 = vld [vmem:[#allocation10 + $0x6d8] sm:$0xff]
        %v1243 = vld [vmem:[#allocation10 + $0x6e0] sm:$0xff]
        %v1244 = vld [vmem:[#allocation10 + $0x6e8] sm:$0xff]
        %v1245 = vld [vmem:[#allocation10 + $0x6f0] sm:$0xff]
        %v1246 = vld [vmem:[#allocation10 + $0x6f8] sm:$0xff]
        %v1247 = vld [vmem:[#allocation10 + $0x700] sm:$0xff]
        %v1248 = vld [vmem:[#allocation10 + $0x708] sm:$0xff]
        %v1249 = vld [vmem:[#allocation10 + $0x710] sm:$0xff]
        %v1250 = vld [vmem:[#allocation10 + $0x718] sm:$0xff]
        %v1251 = vld [vmem:[#allocation10 + $0x720] sm:$0xff]
        %v1252 = vld [vmem:[#allocation10 + $0x728] sm:$0xff]
        %v1253 = vld [vmem:[#allocation10 + $0x730] sm:$0xff]
        %v1254 = vld [vmem:[#allocation10 + $0x738] sm:$0xff]
        %v1255 = vld [vmem:[#allocation10 + $0x740] sm:$0xff]
        %v1256 = vld [vmem:[#allocation10 + $0x748] sm:$0xff]
        %v1257 = vld [vmem:[#allocation10 + $0x750] sm:$0xff]
        %v1258 = vld [vmem:[#allocation10 + $0x758] sm:$0xff]
        %v1259 = vld [vmem:[#allocation10 + $0x760] sm:$0xff]
        %v1260 = vld [vmem:[#allocation10 + $0x768] sm:$0xff]
        %v1261 = vld [vmem:[#allocation10 + $0x770] sm:$0xff]
        %v1262 = vld [vmem:[#allocation10 + $0x778] sm:$0xff]
        %v1263 = vld [vmem:[#allocation10 + $0x780] sm:$0xff]
        %v1264 = vld [vmem:[#allocation10 + $0x788] sm:$0xff]
        %v1265 = vld [vmem:[#allocation10 + $0x790] sm:$0xff]
        %v1266 = vld [vmem:[#allocation10 + $0x798] sm:$0xff]
        %v1267 = vld [vmem:[#allocation10 + $0x7a0] sm:$0xff]
        %v1268 = vld [vmem:[#allocation10 + $0x7a8] sm:$0xff]
        %v1269 = vld [vmem:[#allocation10 + $0x7b0] sm:$0xff]
        %v1270 = vld [vmem:[#allocation10 + $0x7b8] sm:$0xff]
        %v1271 = vld [vmem:[#allocation10 + $0x7c0] sm:$0xff]
        %v1272 = vld [vmem:[#allocation10 + $0x7c8] sm:$0xff]
        %v1273 = vld [vmem:[#allocation10 + $0x7d0] sm:$0xff]
        %v1274 = vld [vmem:[#allocation10 + $0x7d8] sm:$0xff]
        %v1275 = vld [vmem:[#allocation10 + $0x7e0] sm:$0xff]
        %v1276 = vld [vmem:[#allocation10 + $0x7e8] sm:$0xff]
        %v1277 = vld [vmem:[#allocation10 + $0x7f0] sm:$0xff]
        %v1278 = vld [vmem:[#allocation10 + $0x7f8] sm:$0xff]
        %v1279 = vld [vmem:[#allocation10 + $0x800] sm:$0xff]
        %v1280 = vld [vmem:[#allocation10 + $0x808] sm:$0xff]
        %v1281 = vld [vmem:[#allocation10 + $0x810] sm:$0xff]
        %v1282 = vld [vmem:[#allocation10 + $0x818] sm:$0xff]
        %v1283 = vld [vmem:[#allocation10 + $0x820] sm:$0xff]
        %v1284 = vld [vmem:[#allocation10 + $0x828] sm:$0xff]
        %v1285 = vld [vmem:[#allocation10 + $0x830] sm:$0xff]
        %v1286 = vld [vmem:[#allocation10 + $0x838] sm:$0xff]
        %v1287 = vld [vmem:[#allocation10 + $0x840] sm:$0xff]
        %v1288 = vld [vmem:[#allocation10 + $0x848] sm:$0xff]
        %v1289 = vld [vmem:[#allocation10 + $0x850] sm:$0xff]
        %v1290 = vld [vmem:[#allocation10 + $0x858] sm:$0xff]
        %v1291 = vld [vmem:[#allocation10 + $0x860] sm:$0xff]
        %v1292 = vld [vmem:[#allocation10 + $0x868] sm:$0xff]
        %v1293 = vld [vmem:[#allocation10 + $0x870] sm:$0xff]
        %v1294 = vld [vmem:[#allocation10 + $0x878] sm:$0xff]
        %v1295 = vld [vmem:[#allocation10 + $0x880] sm:$0xff]
        %v1296 = vld [vmem:[#allocation10 + $0x888] sm:$0xff]
        %v1297 = vld [vmem:[#allocation10 + $0x890] sm:$0xff]
        %v1298 = vld [vmem:[#allocation10 + $0x898] sm:$0xff]
        %v1299 = vld [vmem:[#allocation10 + $0x8a0] sm:$0xff]
        %v1300 = vld [vmem:[#allocation10 + $0x8a8] sm:$0xff]
        %v1301 = vld [vmem:[#allocation10 + $0x8b0] sm:$0xff]
        %v1302 = vld [vmem:[#allocation10 + $0x8b8] sm:$0xff]
        %v1303 = vld [vmem:[#allocation10 + $0x8c0] sm:$0xff]
        %v1304 = vld [vmem:[#allocation10 + $0x8c8] sm:$0xff]
        %v1305 = vld [vmem:[#allocation10 + $0x8d0] sm:$0xff]
        %v1306 = vld [vmem:[#allocation10 + $0x8d8] sm:$0xff]
        %v1307 = vld [vmem:[#allocation10 + $0x8e0] sm:$0xff]
        %v1308 = vld [vmem:[#allocation10 + $0x8e8] sm:$0xff]
        %v1309 = vld [vmem:[#allocation10 + $0x8f0] sm:$0xff]
        %v1310 = vld [vmem:[#allocation10 + $0x8f8] sm:$0xff]
        %v1311 = vld [vmem:[#allocation10 + $0x900] sm:$0xff]
        %v1312 = vld [vmem:[#allocation10 + $0x908] sm:$0xff]
        %v1313 = vld [vmem:[#allocation10 + $0x910] sm:$0xff]
        %v1314 = vld [vmem:[#allocation10 + $0x918] sm:$0xff]
        %v1315 = vld [vmem:[#allocation10 + $0x920] sm:$0xff]
        %v1316 = vld [vmem:[#allocation10 + $0x928] sm:$0xff]
        %v1317 = vld [vmem:[#allocation10 + $0x930] sm:$0xff]
        %v1318 = vld [vmem:[#allocation10 + $0x938] sm:$0xff]
        %v1319 = vld [vmem:[#allocation10 + $0x940] sm:$0xff]
        %v1320 = vld [vmem:[#allocation10 + $0x948] sm:$0xff]
        %v1321 = vld [vmem:[#allocation10 + $0x950] sm:$0xff]
        %v1322 = vld [vmem:[#allocation10 + $0x958] sm:$0xff]
        %v1323 = vld [vmem:[#allocation10 + $0x960] sm:$0xff]
        %v1324 = vld [vmem:[#allocation10 + $0x968] sm:$0xff]
        %v1325 = vld [vmem:[#allocation10 + $0x970] sm:$0xff]
        %v1326 = vld [vmem:[#allocation10 + $0x978] sm:$0xff]
        %v1327 = vld [vmem:[#allocation10 + $0x980] sm:$0xff]
        %v1328 = vld [vmem:[#allocation10 + $0x988] sm:$0xff]
        %v1329 = vld [vmem:[#allocation10 + $0x990] sm:$0xff]
        %v1330 = vld [vmem:[#allocation10 + $0x998] sm:$0xff]
        %v1331 = vld [vmem:[#allocation10 + $0x9a0] sm:$0xff]
        %v1332 = vld [vmem:[#allocation10 + $0x9a8] sm:$0xff]
        %v1333 = vld [vmem:[#allocation10 + $0x9b0] sm:$0xff]
        %v1334 = vld [vmem:[#allocation10 + $0x9b8] sm:$0xff]
        %v1335 = vld [vmem:[#allocation10 + $0x9c0] sm:$0xff]
        %v1336 = vld [vmem:[#allocation10 + $0x9c8] sm:$0xff]
        %v1337 = vld [vmem:[#allocation10 + $0x9d0] sm:$0xff]
        %v1338 = vld [vmem:[#allocation10 + $0x9d8] sm:$0xff]
        %v1339 = vld [vmem:[#allocation10 + $0x9e0] sm:$0xff]
        %v1340 = vld [vmem:[#allocation10 + $0x9e8] sm:$0xff]
        %v1341 = vld [vmem:[#allocation10 + $0x9f0] sm:$0xff]
        %v1342 = vld [vmem:[#allocation10 + $0x9f8] sm:$0xff]
        %v1343 = vld [vmem:[#allocation10 + $0xa00] sm:$0xff]
        %v1344 = vld [vmem:[#allocation10 + $0xa08] sm:$0xff]
        %v1345 = vld [vmem:[#allocation10 + $0xa10] sm:$0xff]
        %v1346 = vld [vmem:[#allocation10 + $0xa18] sm:$0xff]
        %v1347 = vld [vmem:[#allocation10 + $0xa20] sm:$0xff]
        %v1348 = vld [vmem:[#allocation10 + $0xa28] sm:$0xff]
        %v1349 = vld [vmem:[#allocation10 + $0xa30] sm:$0xff]
        %v1350 = vld [vmem:[#allocation10 + $0xa38] sm:$0xff]
        %v1351 = vld [vmem:[#allocation10 + $0xa40] sm:$0xff]
        %v1352 = vld [vmem:[#allocation10 + $0xa48] sm:$0xff]
        %v1353 = vld [vmem:[#allocation10 + $0xa50] sm:$0xff]
        %v1354 = vld [vmem:[#allocation10 + $0xa58] sm:$0xff]
        %v1355 = vld [vmem:[#allocation10 + $0xa60] sm:$0xff]
        %v1356 = vld [vmem:[#allocation10 + $0xa68] sm:$0xff]
        %v1357 = vld [vmem:[#allocation10 + $0xa70] sm:$0xff]
        %v1358 = vld [vmem:[#allocation10 + $0xa78] sm:$0xff]
        %v1359 = vld [vmem:[#allocation10 + $0xa80] sm:$0xff]
        %v1360 = vld [vmem:[#allocation10 + $0xa88] sm:$0xff]
        %v1361 = vld [vmem:[#allocation10 + $0xa90] sm:$0xff]
        %v1362 = vld [vmem:[#allocation10 + $0xa98] sm:$0xff]
        %v1363 = vld [vmem:[#allocation10 + $0xaa0] sm:$0xff]
        %v1364 = vld [vmem:[#allocation10 + $0xaa8] sm:$0xff]
        %v1365 = vld [vmem:[#allocation10 + $0xab0] sm:$0xff]
        %v1366 = vld [vmem:[#allocation10 + $0xab8] sm:$0xff]
        %v1367 = vld [vmem:[#allocation10 + $0xac0] sm:$0xff]
        %v1368 = vld [vmem:[#allocation10 + $0xac8] sm:$0xff]
        %v1369 = vld [vmem:[#allocation10 + $0xad0] sm:$0xff]
        %v1370 = vld [vmem:[#allocation10 + $0xad8] sm:$0xff]
        %v1371 = vld [vmem:[#allocation10 + $0xae0] sm:$0xff]
        %v1372 = vld [vmem:[#allocation10 + $0xae8] sm:$0xff]
        %v1373 = vld [vmem:[#allocation10 + $0xaf0] sm:$0xff]
        %v1374 = vld [vmem:[#allocation10 + $0xaf8] sm:$0xff]
        %v1375 = vld [vmem:[#allocation10 + $0xb00] sm:$0xff]
        %v1376 = vld [vmem:[#allocation10 + $0xb08] sm:$0xff]
        %v1377 = vld [vmem:[#allocation10 + $0xb10] sm:$0xff]
        %v1378 = vld [vmem:[#allocation10 + $0xb18] sm:$0xff]
        %v1379 = vld [vmem:[#allocation10 + $0xb20] sm:$0xff]
        %v1380 = vld [vmem:[#allocation10 + $0xb28] sm:$0xff]
        %v1381 = vld [vmem:[#allocation10 + $0xb30] sm:$0xff]
        %v1382 = vld [vmem:[#allocation10 + $0xb38] sm:$0xff]
        %v1383 = vld [vmem:[#allocation10 + $0xb40] sm:$0xff]
        %v1384 = vld [vmem:[#allocation10 + $0xb48] sm:$0xff]
        %v1385 = vld [vmem:[#allocation10 + $0xb50] sm:$0xff]
        %v1386 = vld [vmem:[#allocation10 + $0xb58] sm:$0xff]
        %v1387 = vld [vmem:[#allocation10 + $0xb60] sm:$0xff]
        %v1388 = vld [vmem:[#allocation10 + $0xb68] sm:$0xff]
        %v1389 = vld [vmem:[#allocation10 + $0xb70] sm:$0xff]
        %v1390 = vld [vmem:[#allocation10 + $0xb78] sm:$0xff]
        %v1391 = vld [vmem:[#allocation10 + $0xb80] sm:$0xff]
        %v1392 = vld [vmem:[#allocation10 + $0xb88] sm:$0xff]
        %v1393 = vld [vmem:[#allocation10 + $0xb90] sm:$0xff]
        %v1394 = vld [vmem:[#allocation10 + $0xb98] sm:$0xff]
        %v1395 = vld [vmem:[#allocation10 + $0xba0] sm:$0xff]
        %v1396 = vld [vmem:[#allocation10 + $0xba8] sm:$0xff]
        %v1397 = vld [vmem:[#allocation10 + $0xbb0] sm:$0xff]
        %v1398 = vld [vmem:[#allocation10 + $0xbb8] sm:$0xff]
        %v1399 = vld [vmem:[#allocation10 + $0xbc0] sm:$0xff]
        %v1400 = vld [vmem:[#allocation10 + $0xbc8] sm:$0xff]
        %v1401 = vld [vmem:[#allocation10 + $0xbd0] sm:$0xff]
        %v1402 = vld [vmem:[#allocation10 + $0xbd8] sm:$0xff]
        %v1403 = vld [vmem:[#allocation10 + $0xbe0] sm:$0xff]
        %v1404 = vld [vmem:[#allocation10 + $0xbe8] sm:$0xff]
        %v1405 = vld [vmem:[#allocation10 + $0xbf0] sm:$0xff]
        %v1406 = vld [vmem:[#allocation10 + $0xbf8] sm:$0xff]
        %v1407 = vld [vmem:[#allocation10 + $0xc00] sm:$0xff]
        %v1408 = vld [vmem:[#allocation10 + $0xc08] sm:$0xff]
        %v1409 = vld [vmem:[#allocation10 + $0xc10] sm:$0xff]
        %v1410 = vld [vmem:[#allocation10 + $0xc18] sm:$0xff]
        %v1411 = vld [vmem:[#allocation10 + $0xc20] sm:$0xff]
        %v1412 = vld [vmem:[#allocation10 + $0xc28] sm:$0xff]
        %v1413 = vld [vmem:[#allocation10 + $0xc30] sm:$0xff]
        %v1414 = vld [vmem:[#allocation10 + $0xc38] sm:$0xff]
        %v1415 = vld [vmem:[#allocation10 + $0xc40] sm:$0xff]
        %v1416 = vld [vmem:[#allocation10 + $0xc48] sm:$0xff]
        %v1417 = vld [vmem:[#allocation10 + $0xc50] sm:$0xff]
        %v1418 = vld [vmem:[#allocation10 + $0xc58] sm:$0xff]
        %v1419 = vld [vmem:[#allocation10 + $0xc60] sm:$0xff]
        %v1420 = vld [vmem:[#allocation10 + $0xc68] sm:$0xff]
        %v1421 = vld [vmem:[#allocation10 + $0xc70] sm:$0xff]
        %v1422 = vld [vmem:[#allocation10 + $0xc78] sm:$0xff]
        %v1423 = vld [vmem:[#allocation10 + $0xc80] sm:$0xff]
        %v1424 = vld [vmem:[#allocation10 + $0xc88] sm:$0xff]
        %v1425 = vld [vmem:[#allocation10 + $0xc90] sm:$0xff]
        %v1426 = vld [vmem:[#allocation10 + $0xc98] sm:$0xff]
        %v1427 = vld [vmem:[#allocation10 + $0xca0] sm:$0xff]
        %v1428 = vld [vmem:[#allocation10 + $0xca8] sm:$0xff]
        %v1429 = vld [vmem:[#allocation10 + $0xcb0] sm:$0xff]
        %v1430 = vld [vmem:[#allocation10 + $0xcb8] sm:$0xff]
        %v1431 = vld [vmem:[#allocation10 + $0xcc0] sm:$0xff]
        %v1432 = vld [vmem:[#allocation10 + $0xcc8] sm:$0xff]
        %v1433 = vld [vmem:[#allocation10 + $0xcd0] sm:$0xff]
        %v1434 = vld [vmem:[#allocation10 + $0xcd8] sm:$0xff]
        %v1435 = vld [vmem:[#allocation10 + $0xce0] sm:$0xff]
        %v1436 = vld [vmem:[#allocation10 + $0xce8] sm:$0xff]
        %v1437 = vld [vmem:[#allocation10 + $0xcf0] sm:$0xff]
        %v1438 = vld [vmem:[#allocation10 + $0xcf8] sm:$0xff]
        %v1439 = vld [vmem:[#allocation10 + $0xd00] sm:$0xff]
        %v1440 = vld [vmem:[#allocation10 + $0xd08] sm:$0xff]
        %v1441 = vld [vmem:[#allocation10 + $0xd10] sm:$0xff]
        %v1442 = vld [vmem:[#allocation10 + $0xd18] sm:$0xff]
        %v1443 = vld [vmem:[#allocation10 + $0xd20] sm:$0xff]
        %v1444 = vld [vmem:[#allocation10 + $0xd28] sm:$0xff]
        %v1445 = vld [vmem:[#allocation10 + $0xd30] sm:$0xff]
        %v1446 = vld [vmem:[#allocation10 + $0xd38] sm:$0xff]
        %v1447 = vld [vmem:[#allocation10 + $0xd40] sm:$0xff]
        %v1448 = vld [vmem:[#allocation10 + $0xd48] sm:$0xff]
        %v1449 = vld [vmem:[#allocation10 + $0xd50] sm:$0xff]
        %v1450 = vld [vmem:[#allocation10 + $0xd58] sm:$0xff]
        %v1451 = vld [vmem:[#allocation10 + $0xd60] sm:$0xff]
        %v1452 = vld [vmem:[#allocation10 + $0xd68] sm:$0xff]
        %v1453 = vld [vmem:[#allocation10 + $0xd70] sm:$0xff]
        %v1454 = vld [vmem:[#allocation10 + $0xd78] sm:$0xff]
        %v1455 = vld [vmem:[#allocation10 + $0xd80] sm:$0xff]
        %v1456 = vld [vmem:[#allocation10 + $0xd88] sm:$0xff]
        %v1457 = vld [vmem:[#allocation10 + $0xd90] sm:$0xff]
        %v1458 = vld [vmem:[#allocation10 + $0xd98] sm:$0xff]
        %v1459 = vld [vmem:[#allocation10 + $0xda0] sm:$0xff]
        %v1460 = vld [vmem:[#allocation10 + $0xda8] sm:$0xff]
        %v1461 = vld [vmem:[#allocation10 + $0xdb0] sm:$0xff]
        %v1462 = vld [vmem:[#allocation10 + $0xdb8] sm:$0xff]
        %v1463 = vld [vmem:[#allocation10 + $0xdc0] sm:$0xff]
        %v1464 = vld [vmem:[#allocation10 + $0xdc8] sm:$0xff]
        %v1465 = vld [vmem:[#allocation10 + $0xdd0] sm:$0xff]
        %v1466 = vld [vmem:[#allocation10 + $0xdd8] sm:$0xff]
        %v1467 = vld [vmem:[#allocation10 + $0xde0] sm:$0xff]
        %v1468 = vld [vmem:[#allocation10 + $0xde8] sm:$0xff]
        %v1469 = vld [vmem:[#allocation10 + $0xdf0] sm:$0xff]
        %v1470 = vld [vmem:[#allocation10 + $0xdf8] sm:$0xff]
        %v1471 = vld [vmem:[#allocation10 + $0xe00] sm:$0xff]
        %v1472 = vld [vmem:[#allocation10 + $0xe08] sm:$0xff]
        %v1473 = vld [vmem:[#allocation10 + $0xe10] sm:$0xff]
        %v1474 = vld [vmem:[#allocation10 + $0xe18] sm:$0xff]
        %v1475 = vld [vmem:[#allocation10 + $0xe20] sm:$0xff]
        %v1476 = vld [vmem:[#allocation10 + $0xe28] sm:$0xff]
        %v1477 = vld [vmem:[#allocation10 + $0xe30] sm:$0xff]
        %v1478 = vld [vmem:[#allocation10 + $0xe38] sm:$0xff]
        %v1479 = vld [vmem:[#allocation10 + $0xe40] sm:$0xff]
        %v1480 = vld [vmem:[#allocation10 + $0xe48] sm:$0xff]
        %v1481 = vld [vmem:[#allocation10 + $0xe50] sm:$0xff]
        %v1482 = vld [vmem:[#allocation10 + $0xe58] sm:$0xff]
        %v1483 = vld [vmem:[#allocation10 + $0xe60] sm:$0xff]
        %v1484 = vld [vmem:[#allocation10 + $0xe68] sm:$0xff]
        %v1485 = vld [vmem:[#allocation10 + $0xe70] sm:$0xff]
        %v1486 = vld [vmem:[#allocation10 + $0xe78] sm:$0xff]
        %v1487 = vld [vmem:[#allocation10 + $0xe80] sm:$0xff]
        %v1488 = vld [vmem:[#allocation10 + $0xe88] sm:$0xff]
        %v1489 = vld [vmem:[#allocation10 + $0xe90] sm:$0xff]
        %v1490 = vld [vmem:[#allocation10 + $0xe98] sm:$0xff]
        %v1491 = vld [vmem:[#allocation10 + $0xea0] sm:$0xff]
        %v1492 = vld [vmem:[#allocation10 + $0xea8] sm:$0xff]
        %v1493 = vld [vmem:[#allocation10 + $0xeb0] sm:$0xff]
        %v1494 = vld [vmem:[#allocation10 + $0xeb8] sm:$0xff]
        %v1495 = vld [vmem:[#allocation10 + $0xec0] sm:$0xff]
        %v1496 = vld [vmem:[#allocation10 + $0xec8] sm:$0xff]
        %v1497 = vld [vmem:[#allocation10 + $0xed0] sm:$0xff]
        %v1498 = vld [vmem:[#allocation10 + $0xed8] sm:$0xff]
        %v1499 = vld [vmem:[#allocation10 + $0xee0] sm:$0xff]
        %v1500 = vld [vmem:[#allocation10 + $0xee8] sm:$0xff]
        %v1501 = vld [vmem:[#allocation10 + $0xef0] sm:$0xff]
        %v1502 = vld [vmem:[#allocation10 + $0xef8] sm:$0xff]
        %v1503 = vld [vmem:[#allocation10 + $0xf00] sm:$0xff]
        %v1504 = vld [vmem:[#allocation10 + $0xf08] sm:$0xff]
        %v1505 = vld [vmem:[#allocation10 + $0xf10] sm:$0xff]
        %v1506 = vld [vmem:[#allocation10 + $0xf18] sm:$0xff]
        %v1507 = vld [vmem:[#allocation10 + $0xf20] sm:$0xff]
        %v1508 = vld [vmem:[#allocation10 + $0xf28] sm:$0xff]
        %v1509 = vld [vmem:[#allocation10 + $0xf30] sm:$0xff]
        %v1510 = vld [vmem:[#allocation10 + $0xf38] sm:$0xff]
        %v1511 = vld [vmem:[#allocation10 + $0xf40] sm:$0xff]
        %v1512 = vld [vmem:[#allocation10 + $0xf48] sm:$0xff]
        %v1513 = vld [vmem:[#allocation10 + $0xf50] sm:$0xff]
        %v1514 = vld [vmem:[#allocation10 + $0xf58] sm:$0xff]
        %v1515 = vld [vmem:[#allocation10 + $0xf60] sm:$0xff]
        %v1516 = vld [vmem:[#allocation10 + $0xf68] sm:$0xff]
        %v1517 = vld [vmem:[#allocation10 + $0xf70] sm:$0xff]
        %v1518 = vld [vmem:[#allocation10 + $0xf78] sm:$0xff]
        %v1519 = vld [vmem:[#allocation10 + $0xf80] sm:$0xff]
        %v1520 = vld [vmem:[#allocation10 + $0xf88] sm:$0xff]
        %v1521 = vld [vmem:[#allocation10 + $0xf90] sm:$0xff]
        %v1522 = vld [vmem:[#allocation10 + $0xf98] sm:$0xff]
        %v1523 = vld [vmem:[#allocation10 + $0xfa0] sm:$0xff]
        %v1524 = vld [vmem:[#allocation10 + $0xfa8] sm:$0xff]
        %v1525 = vld [vmem:[#allocation10 + $0xfb0] sm:$0xff]
        %v1526 = vld [vmem:[#allocation10 + $0xfb8] sm:$0xff]
        %v1527 = vld [vmem:[#allocation10 + $0xfc0] sm:$0xff]
        %v1528 = vld [vmem:[#allocation10 + $0xfc8] sm:$0xff]
        %v1529 = vld [vmem:[#allocation10 + $0xfd0] sm:$0xff]
        %v1530 = vld [vmem:[#allocation10 + $0xfd8] sm:$0xff]
        %v1531 = vld [vmem:[#allocation10 + $0xfe0] sm:$0xff]
        %v1532 = vld [vmem:[#allocation10 + $0xfe8] sm:$0xff]
        %v1533 = vld [vmem:[#allocation10 + $0xff0] sm:$0xff]
        %v1534 = vld [vmem:[#allocation10 + $0xff8] sm:$0xff]
        %v1535 = vld [vmem:[#allocation12] sm:$0xff]
        %v1537 = vlaneseq
        %v1538 = vshrl.u32 %v1537, 7
        %v1539 = vsub.s32 0, %v1538
        %v1540 = vrot.slane %v1535, %v1539
        %v1541 = vlaneseq
        %v1542 = vshrl.u32 %v1541, 7
        %v1543 = vsub.s32 1, %v1542
        %v1544 = vrot.slane %v1535, %v1543
        %v1545 = vlaneseq
        %v1546 = vshrl.u32 %v1545, 7
        %v1547 = vsub.s32 2, %v1546
        %v1548 = vrot.slane %v1535, %v1547
        %v1549 = vlaneseq
        %v1550 = vshrl.u32 %v1549, 7
        %v1551 = vsub.s32 3, %v1550
        %v1552 = vrot.slane %v1535, %v1551
        %v1553 = vlaneseq
        %v1554 = vshrl.u32 %v1553, 7
        %v1555 = vsub.s32 4, %v1554
        %v1556 = vrot.slane %v1535, %v1555
        %v1557 = vlaneseq
        %v1558 = vshrl.u32 %v1557, 7
        %v1559 = vsub.s32 5, %v1558
        %v1560 = vrot.slane %v1535, %v1559
        %v1561 = vlaneseq
        %v1562 = vshrl.u32 %v1561, 7
        %v1563 = vsub.s32 6, %v1562
        %v1564 = vrot.slane %v1535, %v1563
        %v1565 = vlaneseq
        %v1566 = vshrl.u32 %v1565, 7
        %v1567 = vsub.s32 7, %v1566
        %v1568 = vrot.slane %v1535, %v1567
        %v2089 = vunpack.c.l.b16 %v1023
        %v2090 = vunpack.c.h.b16 %v1023
        %v2091 = vunpack.c.l.b16 %v1024
        %v2092 = vunpack.c.h.b16 %v1024
        %v2093 = vunpack.c.l.b16 %v1025
        %v2094 = vunpack.c.h.b16 %v1025
        %v2095 = vunpack.c.l.b16 %v1026
        %v2096 = vunpack.c.h.b16 %v1026
        %v2097 = vunpack.c.l.b16 %v1027
        %v2098 = vunpack.c.h.b16 %v1027
        %v2099 = vunpack.c.l.b16 %v1028
        %v2100 = vunpack.c.h.b16 %v1028
        %v2101 = vunpack.c.l.b16 %v1029
        %v2102 = vunpack.c.h.b16 %v1029
        %v2103 = vunpack.c.l.b16 %v1030
        %v2104 = vunpack.c.h.b16 %v1030
        %v2105 = vunpack.c.l.b16 %v1031
        %v2106 = vunpack.c.h.b16 %v1031
        %v2107 = vunpack.c.l.b16 %v1032
        %v2108 = vunpack.c.h.b16 %v1032
        %v2109 = vunpack.c.l.b16 %v1033
        %v2110 = vunpack.c.h.b16 %v1033
        %v2111 = vunpack.c.l.b16 %v1034
        %v2112 = vunpack.c.h.b16 %v1034
        %v2113 = vunpack.c.l.b16 %v1035
        %v2114 = vunpack.c.h.b16 %v1035
        %v2115 = vunpack.c.l.b16 %v1036
        %v2116 = vunpack.c.h.b16 %v1036
        %v2117 = vunpack.c.l.b16 %v1037
        %v2118 = vunpack.c.h.b16 %v1037
        %v2119 = vunpack.c.l.b16 %v1038
        %v2120 = vunpack.c.h.b16 %v1038
        %v2121 = vunpack.c.l.b16 %v1039
        %v2122 = vunpack.c.h.b16 %v1039
        %v2123 = vunpack.c.l.b16 %v1040
        %v2124 = vunpack.c.h.b16 %v1040
        %v2125 = vunpack.c.l.b16 %v1041
        %v2126 = vunpack.c.h.b16 %v1041
        %v2127 = vunpack.c.l.b16 %v1042
        %v2128 = vunpack.c.h.b16 %v1042
        %v2129 = vunpack.c.l.b16 %v1043
        %v2130 = vunpack.c.h.b16 %v1043
        %v2131 = vunpack.c.l.b16 %v1044
        %v2132 = vunpack.c.h.b16 %v1044
        %v2133 = vunpack.c.l.b16 %v1045
        %v2134 = vunpack.c.h.b16 %v1045
        %v2135 = vunpack.c.l.b16 %v1046
        %v2136 = vunpack.c.h.b16 %v1046
        %v2137 = vunpack.c.l.b16 %v1047
        %v2138 = vunpack.c.h.b16 %v1047
        %v2139 = vunpack.c.l.b16 %v1048
        %v2140 = vunpack.c.h.b16 %v1048
        %v2141 = vunpack.c.l.b16 %v1049
        %v2142 = vunpack.c.h.b16 %v1049
        %v2143 = vunpack.c.l.b16 %v1050
        %v2144 = vunpack.c.h.b16 %v1050
        %v2145 = vunpack.c.l.b16 %v1051
        %v2146 = vunpack.c.h.b16 %v1051
        %v2147 = vunpack.c.l.b16 %v1052
        %v2148 = vunpack.c.h.b16 %v1052
        %v2149 = vunpack.c.l.b16 %v1053
        %v2150 = vunpack.c.h.b16 %v1053
        %v2151 = vunpack.c.l.b16 %v1054
        %v2152 = vunpack.c.h.b16 %v1054
        %v2153 = vunpack.c.l.b16 %v1055
        %v2154 = vunpack.c.h.b16 %v1055
        %v2155 = vunpack.c.l.b16 %v1056
        %v2156 = vunpack.c.h.b16 %v1056
        %v2157 = vunpack.c.l.b16 %v1057
        %v2158 = vunpack.c.h.b16 %v1057
        %v2159 = vunpack.c.l.b16 %v1058
        %v2160 = vunpack.c.h.b16 %v1058
        %v2161 = vunpack.c.l.b16 %v1059
        %v2162 = vunpack.c.h.b16 %v1059
        %v2163 = vunpack.c.l.b16 %v1060
        %v2164 = vunpack.c.h.b16 %v1060
        %v2165 = vunpack.c.l.b16 %v1061
        %v2166 = vunpack.c.h.b16 %v1061
        %v2167 = vunpack.c.l.b16 %v1062
        %v2168 = vunpack.c.h.b16 %v1062
        %v2169 = vunpack.c.l.b16 %v1063
        %v2170 = vunpack.c.h.b16 %v1063
        %v2171 = vunpack.c.l.b16 %v1064
        %v2172 = vunpack.c.h.b16 %v1064
        %v2173 = vunpack.c.l.b16 %v1065
        %v2174 = vunpack.c.h.b16 %v1065
        %v2175 = vunpack.c.l.b16 %v1066
        %v2176 = vunpack.c.h.b16 %v1066
        %v2177 = vunpack.c.l.b16 %v1067
        %v2178 = vunpack.c.h.b16 %v1067
        %v2179 = vunpack.c.l.b16 %v1068
        %v2180 = vunpack.c.h.b16 %v1068
        %v2181 = vunpack.c.l.b16 %v1069
        %v2182 = vunpack.c.h.b16 %v1069
        %v2183 = vunpack.c.l.b16 %v1070
        %v2184 = vunpack.c.h.b16 %v1070
        %v2185 = vunpack.c.l.b16 %v1071
        %v2186 = vunpack.c.h.b16 %v1071
        %v2187 = vunpack.c.l.b16 %v1072
        %v2188 = vunpack.c.h.b16 %v1072
        %v2189 = vunpack.c.l.b16 %v1073
        %v2190 = vunpack.c.h.b16 %v1073
        %v2191 = vunpack.c.l.b16 %v1074
        %v2192 = vunpack.c.h.b16 %v1074
        %v2193 = vunpack.c.l.b16 %v1075
        %v2194 = vunpack.c.h.b16 %v1075
        %v2195 = vunpack.c.l.b16 %v1076
        %v2196 = vunpack.c.h.b16 %v1076
        %v2197 = vunpack.c.l.b16 %v1077
        %v2198 = vunpack.c.h.b16 %v1077
        %v2199 = vunpack.c.l.b16 %v1078
        %v2200 = vunpack.c.h.b16 %v1078
        %v2201 = vunpack.c.l.b16 %v1079
        %v2202 = vunpack.c.h.b16 %v1079
        %v2203 = vunpack.c.l.b16 %v1080
        %v2204 = vunpack.c.h.b16 %v1080
        %v2205 = vunpack.c.l.b16 %v1081
        %v2206 = vunpack.c.h.b16 %v1081
        %v2207 = vunpack.c.l.b16 %v1082
        %v2208 = vunpack.c.h.b16 %v1082
        %v2209 = vunpack.c.l.b16 %v1083
        %v2210 = vunpack.c.h.b16 %v1083
        %v2211 = vunpack.c.l.b16 %v1084
        %v2212 = vunpack.c.h.b16 %v1084
        %v2213 = vunpack.c.l.b16 %v1085
        %v2214 = vunpack.c.h.b16 %v1085
        %v2215 = vunpack.c.l.b16 %v1086
        %v2216 = vunpack.c.h.b16 %v1086
        %v2217 = vunpack.c.l.b16 %v1087
        %v2218 = vunpack.c.h.b16 %v1087
        %v2219 = vunpack.c.l.b16 %v1088
        %v2220 = vunpack.c.h.b16 %v1088
        %v2221 = vunpack.c.l.b16 %v1089
        %v2222 = vunpack.c.h.b16 %v1089
        %v2223 = vunpack.c.l.b16 %v1090
        %v2224 = vunpack.c.h.b16 %v1090
        %v2225 = vunpack.c.l.b16 %v1091
        %v2226 = vunpack.c.h.b16 %v1091
        %v2227 = vunpack.c.l.b16 %v1092
        %v2228 = vunpack.c.h.b16 %v1092
        %v2229 = vunpack.c.l.b16 %v1093
        %v2230 = vunpack.c.h.b16 %v1093
        %v2231 = vunpack.c.l.b16 %v1094
        %v2232 = vunpack.c.h.b16 %v1094
        %v2233 = vunpack.c.l.b16 %v1095
        %v2234 = vunpack.c.h.b16 %v1095
        %v2235 = vunpack.c.l.b16 %v1096
        %v2236 = vunpack.c.h.b16 %v1096
        %v2237 = vunpack.c.l.b16 %v1097
        %v2238 = vunpack.c.h.b16 %v1097
        %v2239 = vunpack.c.l.b16 %v1098
        %v2240 = vunpack.c.h.b16 %v1098
        %v2241 = vunpack.c.l.b16 %v1099
        %v2242 = vunpack.c.h.b16 %v1099
        %v2243 = vunpack.c.l.b16 %v1100
        %v2244 = vunpack.c.h.b16 %v1100
        %v2245 = vunpack.c.l.b16 %v1101
        %v2246 = vunpack.c.h.b16 %v1101
        %v2247 = vunpack.c.l.b16 %v1102
        %v2248 = vunpack.c.h.b16 %v1102
        %v2249 = vunpack.c.l.b16 %v1103
        %v2250 = vunpack.c.h.b16 %v1103
        %v2251 = vunpack.c.l.b16 %v1104
        %v2252 = vunpack.c.h.b16 %v1104
        %v2253 = vunpack.c.l.b16 %v1105
        %v2254 = vunpack.c.h.b16 %v1105
        %v2255 = vunpack.c.l.b16 %v1106
        %v2256 = vunpack.c.h.b16 %v1106
        %v2257 = vunpack.c.l.b16 %v1107
        %v2258 = vunpack.c.h.b16 %v1107
        %v2259 = vunpack.c.l.b16 %v1108
        %v2260 = vunpack.c.h.b16 %v1108
        %v2261 = vunpack.c.l.b16 %v1109
        %v2262 = vunpack.c.h.b16 %v1109
        %v2263 = vunpack.c.l.b16 %v1110
        %v2264 = vunpack.c.h.b16 %v1110
        %v2265 = vunpack.c.l.b16 %v1111
        %v2266 = vunpack.c.h.b16 %v1111
        %v2267 = vunpack.c.l.b16 %v1112
        %v2268 = vunpack.c.h.b16 %v1112
        %v2269 = vunpack.c.l.b16 %v1113
        %v2270 = vunpack.c.h.b16 %v1113
        %v2271 = vunpack.c.l.b16 %v1114
        %v2272 = vunpack.c.h.b16 %v1114
        %v2273 = vunpack.c.l.b16 %v1115
        %v2274 = vunpack.c.h.b16 %v1115
        %v2275 = vunpack.c.l.b16 %v1116
        %v2276 = vunpack.c.h.b16 %v1116
        %v2277 = vunpack.c.l.b16 %v1117
        %v2278 = vunpack.c.h.b16 %v1117
        %v2279 = vunpack.c.l.b16 %v1118
        %v2280 = vunpack.c.h.b16 %v1118
        %v2281 = vunpack.c.l.b16 %v1119
        %v2282 = vunpack.c.h.b16 %v1119
        %v2283 = vunpack.c.l.b16 %v1120
        %v2284 = vunpack.c.h.b16 %v1120
        %v2285 = vunpack.c.l.b16 %v1121
        %v2286 = vunpack.c.h.b16 %v1121
        %v2287 = vunpack.c.l.b16 %v1122
        %v2288 = vunpack.c.h.b16 %v1122
        %v2289 = vunpack.c.l.b16 %v1123
        %v2290 = vunpack.c.h.b16 %v1123
        %v2291 = vunpack.c.l.b16 %v1124
        %v2292 = vunpack.c.h.b16 %v1124
        %v2293 = vunpack.c.l.b16 %v1125
        %v2294 = vunpack.c.h.b16 %v1125
        %v2295 = vunpack.c.l.b16 %v1126
        %v2296 = vunpack.c.h.b16 %v1126
        %v2297 = vunpack.c.l.b16 %v1127
        %v2298 = vunpack.c.h.b16 %v1127
        %v2299 = vunpack.c.l.b16 %v1128
        %v2300 = vunpack.c.h.b16 %v1128
        %v2301 = vunpack.c.l.b16 %v1129
        %v2302 = vunpack.c.h.b16 %v1129
        %v2303 = vunpack.c.l.b16 %v1130
        %v2304 = vunpack.c.h.b16 %v1130
        %v2305 = vunpack.c.l.b16 %v1131
        %v2306 = vunpack.c.h.b16 %v1131
        %v2307 = vunpack.c.l.b16 %v1132
        %v2308 = vunpack.c.h.b16 %v1132
        %v2309 = vunpack.c.l.b16 %v1133
        %v2310 = vunpack.c.h.b16 %v1133
        %v2311 = vunpack.c.l.b16 %v1134
        %v2312 = vunpack.c.h.b16 %v1134
        %v2313 = vunpack.c.l.b16 %v1135
        %v2314 = vunpack.c.h.b16 %v1135
        %v2315 = vunpack.c.l.b16 %v1136
        %v2316 = vunpack.c.h.b16 %v1136
        %v2317 = vunpack.c.l.b16 %v1137
        %v2318 = vunpack.c.h.b16 %v1137
        %v2319 = vunpack.c.l.b16 %v1138
        %v2320 = vunpack.c.h.b16 %v1138
        %v2321 = vunpack.c.l.b16 %v1139
        %v2322 = vunpack.c.h.b16 %v1139
        %v2323 = vunpack.c.l.b16 %v1140
        %v2324 = vunpack.c.h.b16 %v1140
        %v2325 = vunpack.c.l.b16 %v1141
        %v2326 = vunpack.c.h.b16 %v1141
        %v2327 = vunpack.c.l.b16 %v1142
        %v2328 = vunpack.c.h.b16 %v1142
        %v2329 = vunpack.c.l.b16 %v1143
        %v2330 = vunpack.c.h.b16 %v1143
        %v2331 = vunpack.c.l.b16 %v1144
        %v2332 = vunpack.c.h.b16 %v1144
        %v2333 = vunpack.c.l.b16 %v1145
        %v2334 = vunpack.c.h.b16 %v1145
        %v2335 = vunpack.c.l.b16 %v1146
        %v2336 = vunpack.c.h.b16 %v1146
        %v2337 = vunpack.c.l.b16 %v1147
        %v2338 = vunpack.c.h.b16 %v1147
        %v2339 = vunpack.c.l.b16 %v1148
        %v2340 = vunpack.c.h.b16 %v1148
        %v2341 = vunpack.c.l.b16 %v1149
        %v2342 = vunpack.c.h.b16 %v1149
        %v2343 = vunpack.c.l.b16 %v1150
        %v2344 = vunpack.c.h.b16 %v1150
        %v2345 = vunpack.c.l.b16 %v1151
        %v2346 = vunpack.c.h.b16 %v1151
        %v2347 = vunpack.c.l.b16 %v1152
        %v2348 = vunpack.c.h.b16 %v1152
        %v2349 = vunpack.c.l.b16 %v1153
        %v2350 = vunpack.c.h.b16 %v1153
        %v2351 = vunpack.c.l.b16 %v1154
        %v2352 = vunpack.c.h.b16 %v1154
        %v2353 = vunpack.c.l.b16 %v1155
        %v2354 = vunpack.c.h.b16 %v1155
        %v2355 = vunpack.c.l.b16 %v1156
        %v2356 = vunpack.c.h.b16 %v1156
        %v2357 = vunpack.c.l.b16 %v1157
        %v2358 = vunpack.c.h.b16 %v1157
        %v2359 = vunpack.c.l.b16 %v1158
        %v2360 = vunpack.c.h.b16 %v1158
        %v2361 = vunpack.c.l.b16 %v1159
        %v2362 = vunpack.c.h.b16 %v1159
        %v2363 = vunpack.c.l.b16 %v1160
        %v2364 = vunpack.c.h.b16 %v1160
        %v2365 = vunpack.c.l.b16 %v1161
        %v2366 = vunpack.c.h.b16 %v1161
        %v2367 = vunpack.c.l.b16 %v1162
        %v2368 = vunpack.c.h.b16 %v1162
        %v2369 = vunpack.c.l.b16 %v1163
        %v2370 = vunpack.c.h.b16 %v1163
        %v2371 = vunpack.c.l.b16 %v1164
        %v2372 = vunpack.c.h.b16 %v1164
        %v2373 = vunpack.c.l.b16 %v1165
        %v2374 = vunpack.c.h.b16 %v1165
        %v2375 = vunpack.c.l.b16 %v1166
        %v2376 = vunpack.c.h.b16 %v1166
        %v2377 = vunpack.c.l.b16 %v1167
        %v2378 = vunpack.c.h.b16 %v1167
        %v2379 = vunpack.c.l.b16 %v1168
        %v2380 = vunpack.c.h.b16 %v1168
        %v2381 = vunpack.c.l.b16 %v1169
        %v2382 = vunpack.c.h.b16 %v1169
        %v2383 = vunpack.c.l.b16 %v1170
        %v2384 = vunpack.c.h.b16 %v1170
        %v2385 = vunpack.c.l.b16 %v1171
        %v2386 = vunpack.c.h.b16 %v1171
        %v2387 = vunpack.c.l.b16 %v1172
        %v2388 = vunpack.c.h.b16 %v1172
        %v2389 = vunpack.c.l.b16 %v1173
        %v2390 = vunpack.c.h.b16 %v1173
        %v2391 = vunpack.c.l.b16 %v1174
        %v2392 = vunpack.c.h.b16 %v1174
        %v2393 = vunpack.c.l.b16 %v1175
        %v2394 = vunpack.c.h.b16 %v1175
        %v2395 = vunpack.c.l.b16 %v1176
        %v2396 = vunpack.c.h.b16 %v1176
        %v2397 = vunpack.c.l.b16 %v1177
        %v2398 = vunpack.c.h.b16 %v1177
        %v2399 = vunpack.c.l.b16 %v1178
        %v2400 = vunpack.c.h.b16 %v1178
        %v2401 = vunpack.c.l.b16 %v1179
        %v2402 = vunpack.c.h.b16 %v1179
        %v2403 = vunpack.c.l.b16 %v1180
        %v2404 = vunpack.c.h.b16 %v1180
        %v2405 = vunpack.c.l.b16 %v1181
        %v2406 = vunpack.c.h.b16 %v1181
        %v2407 = vunpack.c.l.b16 %v1182
        %v2408 = vunpack.c.h.b16 %v1182
        %v2409 = vunpack.c.l.b16 %v1183
        %v2410 = vunpack.c.h.b16 %v1183
        %v2411 = vunpack.c.l.b16 %v1184
        %v2412 = vunpack.c.h.b16 %v1184
        %v2413 = vunpack.c.l.b16 %v1185
        %v2414 = vunpack.c.h.b16 %v1185
        %v2415 = vunpack.c.l.b16 %v1186
        %v2416 = vunpack.c.h.b16 %v1186
        %v2417 = vunpack.c.l.b16 %v1187
        %v2418 = vunpack.c.h.b16 %v1187
        %v2419 = vunpack.c.l.b16 %v1188
        %v2420 = vunpack.c.h.b16 %v1188
        %v2421 = vunpack.c.l.b16 %v1189
        %v2422 = vunpack.c.h.b16 %v1189
        %v2423 = vunpack.c.l.b16 %v1190
        %v2424 = vunpack.c.h.b16 %v1190
        %v2425 = vunpack.c.l.b16 %v1191
        %v2426 = vunpack.c.h.b16 %v1191
        %v2427 = vunpack.c.l.b16 %v1192
        %v2428 = vunpack.c.h.b16 %v1192
        %v2429 = vunpack.c.l.b16 %v1193
        %v2430 = vunpack.c.h.b16 %v1193
        %v2431 = vunpack.c.l.b16 %v1194
        %v2432 = vunpack.c.h.b16 %v1194
        %v2433 = vunpack.c.l.b16 %v1195
        %v2434 = vunpack.c.h.b16 %v1195
        %v2435 = vunpack.c.l.b16 %v1196
        %v2436 = vunpack.c.h.b16 %v1196
        %v2437 = vunpack.c.l.b16 %v1197
        %v2438 = vunpack.c.h.b16 %v1197
        %v2439 = vunpack.c.l.b16 %v1198
        %v2440 = vunpack.c.h.b16 %v1198
        %v2441 = vunpack.c.l.b16 %v1199
        %v2442 = vunpack.c.h.b16 %v1199
        %v2443 = vunpack.c.l.b16 %v1200
        %v2444 = vunpack.c.h.b16 %v1200
        %v2445 = vunpack.c.l.b16 %v1201
        %v2446 = vunpack.c.h.b16 %v1201
        %v2447 = vunpack.c.l.b16 %v1202
        %v2448 = vunpack.c.h.b16 %v1202
        %v2449 = vunpack.c.l.b16 %v1203
        %v2450 = vunpack.c.h.b16 %v1203
        %v2451 = vunpack.c.l.b16 %v1204
        %v2452 = vunpack.c.h.b16 %v1204
        %v2453 = vunpack.c.l.b16 %v1205
        %v2454 = vunpack.c.h.b16 %v1205
        %v2455 = vunpack.c.l.b16 %v1206
        %v2456 = vunpack.c.h.b16 %v1206
        %v2457 = vunpack.c.l.b16 %v1207
        %v2458 = vunpack.c.h.b16 %v1207
        %v2459 = vunpack.c.l.b16 %v1208
        %v2460 = vunpack.c.h.b16 %v1208
        %v2461 = vunpack.c.l.b16 %v1209
        %v2462 = vunpack.c.h.b16 %v1209
        %v2463 = vunpack.c.l.b16 %v1210
        %v2464 = vunpack.c.h.b16 %v1210
        %v2465 = vunpack.c.l.b16 %v1211
        %v2466 = vunpack.c.h.b16 %v1211
        %v2467 = vunpack.c.l.b16 %v1212
        %v2468 = vunpack.c.h.b16 %v1212
        %v2469 = vunpack.c.l.b16 %v1213
        %v2470 = vunpack.c.h.b16 %v1213
        %v2471 = vunpack.c.l.b16 %v1214
        %v2472 = vunpack.c.h.b16 %v1214
        %v2473 = vunpack.c.l.b16 %v1215
        %v2474 = vunpack.c.h.b16 %v1215
        %v2475 = vunpack.c.l.b16 %v1216
        %v2476 = vunpack.c.h.b16 %v1216
        %v2477 = vunpack.c.l.b16 %v1217
        %v2478 = vunpack.c.h.b16 %v1217
        %v2479 = vunpack.c.l.b16 %v1218
        %v2480 = vunpack.c.h.b16 %v1218
        %v2481 = vunpack.c.l.b16 %v1219
        %v2482 = vunpack.c.h.b16 %v1219
        %v2483 = vunpack.c.l.b16 %v1220
        %v2484 = vunpack.c.h.b16 %v1220
        %v2485 = vunpack.c.l.b16 %v1221
        %v2486 = vunpack.c.h.b16 %v1221
        %v2487 = vunpack.c.l.b16 %v1222
        %v2488 = vunpack.c.h.b16 %v1222
        %v2489 = vunpack.c.l.b16 %v1223
        %v2490 = vunpack.c.h.b16 %v1223
        %v2491 = vunpack.c.l.b16 %v1224
        %v2492 = vunpack.c.h.b16 %v1224
        %v2493 = vunpack.c.l.b16 %v1225
        %v2494 = vunpack.c.h.b16 %v1225
        %v2495 = vunpack.c.l.b16 %v1226
        %v2496 = vunpack.c.h.b16 %v1226
        %v2497 = vunpack.c.l.b16 %v1227
        %v2498 = vunpack.c.h.b16 %v1227
        %v2499 = vunpack.c.l.b16 %v1228
        %v2500 = vunpack.c.h.b16 %v1228
        %v2501 = vunpack.c.l.b16 %v1229
        %v2502 = vunpack.c.h.b16 %v1229
        %v2503 = vunpack.c.l.b16 %v1230
        %v2504 = vunpack.c.h.b16 %v1230
        %v2505 = vunpack.c.l.b16 %v1231
        %v2506 = vunpack.c.h.b16 %v1231
        %v2507 = vunpack.c.l.b16 %v1232
        %v2508 = vunpack.c.h.b16 %v1232
        %v2509 = vunpack.c.l.b16 %v1233
        %v2510 = vunpack.c.h.b16 %v1233
        %v2511 = vunpack.c.l.b16 %v1234
        %v2512 = vunpack.c.h.b16 %v1234
        %v2513 = vunpack.c.l.b16 %v1235
        %v2514 = vunpack.c.h.b16 %v1235
        %v2515 = vunpack.c.l.b16 %v1236
        %v2516 = vunpack.c.h.b16 %v1236
        %v2517 = vunpack.c.l.b16 %v1237
        %v2518 = vunpack.c.h.b16 %v1237
        %v2519 = vunpack.c.l.b16 %v1238
        %v2520 = vunpack.c.h.b16 %v1238
        %v2521 = vunpack.c.l.b16 %v1239
        %v2522 = vunpack.c.h.b16 %v1239
        %v2523 = vunpack.c.l.b16 %v1240
        %v2524 = vunpack.c.h.b16 %v1240
        %v2525 = vunpack.c.l.b16 %v1241
        %v2526 = vunpack.c.h.b16 %v1241
        %v2527 = vunpack.c.l.b16 %v1242
        %v2528 = vunpack.c.h.b16 %v1242
        %v2529 = vunpack.c.l.b16 %v1243
        %v2530 = vunpack.c.h.b16 %v1243
        %v2531 = vunpack.c.l.b16 %v1244
        %v2532 = vunpack.c.h.b16 %v1244
        %v2533 = vunpack.c.l.b16 %v1245
        %v2534 = vunpack.c.h.b16 %v1245
        %v2535 = vunpack.c.l.b16 %v1246
        %v2536 = vunpack.c.h.b16 %v1246
        %v2537 = vunpack.c.l.b16 %v1247
        %v2538 = vunpack.c.h.b16 %v1247
        %v2539 = vunpack.c.l.b16 %v1248
        %v2540 = vunpack.c.h.b16 %v1248
        %v2541 = vunpack.c.l.b16 %v1249
        %v2542 = vunpack.c.h.b16 %v1249
        %v2543 = vunpack.c.l.b16 %v1250
        %v2544 = vunpack.c.h.b16 %v1250
        %v2545 = vunpack.c.l.b16 %v1251
        %v2546 = vunpack.c.h.b16 %v1251
        %v2547 = vunpack.c.l.b16 %v1252
        %v2548 = vunpack.c.h.b16 %v1252
        %v2549 = vunpack.c.l.b16 %v1253
        %v2550 = vunpack.c.h.b16 %v1253
        %v2551 = vunpack.c.l.b16 %v1254
        %v2552 = vunpack.c.h.b16 %v1254
        %v2553 = vunpack.c.l.b16 %v1255
        %v2554 = vunpack.c.h.b16 %v1255
        %v2555 = vunpack.c.l.b16 %v1256
        %v2556 = vunpack.c.h.b16 %v1256
        %v2557 = vunpack.c.l.b16 %v1257
        %v2558 = vunpack.c.h.b16 %v1257
        %v2559 = vunpack.c.l.b16 %v1258
        %v2560 = vunpack.c.h.b16 %v1258
        %v2561 = vunpack.c.l.b16 %v1259
        %v2562 = vunpack.c.h.b16 %v1259
        %v2563 = vunpack.c.l.b16 %v1260
        %v2564 = vunpack.c.h.b16 %v1260
        %v2565 = vunpack.c.l.b16 %v1261
        %v2566 = vunpack.c.h.b16 %v1261
        %v2567 = vunpack.c.l.b16 %v1262
        %v2568 = vunpack.c.h.b16 %v1262
        %v2569 = vunpack.c.l.b16 %v1263
        %v2570 = vunpack.c.h.b16 %v1263
        %v2571 = vunpack.c.l.b16 %v1264
        %v2572 = vunpack.c.h.b16 %v1264
        %v2573 = vunpack.c.l.b16 %v1265
        %v2574 = vunpack.c.h.b16 %v1265
        %v2575 = vunpack.c.l.b16 %v1266
        %v2576 = vunpack.c.h.b16 %v1266
        %v2577 = vunpack.c.l.b16 %v1267
        %v2578 = vunpack.c.h.b16 %v1267
        %v2579 = vunpack.c.l.b16 %v1268
        %v2580 = vunpack.c.h.b16 %v1268
        %v2581 = vunpack.c.l.b16 %v1269
        %v2582 = vunpack.c.h.b16 %v1269
        %v2583 = vunpack.c.l.b16 %v1270
        %v2584 = vunpack.c.h.b16 %v1270
        %v2585 = vunpack.c.l.b16 %v1271
        %v2586 = vunpack.c.h.b16 %v1271
        %v2587 = vunpack.c.l.b16 %v1272
        %v2588 = vunpack.c.h.b16 %v1272
        %v2589 = vunpack.c.l.b16 %v1273
        %v2590 = vunpack.c.h.b16 %v1273
        %v2591 = vunpack.c.l.b16 %v1274
        %v2592 = vunpack.c.h.b16 %v1274
        %v2593 = vunpack.c.l.b16 %v1275
        %v2594 = vunpack.c.h.b16 %v1275
        %v2595 = vunpack.c.l.b16 %v1276
        %v2596 = vunpack.c.h.b16 %v1276
        %v2597 = vunpack.c.l.b16 %v1277
        %v2598 = vunpack.c.h.b16 %v1277
        %v2599 = vunpack.c.l.b16 %v1278
        %v2600 = vunpack.c.h.b16 %v1278
        %v2601 = vunpack.c.l.b16 %v1279
        %v2602 = vunpack.c.h.b16 %v1279
        %v2603 = vunpack.c.l.b16 %v1280
        %v2604 = vunpack.c.h.b16 %v1280
        %v2605 = vunpack.c.l.b16 %v1281
        %v2606 = vunpack.c.h.b16 %v1281
        %v2607 = vunpack.c.l.b16 %v1282
        %v2608 = vunpack.c.h.b16 %v1282
        %v2609 = vunpack.c.l.b16 %v1283
        %v2610 = vunpack.c.h.b16 %v1283
        %v2611 = vunpack.c.l.b16 %v1284
        %v2612 = vunpack.c.h.b16 %v1284
        %v2613 = vunpack.c.l.b16 %v1285
        %v2614 = vunpack.c.h.b16 %v1285
        %v2615 = vunpack.c.l.b16 %v1286
        %v2616 = vunpack.c.h.b16 %v1286
        %v2617 = vunpack.c.l.b16 %v1287
        %v2618 = vunpack.c.h.b16 %v1287
        %v2619 = vunpack.c.l.b16 %v1288
        %v2620 = vunpack.c.h.b16 %v1288
        %v2621 = vunpack.c.l.b16 %v1289
        %v2622 = vunpack.c.h.b16 %v1289
        %v2623 = vunpack.c.l.b16 %v1290
        %v2624 = vunpack.c.h.b16 %v1290
        %v2625 = vunpack.c.l.b16 %v1291
        %v2626 = vunpack.c.h.b16 %v1291
        %v2627 = vunpack.c.l.b16 %v1292
        %v2628 = vunpack.c.h.b16 %v1292
        %v2629 = vunpack.c.l.b16 %v1293
        %v2630 = vunpack.c.h.b16 %v1293
        %v2631 = vunpack.c.l.b16 %v1294
        %v2632 = vunpack.c.h.b16 %v1294
        %v2633 = vunpack.c.l.b16 %v1295
        %v2634 = vunpack.c.h.b16 %v1295
        %v2635 = vunpack.c.l.b16 %v1296
        %v2636 = vunpack.c.h.b16 %v1296
        %v2637 = vunpack.c.l.b16 %v1297
        %v2638 = vunpack.c.h.b16 %v1297
        %v2639 = vunpack.c.l.b16 %v1298
        %v2640 = vunpack.c.h.b16 %v1298
        %v2641 = vunpack.c.l.b16 %v1299
        %v2642 = vunpack.c.h.b16 %v1299
        %v2643 = vunpack.c.l.b16 %v1300
        %v2644 = vunpack.c.h.b16 %v1300
        %v2645 = vunpack.c.l.b16 %v1301
        %v2646 = vunpack.c.h.b16 %v1301
        %v2647 = vunpack.c.l.b16 %v1302
        %v2648 = vunpack.c.h.b16 %v1302
        %v2649 = vunpack.c.l.b16 %v1303
        %v2650 = vunpack.c.h.b16 %v1303
        %v2651 = vunpack.c.l.b16 %v1304
        %v2652 = vunpack.c.h.b16 %v1304
        %v2653 = vunpack.c.l.b16 %v1305
        %v2654 = vunpack.c.h.b16 %v1305
        %v2655 = vunpack.c.l.b16 %v1306
        %v2656 = vunpack.c.h.b16 %v1306
        %v2657 = vunpack.c.l.b16 %v1307
        %v2658 = vunpack.c.h.b16 %v1307
        %v2659 = vunpack.c.l.b16 %v1308
        %v2660 = vunpack.c.h.b16 %v1308
        %v2661 = vunpack.c.l.b16 %v1309
        %v2662 = vunpack.c.h.b16 %v1309
        %v2663 = vunpack.c.l.b16 %v1310
        %v2664 = vunpack.c.h.b16 %v1310
        %v2665 = vunpack.c.l.b16 %v1311
        %v2666 = vunpack.c.h.b16 %v1311
        %v2667 = vunpack.c.l.b16 %v1312
        %v2668 = vunpack.c.h.b16 %v1312
        %v2669 = vunpack.c.l.b16 %v1313
        %v2670 = vunpack.c.h.b16 %v1313
        %v2671 = vunpack.c.l.b16 %v1314
        %v2672 = vunpack.c.h.b16 %v1314
        %v2673 = vunpack.c.l.b16 %v1315
        %v2674 = vunpack.c.h.b16 %v1315
        %v2675 = vunpack.c.l.b16 %v1316
        %v2676 = vunpack.c.h.b16 %v1316
        %v2677 = vunpack.c.l.b16 %v1317
        %v2678 = vunpack.c.h.b16 %v1317
        %v2679 = vunpack.c.l.b16 %v1318
        %v2680 = vunpack.c.h.b16 %v1318
        %v2681 = vunpack.c.l.b16 %v1319
        %v2682 = vunpack.c.h.b16 %v1319
        %v2683 = vunpack.c.l.b16 %v1320
        %v2684 = vunpack.c.h.b16 %v1320
        %v2685 = vunpack.c.l.b16 %v1321
        %v2686 = vunpack.c.h.b16 %v1321
        %v2687 = vunpack.c.l.b16 %v1322
        %v2688 = vunpack.c.h.b16 %v1322
        %v2689 = vunpack.c.l.b16 %v1323
        %v2690 = vunpack.c.h.b16 %v1323
        %v2691 = vunpack.c.l.b16 %v1324
        %v2692 = vunpack.c.h.b16 %v1324
        %v2693 = vunpack.c.l.b16 %v1325
        %v2694 = vunpack.c.h.b16 %v1325
        %v2695 = vunpack.c.l.b16 %v1326
        %v2696 = vunpack.c.h.b16 %v1326
        %v2697 = vunpack.c.l.b16 %v1327
        %v2698 = vunpack.c.h.b16 %v1327
        %v2699 = vunpack.c.l.b16 %v1328
        %v2700 = vunpack.c.h.b16 %v1328
        %v2701 = vunpack.c.l.b16 %v1329
        %v2702 = vunpack.c.h.b16 %v1329
        %v2703 = vunpack.c.l.b16 %v1330
        %v2704 = vunpack.c.h.b16 %v1330
        %v2705 = vunpack.c.l.b16 %v1331
        %v2706 = vunpack.c.h.b16 %v1331
        %v2707 = vunpack.c.l.b16 %v1332
        %v2708 = vunpack.c.h.b16 %v1332
        %v2709 = vunpack.c.l.b16 %v1333
        %v2710 = vunpack.c.h.b16 %v1333
        %v2711 = vunpack.c.l.b16 %v1334
        %v2712 = vunpack.c.h.b16 %v1334
        %v2713 = vunpack.c.l.b16 %v1335
        %v2714 = vunpack.c.h.b16 %v1335
        %v2715 = vunpack.c.l.b16 %v1336
        %v2716 = vunpack.c.h.b16 %v1336
        %v2717 = vunpack.c.l.b16 %v1337
        %v2718 = vunpack.c.h.b16 %v1337
        %v2719 = vunpack.c.l.b16 %v1338
        %v2720 = vunpack.c.h.b16 %v1338
        %v2721 = vunpack.c.l.b16 %v1339
        %v2722 = vunpack.c.h.b16 %v1339
        %v2723 = vunpack.c.l.b16 %v1340
        %v2724 = vunpack.c.h.b16 %v1340
        %v2725 = vunpack.c.l.b16 %v1341
        %v2726 = vunpack.c.h.b16 %v1341
        %v2727 = vunpack.c.l.b16 %v1342
        %v2728 = vunpack.c.h.b16 %v1342
        %v2729 = vunpack.c.l.b16 %v1343
        %v2730 = vunpack.c.h.b16 %v1343
        %v2731 = vunpack.c.l.b16 %v1344
        %v2732 = vunpack.c.h.b16 %v1344
        %v2733 = vunpack.c.l.b16 %v1345
        %v2734 = vunpack.c.h.b16 %v1345
        %v2735 = vunpack.c.l.b16 %v1346
        %v2736 = vunpack.c.h.b16 %v1346
        %v2737 = vunpack.c.l.b16 %v1347
        %v2738 = vunpack.c.h.b16 %v1347
        %v2739 = vunpack.c.l.b16 %v1348
        %v2740 = vunpack.c.h.b16 %v1348
        %v2741 = vunpack.c.l.b16 %v1349
        %v2742 = vunpack.c.h.b16 %v1349
        %v2743 = vunpack.c.l.b16 %v1350
        %v2744 = vunpack.c.h.b16 %v1350
        %v2745 = vunpack.c.l.b16 %v1351
        %v2746 = vunpack.c.h.b16 %v1351
        %v2747 = vunpack.c.l.b16 %v1352
        %v2748 = vunpack.c.h.b16 %v1352
        %v2749 = vunpack.c.l.b16 %v1353
        %v2750 = vunpack.c.h.b16 %v1353
        %v2751 = vunpack.c.l.b16 %v1354
        %v2752 = vunpack.c.h.b16 %v1354
        %v2753 = vunpack.c.l.b16 %v1355
        %v2754 = vunpack.c.h.b16 %v1355
        %v2755 = vunpack.c.l.b16 %v1356
        %v2756 = vunpack.c.h.b16 %v1356
        %v2757 = vunpack.c.l.b16 %v1357
        %v2758 = vunpack.c.h.b16 %v1357
        %v2759 = vunpack.c.l.b16 %v1358
        %v2760 = vunpack.c.h.b16 %v1358
        %v2761 = vunpack.c.l.b16 %v1359
        %v2762 = vunpack.c.h.b16 %v1359
        %v2763 = vunpack.c.l.b16 %v1360
        %v2764 = vunpack.c.h.b16 %v1360
        %v2765 = vunpack.c.l.b16 %v1361
        %v2766 = vunpack.c.h.b16 %v1361
        %v2767 = vunpack.c.l.b16 %v1362
        %v2768 = vunpack.c.h.b16 %v1362
        %v2769 = vunpack.c.l.b16 %v1363
        %v2770 = vunpack.c.h.b16 %v1363
        %v2771 = vunpack.c.l.b16 %v1364
        %v2772 = vunpack.c.h.b16 %v1364
        %v2773 = vunpack.c.l.b16 %v1365
        %v2774 = vunpack.c.h.b16 %v1365
        %v2775 = vunpack.c.l.b16 %v1366
        %v2776 = vunpack.c.h.b16 %v1366
        %v2777 = vunpack.c.l.b16 %v1367
        %v2778 = vunpack.c.h.b16 %v1367
        %v2779 = vunpack.c.l.b16 %v1368
        %v2780 = vunpack.c.h.b16 %v1368
        %v2781 = vunpack.c.l.b16 %v1369
        %v2782 = vunpack.c.h.b16 %v1369
        %v2783 = vunpack.c.l.b16 %v1370
        %v2784 = vunpack.c.h.b16 %v1370
        %v2785 = vunpack.c.l.b16 %v1371
        %v2786 = vunpack.c.h.b16 %v1371
        %v2787 = vunpack.c.l.b16 %v1372
        %v2788 = vunpack.c.h.b16 %v1372
        %v2789 = vunpack.c.l.b16 %v1373
        %v2790 = vunpack.c.h.b16 %v1373
        %v2791 = vunpack.c.l.b16 %v1374
        %v2792 = vunpack.c.h.b16 %v1374
        %v2793 = vunpack.c.l.b16 %v1375
        %v2794 = vunpack.c.h.b16 %v1375
        %v2795 = vunpack.c.l.b16 %v1376
        %v2796 = vunpack.c.h.b16 %v1376
        %v2797 = vunpack.c.l.b16 %v1377
        %v2798 = vunpack.c.h.b16 %v1377
        %v2799 = vunpack.c.l.b16 %v1378
        %v2800 = vunpack.c.h.b16 %v1378
        %v2801 = vunpack.c.l.b16 %v1379
        %v2802 = vunpack.c.h.b16 %v1379
        %v2803 = vunpack.c.l.b16 %v1380
        %v2804 = vunpack.c.h.b16 %v1380
        %v2805 = vunpack.c.l.b16 %v1381
        %v2806 = vunpack.c.h.b16 %v1381
        %v2807 = vunpack.c.l.b16 %v1382
        %v2808 = vunpack.c.h.b16 %v1382
        %v2809 = vunpack.c.l.b16 %v1383
        %v2810 = vunpack.c.h.b16 %v1383
        %v2811 = vunpack.c.l.b16 %v1384
        %v2812 = vunpack.c.h.b16 %v1384
        %v2813 = vunpack.c.l.b16 %v1385
        %v2814 = vunpack.c.h.b16 %v1385
        %v2815 = vunpack.c.l.b16 %v1386
        %v2816 = vunpack.c.h.b16 %v1386
        %v2817 = vunpack.c.l.b16 %v1387
        %v2818 = vunpack.c.h.b16 %v1387
        %v2819 = vunpack.c.l.b16 %v1388
        %v2820 = vunpack.c.h.b16 %v1388
        %v2821 = vunpack.c.l.b16 %v1389
        %v2822 = vunpack.c.h.b16 %v1389
        %v2823 = vunpack.c.l.b16 %v1390
        %v2824 = vunpack.c.h.b16 %v1390
        %v2825 = vunpack.c.l.b16 %v1391
        %v2826 = vunpack.c.h.b16 %v1391
        %v2827 = vunpack.c.l.b16 %v1392
        %v2828 = vunpack.c.h.b16 %v1392
        %v2829 = vunpack.c.l.b16 %v1393
        %v2830 = vunpack.c.h.b16 %v1393
        %v2831 = vunpack.c.l.b16 %v1394
        %v2832 = vunpack.c.h.b16 %v1394
        %v2833 = vunpack.c.l.b16 %v1395
        %v2834 = vunpack.c.h.b16 %v1395
        %v2835 = vunpack.c.l.b16 %v1396
        %v2836 = vunpack.c.h.b16 %v1396
        %v2837 = vunpack.c.l.b16 %v1397
        %v2838 = vunpack.c.h.b16 %v1397
        %v2839 = vunpack.c.l.b16 %v1398
        %v2840 = vunpack.c.h.b16 %v1398
        %v2841 = vunpack.c.l.b16 %v1399
        %v2842 = vunpack.c.h.b16 %v1399
        %v2843 = vunpack.c.l.b16 %v1400
        %v2844 = vunpack.c.h.b16 %v1400
        %v2845 = vunpack.c.l.b16 %v1401
        %v2846 = vunpack.c.h.b16 %v1401
        %v2847 = vunpack.c.l.b16 %v1402
        %v2848 = vunpack.c.h.b16 %v1402
        %v2849 = vunpack.c.l.b16 %v1403
        %v2850 = vunpack.c.h.b16 %v1403
        %v2851 = vunpack.c.l.b16 %v1404
        %v2852 = vunpack.c.h.b16 %v1404
        %v2853 = vunpack.c.l.b16 %v1405
        %v2854 = vunpack.c.h.b16 %v1405
        %v2855 = vunpack.c.l.b16 %v1406
        %v2856 = vunpack.c.h.b16 %v1406
        %v2857 = vunpack.c.l.b16 %v1407
        %v2858 = vunpack.c.h.b16 %v1407
        %v2859 = vunpack.c.l.b16 %v1408
        %v2860 = vunpack.c.h.b16 %v1408
        %v2861 = vunpack.c.l.b16 %v1409
        %v2862 = vunpack.c.h.b16 %v1409
        %v2863 = vunpack.c.l.b16 %v1410
        %v2864 = vunpack.c.h.b16 %v1410
        %v2865 = vunpack.c.l.b16 %v1411
        %v2866 = vunpack.c.h.b16 %v1411
        %v2867 = vunpack.c.l.b16 %v1412
        %v2868 = vunpack.c.h.b16 %v1412
        %v2869 = vunpack.c.l.b16 %v1413
        %v2870 = vunpack.c.h.b16 %v1413
        %v2871 = vunpack.c.l.b16 %v1414
        %v2872 = vunpack.c.h.b16 %v1414
        %v2873 = vunpack.c.l.b16 %v1415
        %v2874 = vunpack.c.h.b16 %v1415
        %v2875 = vunpack.c.l.b16 %v1416
        %v2876 = vunpack.c.h.b16 %v1416
        %v2877 = vunpack.c.l.b16 %v1417
        %v2878 = vunpack.c.h.b16 %v1417
        %v2879 = vunpack.c.l.b16 %v1418
        %v2880 = vunpack.c.h.b16 %v1418
        %v2881 = vunpack.c.l.b16 %v1419
        %v2882 = vunpack.c.h.b16 %v1419
        %v2883 = vunpack.c.l.b16 %v1420
        %v2884 = vunpack.c.h.b16 %v1420
        %v2885 = vunpack.c.l.b16 %v1421
        %v2886 = vunpack.c.h.b16 %v1421
        %v2887 = vunpack.c.l.b16 %v1422
        %v2888 = vunpack.c.h.b16 %v1422
        %v2889 = vunpack.c.l.b16 %v1423
        %v2890 = vunpack.c.h.b16 %v1423
        %v2891 = vunpack.c.l.b16 %v1424
        %v2892 = vunpack.c.h.b16 %v1424
        %v2893 = vunpack.c.l.b16 %v1425
        %v2894 = vunpack.c.h.b16 %v1425
        %v2895 = vunpack.c.l.b16 %v1426
        %v2896 = vunpack.c.h.b16 %v1426
        %v2897 = vunpack.c.l.b16 %v1427
        %v2898 = vunpack.c.h.b16 %v1427
        %v2899 = vunpack.c.l.b16 %v1428
        %v2900 = vunpack.c.h.b16 %v1428
        %v2901 = vunpack.c.l.b16 %v1429
        %v2902 = vunpack.c.h.b16 %v1429
        %v2903 = vunpack.c.l.b16 %v1430
        %v2904 = vunpack.c.h.b16 %v1430
        %v2905 = vunpack.c.l.b16 %v1431
        %v2906 = vunpack.c.h.b16 %v1431
        %v2907 = vunpack.c.l.b16 %v1432
        %v2908 = vunpack.c.h.b16 %v1432
        %v2909 = vunpack.c.l.b16 %v1433
        %v2910 = vunpack.c.h.b16 %v1433
        %v2911 = vunpack.c.l.b16 %v1434
        %v2912 = vunpack.c.h.b16 %v1434
        %v2913 = vunpack.c.l.b16 %v1435
        %v2914 = vunpack.c.h.b16 %v1435
        %v2915 = vunpack.c.l.b16 %v1436
        %v2916 = vunpack.c.h.b16 %v1436
        %v2917 = vunpack.c.l.b16 %v1437
        %v2918 = vunpack.c.h.b16 %v1437
        %v2919 = vunpack.c.l.b16 %v1438
        %v2920 = vunpack.c.h.b16 %v1438
        %v2921 = vunpack.c.l.b16 %v1439
        %v2922 = vunpack.c.h.b16 %v1439
        %v2923 = vunpack.c.l.b16 %v1440
        %v2924 = vunpack.c.h.b16 %v1440
        %v2925 = vunpack.c.l.b16 %v1441
        %v2926 = vunpack.c.h.b16 %v1441
        %v2927 = vunpack.c.l.b16 %v1442
        %v2928 = vunpack.c.h.b16 %v1442
        %v2929 = vunpack.c.l.b16 %v1443
        %v2930 = vunpack.c.h.b16 %v1443
        %v2931 = vunpack.c.l.b16 %v1444
        %v2932 = vunpack.c.h.b16 %v1444
        %v2933 = vunpack.c.l.b16 %v1445
        %v2934 = vunpack.c.h.b16 %v1445
        %v2935 = vunpack.c.l.b16 %v1446
        %v2936 = vunpack.c.h.b16 %v1446
        %v2937 = vunpack.c.l.b16 %v1447
        %v2938 = vunpack.c.h.b16 %v1447
        %v2939 = vunpack.c.l.b16 %v1448
        %v2940 = vunpack.c.h.b16 %v1448
        %v2941 = vunpack.c.l.b16 %v1449
        %v2942 = vunpack.c.h.b16 %v1449
        %v2943 = vunpack.c.l.b16 %v1450
        %v2944 = vunpack.c.h.b16 %v1450
        %v2945 = vunpack.c.l.b16 %v1451
        %v2946 = vunpack.c.h.b16 %v1451
        %v2947 = vunpack.c.l.b16 %v1452
        %v2948 = vunpack.c.h.b16 %v1452
        %v2949 = vunpack.c.l.b16 %v1453
        %v2950 = vunpack.c.h.b16 %v1453
        %v2951 = vunpack.c.l.b16 %v1454
        %v2952 = vunpack.c.h.b16 %v1454
        %v2953 = vunpack.c.l.b16 %v1455
        %v2954 = vunpack.c.h.b16 %v1455
        %v2955 = vunpack.c.l.b16 %v1456
        %v2956 = vunpack.c.h.b16 %v1456
        %v2957 = vunpack.c.l.b16 %v1457
        %v2958 = vunpack.c.h.b16 %v1457
        %v2959 = vunpack.c.l.b16 %v1458
        %v2960 = vunpack.c.h.b16 %v1458
        %v2961 = vunpack.c.l.b16 %v1459
        %v2962 = vunpack.c.h.b16 %v1459
        %v2963 = vunpack.c.l.b16 %v1460
        %v2964 = vunpack.c.h.b16 %v1460
        %v2965 = vunpack.c.l.b16 %v1461
        %v2966 = vunpack.c.h.b16 %v1461
        %v2967 = vunpack.c.l.b16 %v1462
        %v2968 = vunpack.c.h.b16 %v1462
        %v2969 = vunpack.c.l.b16 %v1463
        %v2970 = vunpack.c.h.b16 %v1463
        %v2971 = vunpack.c.l.b16 %v1464
        %v2972 = vunpack.c.h.b16 %v1464
        %v2973 = vunpack.c.l.b16 %v1465
        %v2974 = vunpack.c.h.b16 %v1465
        %v2975 = vunpack.c.l.b16 %v1466
        %v2976 = vunpack.c.h.b16 %v1466
        %v2977 = vunpack.c.l.b16 %v1467
        %v2978 = vunpack.c.h.b16 %v1467
        %v2979 = vunpack.c.l.b16 %v1468
        %v2980 = vunpack.c.h.b16 %v1468
        %v2981 = vunpack.c.l.b16 %v1469
        %v2982 = vunpack.c.h.b16 %v1469
        %v2983 = vunpack.c.l.b16 %v1470
        %v2984 = vunpack.c.h.b16 %v1470
        %v2985 = vunpack.c.l.b16 %v1471
        %v2986 = vunpack.c.h.b16 %v1471
        %v2987 = vunpack.c.l.b16 %v1472
        %v2988 = vunpack.c.h.b16 %v1472
        %v2989 = vunpack.c.l.b16 %v1473
        %v2990 = vunpack.c.h.b16 %v1473
        %v2991 = vunpack.c.l.b16 %v1474
        %v2992 = vunpack.c.h.b16 %v1474
        %v2993 = vunpack.c.l.b16 %v1475
        %v2994 = vunpack.c.h.b16 %v1475
        %v2995 = vunpack.c.l.b16 %v1476
        %v2996 = vunpack.c.h.b16 %v1476
        %v2997 = vunpack.c.l.b16 %v1477
        %v2998 = vunpack.c.h.b16 %v1477
        %v2999 = vunpack.c.l.b16 %v1478
        %v3000 = vunpack.c.h.b16 %v1478
        %v3001 = vunpack.c.l.b16 %v1479
        %v3002 = vunpack.c.h.b16 %v1479
        %v3003 = vunpack.c.l.b16 %v1480
        %v3004 = vunpack.c.h.b16 %v1480
        %v3005 = vunpack.c.l.b16 %v1481
        %v3006 = vunpack.c.h.b16 %v1481
        %v3007 = vunpack.c.l.b16 %v1482
        %v3008 = vunpack.c.h.b16 %v1482
        %v3009 = vunpack.c.l.b16 %v1483
        %v3010 = vunpack.c.h.b16 %v1483
        %v3011 = vunpack.c.l.b16 %v1484
        %v3012 = vunpack.c.h.b16 %v1484
        %v3013 = vunpack.c.l.b16 %v1485
        %v3014 = vunpack.c.h.b16 %v1485
        %v3015 = vunpack.c.l.b16 %v1486
        %v3016 = vunpack.c.h.b16 %v1486
        %v3017 = vunpack.c.l.b16 %v1487
        %v3018 = vunpack.c.h.b16 %v1487
        %v3019 = vunpack.c.l.b16 %v1488
        %v3020 = vunpack.c.h.b16 %v1488
        %v3021 = vunpack.c.l.b16 %v1489
        %v3022 = vunpack.c.h.b16 %v1489
        %v3023 = vunpack.c.l.b16 %v1490
        %v3024 = vunpack.c.h.b16 %v1490
        %v3025 = vunpack.c.l.b16 %v1491
        %v3026 = vunpack.c.h.b16 %v1491
        %v3027 = vunpack.c.l.b16 %v1492
        %v3028 = vunpack.c.h.b16 %v1492
        %v3029 = vunpack.c.l.b16 %v1493
        %v3030 = vunpack.c.h.b16 %v1493
        %v3031 = vunpack.c.l.b16 %v1494
        %v3032 = vunpack.c.h.b16 %v1494
        %v3033 = vunpack.c.l.b16 %v1495
        %v3034 = vunpack.c.h.b16 %v1495
        %v3035 = vunpack.c.l.b16 %v1496
        %v3036 = vunpack.c.h.b16 %v1496
        %v3037 = vunpack.c.l.b16 %v1497
        %v3038 = vunpack.c.h.b16 %v1497
        %v3039 = vunpack.c.l.b16 %v1498
        %v3040 = vunpack.c.h.b16 %v1498
        %v3041 = vunpack.c.l.b16 %v1499
        %v3042 = vunpack.c.h.b16 %v1499
        %v3043 = vunpack.c.l.b16 %v1500
        %v3044 = vunpack.c.h.b16 %v1500
        %v3045 = vunpack.c.l.b16 %v1501
        %v3046 = vunpack.c.h.b16 %v1501
        %v3047 = vunpack.c.l.b16 %v1502
        %v3048 = vunpack.c.h.b16 %v1502
        %v3049 = vunpack.c.l.b16 %v1503
        %v3050 = vunpack.c.h.b16 %v1503
        %v3051 = vunpack.c.l.b16 %v1504
        %v3052 = vunpack.c.h.b16 %v1504
        %v3053 = vunpack.c.l.b16 %v1505
        %v3054 = vunpack.c.h.b16 %v1505
        %v3055 = vunpack.c.l.b16 %v1506
        %v3056 = vunpack.c.h.b16 %v1506
        %v3057 = vunpack.c.l.b16 %v1507
        %v3058 = vunpack.c.h.b16 %v1507
        %v3059 = vunpack.c.l.b16 %v1508
        %v3060 = vunpack.c.h.b16 %v1508
        %v3061 = vunpack.c.l.b16 %v1509
        %v3062 = vunpack.c.h.b16 %v1509
        %v3063 = vunpack.c.l.b16 %v1510
        %v3064 = vunpack.c.h.b16 %v1510
        %v3065 = vunpack.c.l.b16 %v1511
        %v3066 = vunpack.c.h.b16 %v1511
        %v3067 = vunpack.c.l.b16 %v1512
        %v3068 = vunpack.c.h.b16 %v1512
        %v3069 = vunpack.c.l.b16 %v1513
        %v3070 = vunpack.c.h.b16 %v1513
        %v3071 = vunpack.c.l.b16 %v1514
        %v3072 = vunpack.c.h.b16 %v1514
        %v3073 = vunpack.c.l.b16 %v1515
        %v3074 = vunpack.c.h.b16 %v1515
        %v3075 = vunpack.c.l.b16 %v1516
        %v3076 = vunpack.c.h.b16 %v1516
        %v3077 = vunpack.c.l.b16 %v1517
        %v3078 = vunpack.c.h.b16 %v1517
        %v3079 = vunpack.c.l.b16 %v1518
        %v3080 = vunpack.c.h.b16 %v1518
        %v3081 = vunpack.c.l.b16 %v1519
        %v3082 = vunpack.c.h.b16 %v1519
        %v3083 = vunpack.c.l.b16 %v1520
        %v3084 = vunpack.c.h.b16 %v1520
        %v3085 = vunpack.c.l.b16 %v1521
        %v3086 = vunpack.c.h.b16 %v1521
        %v3087 = vunpack.c.l.b16 %v1522
        %v3088 = vunpack.c.h.b16 %v1522
        %v3089 = vunpack.c.l.b16 %v1523
        %v3090 = vunpack.c.h.b16 %v1523
        %v3091 = vunpack.c.l.b16 %v1524
        %v3092 = vunpack.c.h.b16 %v1524
        %v3093 = vunpack.c.l.b16 %v1525
        %v3094 = vunpack.c.h.b16 %v1525
        %v3095 = vunpack.c.l.b16 %v1526
        %v3096 = vunpack.c.h.b16 %v1526
        %v3097 = vunpack.c.l.b16 %v1527
        %v3098 = vunpack.c.h.b16 %v1527
        %v3099 = vunpack.c.l.b16 %v1528
        %v3100 = vunpack.c.h.b16 %v1528
        %v3101 = vunpack.c.l.b16 %v1529
        %v3102 = vunpack.c.h.b16 %v1529
        %v3103 = vunpack.c.l.b16 %v1530
        %v3104 = vunpack.c.h.b16 %v1530
        %v3105 = vunpack.c.l.b16 %v1531
        %v3106 = vunpack.c.h.b16 %v1531
        %v3107 = vunpack.c.l.b16 %v1532
        %v3108 = vunpack.c.h.b16 %v1532
        %v3109 = vunpack.c.l.b16 %v1533
        %v3110 = vunpack.c.h.b16 %v1533
        %v3111 = vunpack.c.l.b16 %v1534
        %v3112 = vunpack.c.h.b16 %v1534
        %v3113 = vpack.c.b16 %v2097, %v2089
        %v3114 = vpack.c.b16 %v2098, %v2090
        %v3115 = vpack.c.b16 %v2099, %v2091
        %v3116 = vpack.c.b16 %v2100, %v2092
        %v3117 = vpack.c.b16 %v2101, %v2093
        %v3118 = vpack.c.b16 %v2102, %v2094
        %v3119 = vpack.c.b16 %v2103, %v2095
        %v3120 = vpack.c.b16 %v2104, %v2096
        %v3121 = vpack.c.b16 %v2113, %v2105
        %v3122 = vpack.c.b16 %v2114, %v2106
        %v3123 = vpack.c.b16 %v2115, %v2107
        %v3124 = vpack.c.b16 %v2116, %v2108
        %v3125 = vpack.c.b16 %v2117, %v2109
        %v3126 = vpack.c.b16 %v2118, %v2110
        %v3127 = vpack.c.b16 %v2119, %v2111
        %v3128 = vpack.c.b16 %v2120, %v2112
        %v3129 = vpack.c.b16 %v2129, %v2121
        %v3130 = vpack.c.b16 %v2130, %v2122
        %v3131 = vpack.c.b16 %v2131, %v2123
        %v3132 = vpack.c.b16 %v2132, %v2124
        %v3133 = vpack.c.b16 %v2133, %v2125
        %v3134 = vpack.c.b16 %v2134, %v2126
        %v3135 = vpack.c.b16 %v2135, %v2127
        %v3136 = vpack.c.b16 %v2136, %v2128
        %v3137 = vpack.c.b16 %v2145, %v2137
        %v3138 = vpack.c.b16 %v2146, %v2138
        %v3139 = vpack.c.b16 %v2147, %v2139
        %v3140 = vpack.c.b16 %v2148, %v2140
        %v3141 = vpack.c.b16 %v2149, %v2141
        %v3142 = vpack.c.b16 %v2150, %v2142
        %v3143 = vpack.c.b16 %v2151, %v2143
        %v3144 = vpack.c.b16 %v2152, %v2144
        %v3145 = vpack.c.b16 %v2161, %v2153
        %v3146 = vpack.c.b16 %v2162, %v2154
        %v3147 = vpack.c.b16 %v2163, %v2155
        %v3148 = vpack.c.b16 %v2164, %v2156
        %v3149 = vpack.c.b16 %v2165, %v2157
        %v3150 = vpack.c.b16 %v2166, %v2158
        %v3151 = vpack.c.b16 %v2167, %v2159
        %v3152 = vpack.c.b16 %v2168, %v2160
        %v3153 = vpack.c.b16 %v2177, %v2169
        %v3154 = vpack.c.b16 %v2178, %v2170
        %v3155 = vpack.c.b16 %v2179, %v2171
        %v3156 = vpack.c.b16 %v2180, %v2172
        %v3157 = vpack.c.b16 %v2181, %v2173
        %v3158 = vpack.c.b16 %v2182, %v2174
        %v3159 = vpack.c.b16 %v2183, %v2175
        %v3160 = vpack.c.b16 %v2184, %v2176
        %v3161 = vpack.c.b16 %v2193, %v2185
        %v3162 = vpack.c.b16 %v2194, %v2186
        %v3163 = vpack.c.b16 %v2195, %v2187
        %v3164 = vpack.c.b16 %v2196, %v2188
        %v3165 = vpack.c.b16 %v2197, %v2189
        %v3166 = vpack.c.b16 %v2198, %v2190
        %v3167 = vpack.c.b16 %v2199, %v2191
        %v3168 = vpack.c.b16 %v2200, %v2192
        %v3169 = vpack.c.b16 %v2209, %v2201
        %v3170 = vpack.c.b16 %v2210, %v2202
        %v3171 = vpack.c.b16 %v2211, %v2203
        %v3172 = vpack.c.b16 %v2212, %v2204
        %v3173 = vpack.c.b16 %v2213, %v2205
        %v3174 = vpack.c.b16 %v2214, %v2206
        %v3175 = vpack.c.b16 %v2215, %v2207
        %v3176 = vpack.c.b16 %v2216, %v2208
        %v3177 = vpack.c.b16 %v2225, %v2217
        %v3178 = vpack.c.b16 %v2226, %v2218
        %v3179 = vpack.c.b16 %v2227, %v2219
        %v3180 = vpack.c.b16 %v2228, %v2220
        %v3181 = vpack.c.b16 %v2229, %v2221
        %v3182 = vpack.c.b16 %v2230, %v2222
        %v3183 = vpack.c.b16 %v2231, %v2223
        %v3184 = vpack.c.b16 %v2232, %v2224
        %v3185 = vpack.c.b16 %v2241, %v2233
        %v3186 = vpack.c.b16 %v2242, %v2234
        %v3187 = vpack.c.b16 %v2243, %v2235
        %v3188 = vpack.c.b16 %v2244, %v2236
        %v3189 = vpack.c.b16 %v2245, %v2237
        %v3190 = vpack.c.b16 %v2246, %v2238
        %v3191 = vpack.c.b16 %v2247, %v2239
        %v3192 = vpack.c.b16 %v2248, %v2240
        %v3193 = vpack.c.b16 %v2257, %v2249
        %v3194 = vpack.c.b16 %v2258, %v2250
        %v3195 = vpack.c.b16 %v2259, %v2251
        %v3196 = vpack.c.b16 %v2260, %v2252
        %v3197 = vpack.c.b16 %v2261, %v2253
        %v3198 = vpack.c.b16 %v2262, %v2254
        %v3199 = vpack.c.b16 %v2263, %v2255
        %v3200 = vpack.c.b16 %v2264, %v2256
        %v3201 = vpack.c.b16 %v2273, %v2265
        %v3202 = vpack.c.b16 %v2274, %v2266
        %v3203 = vpack.c.b16 %v2275, %v2267
        %v3204 = vpack.c.b16 %v2276, %v2268
        %v3205 = vpack.c.b16 %v2277, %v2269
        %v3206 = vpack.c.b16 %v2278, %v2270
        %v3207 = vpack.c.b16 %v2279, %v2271
        %v3208 = vpack.c.b16 %v2280, %v2272
        %v3209 = vpack.c.b16 %v2289, %v2281
        %v3210 = vpack.c.b16 %v2290, %v2282
        %v3211 = vpack.c.b16 %v2291, %v2283
        %v3212 = vpack.c.b16 %v2292, %v2284
        %v3213 = vpack.c.b16 %v2293, %v2285
        %v3214 = vpack.c.b16 %v2294, %v2286
        %v3215 = vpack.c.b16 %v2295, %v2287
        %v3216 = vpack.c.b16 %v2296, %v2288
        %v3217 = vpack.c.b16 %v2305, %v2297
        %v3218 = vpack.c.b16 %v2306, %v2298
        %v3219 = vpack.c.b16 %v2307, %v2299
        %v3220 = vpack.c.b16 %v2308, %v2300
        %v3221 = vpack.c.b16 %v2309, %v2301
        %v3222 = vpack.c.b16 %v2310, %v2302
        %v3223 = vpack.c.b16 %v2311, %v2303
        %v3224 = vpack.c.b16 %v2312, %v2304
        %v3225 = vpack.c.b16 %v2321, %v2313
        %v3226 = vpack.c.b16 %v2322, %v2314
        %v3227 = vpack.c.b16 %v2323, %v2315
        %v3228 = vpack.c.b16 %v2324, %v2316
        %v3229 = vpack.c.b16 %v2325, %v2317
        %v3230 = vpack.c.b16 %v2326, %v2318
        %v3231 = vpack.c.b16 %v2327, %v2319
        %v3232 = vpack.c.b16 %v2328, %v2320
        %v3233 = vpack.c.b16 %v2337, %v2329
        %v3234 = vpack.c.b16 %v2338, %v2330
        %v3235 = vpack.c.b16 %v2339, %v2331
        %v3236 = vpack.c.b16 %v2340, %v2332
        %v3237 = vpack.c.b16 %v2341, %v2333
        %v3238 = vpack.c.b16 %v2342, %v2334
        %v3239 = vpack.c.b16 %v2343, %v2335
        %v3240 = vpack.c.b16 %v2344, %v2336
        %v3241 = vpack.c.b16 %v2353, %v2345
        %v3242 = vpack.c.b16 %v2354, %v2346
        %v3243 = vpack.c.b16 %v2355, %v2347
        %v3244 = vpack.c.b16 %v2356, %v2348
        %v3245 = vpack.c.b16 %v2357, %v2349
        %v3246 = vpack.c.b16 %v2358, %v2350
        %v3247 = vpack.c.b16 %v2359, %v2351
        %v3248 = vpack.c.b16 %v2360, %v2352
        %v3249 = vpack.c.b16 %v2369, %v2361
        %v3250 = vpack.c.b16 %v2370, %v2362
        %v3251 = vpack.c.b16 %v2371, %v2363
        %v3252 = vpack.c.b16 %v2372, %v2364
        %v3253 = vpack.c.b16 %v2373, %v2365
        %v3254 = vpack.c.b16 %v2374, %v2366
        %v3255 = vpack.c.b16 %v2375, %v2367
        %v3256 = vpack.c.b16 %v2376, %v2368
        %v3257 = vpack.c.b16 %v2385, %v2377
        %v3258 = vpack.c.b16 %v2386, %v2378
        %v3259 = vpack.c.b16 %v2387, %v2379
        %v3260 = vpack.c.b16 %v2388, %v2380
        %v3261 = vpack.c.b16 %v2389, %v2381
        %v3262 = vpack.c.b16 %v2390, %v2382
        %v3263 = vpack.c.b16 %v2391, %v2383
        %v3264 = vpack.c.b16 %v2392, %v2384
        %v3265 = vpack.c.b16 %v2401, %v2393
        %v3266 = vpack.c.b16 %v2402, %v2394
        %v3267 = vpack.c.b16 %v2403, %v2395
        %v3268 = vpack.c.b16 %v2404, %v2396
        %v3269 = vpack.c.b16 %v2405, %v2397
        %v3270 = vpack.c.b16 %v2406, %v2398
        %v3271 = vpack.c.b16 %v2407, %v2399
        %v3272 = vpack.c.b16 %v2408, %v2400
        %v3273 = vpack.c.b16 %v2417, %v2409
        %v3274 = vpack.c.b16 %v2418, %v2410
        %v3275 = vpack.c.b16 %v2419, %v2411
        %v3276 = vpack.c.b16 %v2420, %v2412
        %v3277 = vpack.c.b16 %v2421, %v2413
        %v3278 = vpack.c.b16 %v2422, %v2414
        %v3279 = vpack.c.b16 %v2423, %v2415
        %v3280 = vpack.c.b16 %v2424, %v2416
        %v3281 = vpack.c.b16 %v2433, %v2425
        %v3282 = vpack.c.b16 %v2434, %v2426
        %v3283 = vpack.c.b16 %v2435, %v2427
        %v3284 = vpack.c.b16 %v2436, %v2428
        %v3285 = vpack.c.b16 %v2437, %v2429
        %v3286 = vpack.c.b16 %v2438, %v2430
        %v3287 = vpack.c.b16 %v2439, %v2431
        %v3288 = vpack.c.b16 %v2440, %v2432
        %v3289 = vpack.c.b16 %v2449, %v2441
        %v3290 = vpack.c.b16 %v2450, %v2442
        %v3291 = vpack.c.b16 %v2451, %v2443
        %v3292 = vpack.c.b16 %v2452, %v2444
        %v3293 = vpack.c.b16 %v2453, %v2445
        %v3294 = vpack.c.b16 %v2454, %v2446
        %v3295 = vpack.c.b16 %v2455, %v2447
        %v3296 = vpack.c.b16 %v2456, %v2448
        %v3297 = vpack.c.b16 %v2465, %v2457
        %v3298 = vpack.c.b16 %v2466, %v2458
        %v3299 = vpack.c.b16 %v2467, %v2459
        %v3300 = vpack.c.b16 %v2468, %v2460
        %v3301 = vpack.c.b16 %v2469, %v2461
        %v3302 = vpack.c.b16 %v2470, %v2462
        %v3303 = vpack.c.b16 %v2471, %v2463
        %v3304 = vpack.c.b16 %v2472, %v2464
        %v3305 = vpack.c.b16 %v2481, %v2473
        %v3306 = vpack.c.b16 %v2482, %v2474
        %v3307 = vpack.c.b16 %v2483, %v2475
        %v3308 = vpack.c.b16 %v2484, %v2476
        %v3309 = vpack.c.b16 %v2485, %v2477
        %v3310 = vpack.c.b16 %v2486, %v2478
        %v3311 = vpack.c.b16 %v2487, %v2479
        %v3312 = vpack.c.b16 %v2488, %v2480
        %v3313 = vpack.c.b16 %v2497, %v2489
        %v3314 = vpack.c.b16 %v2498, %v2490
        %v3315 = vpack.c.b16 %v2499, %v2491
        %v3316 = vpack.c.b16 %v2500, %v2492
        %v3317 = vpack.c.b16 %v2501, %v2493
        %v3318 = vpack.c.b16 %v2502, %v2494
        %v3319 = vpack.c.b16 %v2503, %v2495
        %v3320 = vpack.c.b16 %v2504, %v2496
        %v3321 = vpack.c.b16 %v2513, %v2505
        %v3322 = vpack.c.b16 %v2514, %v2506
        %v3323 = vpack.c.b16 %v2515, %v2507
        %v3324 = vpack.c.b16 %v2516, %v2508
        %v3325 = vpack.c.b16 %v2517, %v2509
        %v3326 = vpack.c.b16 %v2518, %v2510
        %v3327 = vpack.c.b16 %v2519, %v2511
        %v3328 = vpack.c.b16 %v2520, %v2512
        %v3329 = vpack.c.b16 %v2529, %v2521
        %v3330 = vpack.c.b16 %v2530, %v2522
        %v3331 = vpack.c.b16 %v2531, %v2523
        %v3332 = vpack.c.b16 %v2532, %v2524
        %v3333 = vpack.c.b16 %v2533, %v2525
        %v3334 = vpack.c.b16 %v2534, %v2526
        %v3335 = vpack.c.b16 %v2535, %v2527
        %v3336 = vpack.c.b16 %v2536, %v2528
        %v3337 = vpack.c.b16 %v2545, %v2537
        %v3338 = vpack.c.b16 %v2546, %v2538
        %v3339 = vpack.c.b16 %v2547, %v2539
        %v3340 = vpack.c.b16 %v2548, %v2540
        %v3341 = vpack.c.b16 %v2549, %v2541
        %v3342 = vpack.c.b16 %v2550, %v2542
        %v3343 = vpack.c.b16 %v2551, %v2543
        %v3344 = vpack.c.b16 %v2552, %v2544
        %v3345 = vpack.c.b16 %v2561, %v2553
        %v3346 = vpack.c.b16 %v2562, %v2554
        %v3347 = vpack.c.b16 %v2563, %v2555
        %v3348 = vpack.c.b16 %v2564, %v2556
        %v3349 = vpack.c.b16 %v2565, %v2557
        %v3350 = vpack.c.b16 %v2566, %v2558
        %v3351 = vpack.c.b16 %v2567, %v2559
        %v3352 = vpack.c.b16 %v2568, %v2560
        %v3353 = vpack.c.b16 %v2577, %v2569
        %v3354 = vpack.c.b16 %v2578, %v2570
        %v3355 = vpack.c.b16 %v2579, %v2571
        %v3356 = vpack.c.b16 %v2580, %v2572
        %v3357 = vpack.c.b16 %v2581, %v2573
        %v3358 = vpack.c.b16 %v2582, %v2574
        %v3359 = vpack.c.b16 %v2583, %v2575
        %v3360 = vpack.c.b16 %v2584, %v2576
        %v3361 = vpack.c.b16 %v2593, %v2585
        %v3362 = vpack.c.b16 %v2594, %v2586
        %v3363 = vpack.c.b16 %v2595, %v2587
        %v3364 = vpack.c.b16 %v2596, %v2588
        %v3365 = vpack.c.b16 %v2597, %v2589
        %v3366 = vpack.c.b16 %v2598, %v2590
        %v3367 = vpack.c.b16 %v2599, %v2591
        %v3368 = vpack.c.b16 %v2600, %v2592
        %v3369 = vpack.c.b16 %v2609, %v2601
        %v3370 = vpack.c.b16 %v2610, %v2602
        %v3371 = vpack.c.b16 %v2611, %v2603
        %v3372 = vpack.c.b16 %v2612, %v2604
        %v3373 = vpack.c.b16 %v2613, %v2605
        %v3374 = vpack.c.b16 %v2614, %v2606
        %v3375 = vpack.c.b16 %v2615, %v2607
        %v3376 = vpack.c.b16 %v2616, %v2608
        %v3377 = vpack.c.b16 %v2625, %v2617
        %v3378 = vpack.c.b16 %v2626, %v2618
        %v3379 = vpack.c.b16 %v2627, %v2619
        %v3380 = vpack.c.b16 %v2628, %v2620
        %v3381 = vpack.c.b16 %v2629, %v2621
        %v3382 = vpack.c.b16 %v2630, %v2622
        %v3383 = vpack.c.b16 %v2631, %v2623
        %v3384 = vpack.c.b16 %v2632, %v2624
        %v3385 = vpack.c.b16 %v2641, %v2633
        %v3386 = vpack.c.b16 %v2642, %v2634
        %v3387 = vpack.c.b16 %v2643, %v2635
        %v3388 = vpack.c.b16 %v2644, %v2636
        %v3389 = vpack.c.b16 %v2645, %v2637
        %v3390 = vpack.c.b16 %v2646, %v2638
        %v3391 = vpack.c.b16 %v2647, %v2639
        %v3392 = vpack.c.b16 %v2648, %v2640
        %v3393 = vpack.c.b16 %v2657, %v2649
        %v3394 = vpack.c.b16 %v2658, %v2650
        %v3395 = vpack.c.b16 %v2659, %v2651
        %v3396 = vpack.c.b16 %v2660, %v2652
        %v3397 = vpack.c.b16 %v2661, %v2653
        %v3398 = vpack.c.b16 %v2662, %v2654
        %v3399 = vpack.c.b16 %v2663, %v2655
        %v3400 = vpack.c.b16 %v2664, %v2656
        %v3401 = vpack.c.b16 %v2673, %v2665
        %v3402 = vpack.c.b16 %v2674, %v2666
        %v3403 = vpack.c.b16 %v2675, %v2667
        %v3404 = vpack.c.b16 %v2676, %v2668
        %v3405 = vpack.c.b16 %v2677, %v2669
        %v3406 = vpack.c.b16 %v2678, %v2670
        %v3407 = vpack.c.b16 %v2679, %v2671
        %v3408 = vpack.c.b16 %v2680, %v2672
        %v3409 = vpack.c.b16 %v2689, %v2681
        %v3410 = vpack.c.b16 %v2690, %v2682
        %v3411 = vpack.c.b16 %v2691, %v2683
        %v3412 = vpack.c.b16 %v2692, %v2684
        %v3413 = vpack.c.b16 %v2693, %v2685
        %v3414 = vpack.c.b16 %v2694, %v2686
        %v3415 = vpack.c.b16 %v2695, %v2687
        %v3416 = vpack.c.b16 %v2696, %v2688
        %v3417 = vpack.c.b16 %v2705, %v2697
        %v3418 = vpack.c.b16 %v2706, %v2698
        %v3419 = vpack.c.b16 %v2707, %v2699
        %v3420 = vpack.c.b16 %v2708, %v2700
        %v3421 = vpack.c.b16 %v2709, %v2701
        %v3422 = vpack.c.b16 %v2710, %v2702
        %v3423 = vpack.c.b16 %v2711, %v2703
        %v3424 = vpack.c.b16 %v2712, %v2704
        %v3425 = vpack.c.b16 %v2721, %v2713
        %v3426 = vpack.c.b16 %v2722, %v2714
        %v3427 = vpack.c.b16 %v2723, %v2715
        %v3428 = vpack.c.b16 %v2724, %v2716
        %v3429 = vpack.c.b16 %v2725, %v2717
        %v3430 = vpack.c.b16 %v2726, %v2718
        %v3431 = vpack.c.b16 %v2727, %v2719
        %v3432 = vpack.c.b16 %v2728, %v2720
        %v3433 = vpack.c.b16 %v2737, %v2729
        %v3434 = vpack.c.b16 %v2738, %v2730
        %v3435 = vpack.c.b16 %v2739, %v2731
        %v3436 = vpack.c.b16 %v2740, %v2732
        %v3437 = vpack.c.b16 %v2741, %v2733
        %v3438 = vpack.c.b16 %v2742, %v2734
        %v3439 = vpack.c.b16 %v2743, %v2735
        %v3440 = vpack.c.b16 %v2744, %v2736
        %v3441 = vpack.c.b16 %v2753, %v2745
        %v3442 = vpack.c.b16 %v2754, %v2746
        %v3443 = vpack.c.b16 %v2755, %v2747
        %v3444 = vpack.c.b16 %v2756, %v2748
        %v3445 = vpack.c.b16 %v2757, %v2749
        %v3446 = vpack.c.b16 %v2758, %v2750
        %v3447 = vpack.c.b16 %v2759, %v2751
        %v3448 = vpack.c.b16 %v2760, %v2752
        %v3449 = vpack.c.b16 %v2769, %v2761
        %v3450 = vpack.c.b16 %v2770, %v2762
        %v3451 = vpack.c.b16 %v2771, %v2763
        %v3452 = vpack.c.b16 %v2772, %v2764
        %v3453 = vpack.c.b16 %v2773, %v2765
        %v3454 = vpack.c.b16 %v2774, %v2766
        %v3455 = vpack.c.b16 %v2775, %v2767
        %v3456 = vpack.c.b16 %v2776, %v2768
        %v3457 = vpack.c.b16 %v2785, %v2777
        %v3458 = vpack.c.b16 %v2786, %v2778
        %v3459 = vpack.c.b16 %v2787, %v2779
        %v3460 = vpack.c.b16 %v2788, %v2780
        %v3461 = vpack.c.b16 %v2789, %v2781
        %v3462 = vpack.c.b16 %v2790, %v2782
        %v3463 = vpack.c.b16 %v2791, %v2783
        %v3464 = vpack.c.b16 %v2792, %v2784
        %v3465 = vpack.c.b16 %v2801, %v2793
        %v3466 = vpack.c.b16 %v2802, %v2794
        %v3467 = vpack.c.b16 %v2803, %v2795
        %v3468 = vpack.c.b16 %v2804, %v2796
        %v3469 = vpack.c.b16 %v2805, %v2797
        %v3470 = vpack.c.b16 %v2806, %v2798
        %v3471 = vpack.c.b16 %v2807, %v2799
        %v3472 = vpack.c.b16 %v2808, %v2800
        %v3473 = vpack.c.b16 %v2817, %v2809
        %v3474 = vpack.c.b16 %v2818, %v2810
        %v3475 = vpack.c.b16 %v2819, %v2811
        %v3476 = vpack.c.b16 %v2820, %v2812
        %v3477 = vpack.c.b16 %v2821, %v2813
        %v3478 = vpack.c.b16 %v2822, %v2814
        %v3479 = vpack.c.b16 %v2823, %v2815
        %v3480 = vpack.c.b16 %v2824, %v2816
        %v3481 = vpack.c.b16 %v2833, %v2825
        %v3482 = vpack.c.b16 %v2834, %v2826
        %v3483 = vpack.c.b16 %v2835, %v2827
        %v3484 = vpack.c.b16 %v2836, %v2828
        %v3485 = vpack.c.b16 %v2837, %v2829
        %v3486 = vpack.c.b16 %v2838, %v2830
        %v3487 = vpack.c.b16 %v2839, %v2831
        %v3488 = vpack.c.b16 %v2840, %v2832
        %v3489 = vpack.c.b16 %v2849, %v2841
        %v3490 = vpack.c.b16 %v2850, %v2842
        %v3491 = vpack.c.b16 %v2851, %v2843
        %v3492 = vpack.c.b16 %v2852, %v2844
        %v3493 = vpack.c.b16 %v2853, %v2845
        %v3494 = vpack.c.b16 %v2854, %v2846
        %v3495 = vpack.c.b16 %v2855, %v2847
        %v3496 = vpack.c.b16 %v2856, %v2848
        %v3497 = vpack.c.b16 %v2865, %v2857
        %v3498 = vpack.c.b16 %v2866, %v2858
        %v3499 = vpack.c.b16 %v2867, %v2859
        %v3500 = vpack.c.b16 %v2868, %v2860
        %v3501 = vpack.c.b16 %v2869, %v2861
        %v3502 = vpack.c.b16 %v2870, %v2862
        %v3503 = vpack.c.b16 %v2871, %v2863
        %v3504 = vpack.c.b16 %v2872, %v2864
        %v3505 = vpack.c.b16 %v2881, %v2873
        %v3506 = vpack.c.b16 %v2882, %v2874
        %v3507 = vpack.c.b16 %v2883, %v2875
        %v3508 = vpack.c.b16 %v2884, %v2876
        %v3509 = vpack.c.b16 %v2885, %v2877
        %v3510 = vpack.c.b16 %v2886, %v2878
        %v3511 = vpack.c.b16 %v2887, %v2879
        %v3512 = vpack.c.b16 %v2888, %v2880
        %v3513 = vpack.c.b16 %v2897, %v2889
        %v3514 = vpack.c.b16 %v2898, %v2890
        %v3515 = vpack.c.b16 %v2899, %v2891
        %v3516 = vpack.c.b16 %v2900, %v2892
        %v3517 = vpack.c.b16 %v2901, %v2893
        %v3518 = vpack.c.b16 %v2902, %v2894
        %v3519 = vpack.c.b16 %v2903, %v2895
        %v3520 = vpack.c.b16 %v2904, %v2896
        %v3521 = vpack.c.b16 %v2913, %v2905
        %v3522 = vpack.c.b16 %v2914, %v2906
        %v3523 = vpack.c.b16 %v2915, %v2907
        %v3524 = vpack.c.b16 %v2916, %v2908
        %v3525 = vpack.c.b16 %v2917, %v2909
        %v3526 = vpack.c.b16 %v2918, %v2910
        %v3527 = vpack.c.b16 %v2919, %v2911
        %v3528 = vpack.c.b16 %v2920, %v2912
        %v3529 = vpack.c.b16 %v2929, %v2921
        %v3530 = vpack.c.b16 %v2930, %v2922
        %v3531 = vpack.c.b16 %v2931, %v2923
        %v3532 = vpack.c.b16 %v2932, %v2924
        %v3533 = vpack.c.b16 %v2933, %v2925
        %v3534 = vpack.c.b16 %v2934, %v2926
        %v3535 = vpack.c.b16 %v2935, %v2927
        %v3536 = vpack.c.b16 %v2936, %v2928
        %v3537 = vpack.c.b16 %v2945, %v2937
        %v3538 = vpack.c.b16 %v2946, %v2938
        %v3539 = vpack.c.b16 %v2947, %v2939
        %v3540 = vpack.c.b16 %v2948, %v2940
        %v3541 = vpack.c.b16 %v2949, %v2941
        %v3542 = vpack.c.b16 %v2950, %v2942
        %v3543 = vpack.c.b16 %v2951, %v2943
        %v3544 = vpack.c.b16 %v2952, %v2944
        %v3545 = vpack.c.b16 %v2961, %v2953
        %v3546 = vpack.c.b16 %v2962, %v2954
        %v3547 = vpack.c.b16 %v2963, %v2955
        %v3548 = vpack.c.b16 %v2964, %v2956
        %v3549 = vpack.c.b16 %v2965, %v2957
        %v3550 = vpack.c.b16 %v2966, %v2958
        %v3551 = vpack.c.b16 %v2967, %v2959
        %v3552 = vpack.c.b16 %v2968, %v2960
        %v3553 = vpack.c.b16 %v2977, %v2969
        %v3554 = vpack.c.b16 %v2978, %v2970
        %v3555 = vpack.c.b16 %v2979, %v2971
        %v3556 = vpack.c.b16 %v2980, %v2972
        %v3557 = vpack.c.b16 %v2981, %v2973
        %v3558 = vpack.c.b16 %v2982, %v2974
        %v3559 = vpack.c.b16 %v2983, %v2975
        %v3560 = vpack.c.b16 %v2984, %v2976
        %v3561 = vpack.c.b16 %v2993, %v2985
        %v3562 = vpack.c.b16 %v2994, %v2986
        %v3563 = vpack.c.b16 %v2995, %v2987
        %v3564 = vpack.c.b16 %v2996, %v2988
        %v3565 = vpack.c.b16 %v2997, %v2989
        %v3566 = vpack.c.b16 %v2998, %v2990
        %v3567 = vpack.c.b16 %v2999, %v2991
        %v3568 = vpack.c.b16 %v3000, %v2992
        %v3569 = vpack.c.b16 %v3009, %v3001
        %v3570 = vpack.c.b16 %v3010, %v3002
        %v3571 = vpack.c.b16 %v3011, %v3003
        %v3572 = vpack.c.b16 %v3012, %v3004
        %v3573 = vpack.c.b16 %v3013, %v3005
        %v3574 = vpack.c.b16 %v3014, %v3006
        %v3575 = vpack.c.b16 %v3015, %v3007
        %v3576 = vpack.c.b16 %v3016, %v3008
        %v3577 = vpack.c.b16 %v3025, %v3017
        %v3578 = vpack.c.b16 %v3026, %v3018
        %v3579 = vpack.c.b16 %v3027, %v3019
        %v3580 = vpack.c.b16 %v3028, %v3020
        %v3581 = vpack.c.b16 %v3029, %v3021
        %v3582 = vpack.c.b16 %v3030, %v3022
        %v3583 = vpack.c.b16 %v3031, %v3023
        %v3584 = vpack.c.b16 %v3032, %v3024
        %v3585 = vpack.c.b16 %v3041, %v3033
        %v3586 = vpack.c.b16 %v3042, %v3034
        %v3587 = vpack.c.b16 %v3043, %v3035
        %v3588 = vpack.c.b16 %v3044, %v3036
        %v3589 = vpack.c.b16 %v3045, %v3037
        %v3590 = vpack.c.b16 %v3046, %v3038
        %v3591 = vpack.c.b16 %v3047, %v3039
        %v3592 = vpack.c.b16 %v3048, %v3040
        %v3593 = vpack.c.b16 %v3057, %v3049
        %v3594 = vpack.c.b16 %v3058, %v3050
        %v3595 = vpack.c.b16 %v3059, %v3051
        %v3596 = vpack.c.b16 %v3060, %v3052
        %v3597 = vpack.c.b16 %v3061, %v3053
        %v3598 = vpack.c.b16 %v3062, %v3054
        %v3599 = vpack.c.b16 %v3063, %v3055
        %v3600 = vpack.c.b16 %v3064, %v3056
        %v3601 = vpack.c.b16 %v3073, %v3065
        %v3602 = vpack.c.b16 %v3074, %v3066
        %v3603 = vpack.c.b16 %v3075, %v3067
        %v3604 = vpack.c.b16 %v3076, %v3068
        %v3605 = vpack.c.b16 %v3077, %v3069
        %v3606 = vpack.c.b16 %v3078, %v3070
        %v3607 = vpack.c.b16 %v3079, %v3071
        %v3608 = vpack.c.b16 %v3080, %v3072
        %v3609 = vpack.c.b16 %v3089, %v3081
        %v3610 = vpack.c.b16 %v3090, %v3082
        %v3611 = vpack.c.b16 %v3091, %v3083
        %v3612 = vpack.c.b16 %v3092, %v3084
        %v3613 = vpack.c.b16 %v3093, %v3085
        %v3614 = vpack.c.b16 %v3094, %v3086
        %v3615 = vpack.c.b16 %v3095, %v3087
        %v3616 = vpack.c.b16 %v3096, %v3088
        %v3617 = vpack.c.b16 %v3105, %v3097
        %v3618 = vpack.c.b16 %v3106, %v3098
        %v3619 = vpack.c.b16 %v3107, %v3099
        %v3620 = vpack.c.b16 %v3108, %v3100
        %v3621 = vpack.c.b16 %v3109, %v3101
        %v3622 = vpack.c.b16 %v3110, %v3102
        %v3623 = vpack.c.b16 %v3111, %v3103
        %v3624 = vpack.c.b16 %v3112, %v3104
        %4137 = vmatprep.subr.bf16.mxu0 %v3114
        %4138 = vmatpush1.bf16.msra.mxu0 %v3113
        %4139 = vmatprep.subr.bf16.mxu0 %v3122
        %4140 = vmatpush1.bf16.msra.mxu0 %v3121
        %4141 = vmatprep.subr.bf16.mxu0 %v3130
        %4142 = vmatpush1.bf16.msra.mxu0 %v3129
        %4143 = vmatprep.subr.bf16.mxu0 %v3138
        %4144 = vmatpush1.bf16.msra.mxu0 %v3137
        %4145 = vmatprep.subr.bf16.mxu0 %v3146
        %4146 = vmatpush1.bf16.msra.mxu0 %v3145
        %4147 = vmatprep.subr.bf16.mxu0 %v3154
        %4148 = vmatpush1.bf16.msra.mxu0 %v3153
        %4149 = vmatprep.subr.bf16.mxu0 %v3162
        %4150 = vmatpush1.bf16.msra.mxu0 %v3161
        %4151 = vmatprep.subr.bf16.mxu0 %v3170
        %4152 = vmatpush1.bf16.msra.mxu0 %v3169
        %4153 = vmatprep.subr.bf16.mxu0 %v3178
        %4154 = vmatpush1.bf16.msra.mxu0 %v3177
        %4155 = vmatprep.subr.bf16.mxu0 %v3186
        %4156 = vmatpush1.bf16.msra.mxu0 %v3185
        %4157 = vmatprep.subr.bf16.mxu0 %v3194
        %4158 = vmatpush1.bf16.msra.mxu0 %v3193
        %4159 = vmatprep.subr.bf16.mxu0 %v3202
        %4160 = vmatpush1.bf16.msra.mxu0 %v3201
        %4161 = vmatprep.subr.bf16.mxu0 %v3210
        %4162 = vmatpush1.bf16.msra.mxu0 %v3209
        %4163 = vmatprep.subr.bf16.mxu0 %v3218
        %4164 = vmatpush1.bf16.msra.mxu0 %v3217
        %4165 = vmatprep.subr.bf16.mxu0 %v3226
        %4166 = vmatpush1.bf16.msra.mxu0 %v3225
        %4167 = vmatprep.subr.bf16.mxu0 %v3234
        %4168 = vmatpush1.bf16.msra.mxu0 %v3233
        %4169 = vmatprep.mubr.bf16.mxu0 %v1016
        %4170 = vmatmul.mubr.bf16.gmra.mrb[0].mxu0 %v1015
        %v4171 = vpop.f32.mrb[0].mxu0
        %v4172 = vadd.f32 %v1540, %v4171
        %v4173 = vpop.f32.mrb[0].mxu0
        %v4174 = vadd.f32 %v1544, %v4173
        %v4175 = vpop.f32.mrb[0].mxu0
        %v4176 = vpop.f32.mrb[0].mxu0
        %4177 = vdwg.mxu0
        %4178 = vmatprep.subr.bf16.mxu0 %v3242
        %4179 = vmatpush1.bf16.msra.mxu0 %v3241
        %4180 = vmatprep.subr.bf16.mxu0 %v3250
        %4181 = vmatpush1.bf16.msra.mxu0 %v3249
        %4182 = vmatprep.subr.bf16.mxu0 %v3258
        %4183 = vmatpush1.bf16.msra.mxu0 %v3257
        %4184 = vmatprep.subr.bf16.mxu0 %v3266
        %4185 = vmatpush1.bf16.msra.mxu0 %v3265
        %4186 = vmatprep.subr.bf16.mxu0 %v3274
        %4187 = vmatpush1.bf16.msra.mxu0 %v3273
        %4188 = vmatprep.subr.bf16.mxu0 %v3282
        %4189 = vmatpush1.bf16.msra.mxu0 %v3281
        %4190 = vmatprep.subr.bf16.mxu0 %v3290
        %4191 = vmatpush1.bf16.msra.mxu0 %v3289
        %4192 = vmatprep.subr.bf16.mxu0 %v3298
        %4193 = vmatpush1.bf16.msra.mxu0 %v3297
        %4194 = vmatprep.subr.bf16.mxu0 %v3306
        %4195 = vmatpush1.bf16.msra.mxu0 %v3305
        %4196 = vmatprep.subr.bf16.mxu0 %v3314
        %4197 = vmatpush1.bf16.msra.mxu0 %v3313
        %4198 = vmatprep.subr.bf16.mxu0 %v3322
        %4199 = vmatpush1.bf16.msra.mxu0 %v3321
        %4200 = vmatprep.subr.bf16.mxu0 %v3330
        %4201 = vmatpush1.bf16.msra.mxu0 %v3329
        %4202 = vmatprep.subr.bf16.mxu0 %v3338
        %4203 = vmatpush1.bf16.msra.mxu0 %v3337
        %4204 = vmatprep.subr.bf16.mxu0 %v3346
        %4205 = vmatpush1.bf16.msra.mxu0 %v3345
        %4206 = vmatprep.subr.bf16.mxu0 %v3354
        %4207 = vmatpush1.bf16.msra.mxu0 %v3353
        %4208 = vmatprep.subr.bf16.mxu0 %v3362
        %4209 = vmatpush1.bf16.msra.mxu0 %v3361
        %4210 = vmatprep.mubr.bf16.mxu0 %v1018
        %4211 = vmatmul.mubr.bf16.gmra.mrb[0].mxu0 %v1017
        %v4212 = vpop.f32.mrb[0].mxu0
        %v4213 = vadd.f32 %v4172, %v4212
        %v4214 = vpop.f32.mrb[0].mxu0
        %v4215 = vadd.f32 %v4174, %v4214
        %v4216 = vpop.f32.mrb[0].mxu0
        %v4217 = vpop.f32.mrb[0].mxu0
        %4218 = vdwg.mxu0
        %4219 = vmatprep.subr.bf16.mxu0 %v3370
        %4220 = vmatpush1.bf16.msra.mxu0 %v3369
        %4221 = vmatprep.subr.bf16.mxu0 %v3378
        %4222 = vmatpush1.bf16.msra.mxu0 %v3377
        %4223 = vmatprep.subr.bf16.mxu0 %v3386
        %4224 = vmatpush1.bf16.msra.mxu0 %v3385
        %4225 = vmatprep.subr.bf16.mxu0 %v3394
        %4226 = vmatpush1.bf16.msra.mxu0 %v3393
        %4227 = vmatprep.subr.bf16.mxu0 %v3402
        %4228 = vmatpush1.bf16.msra.mxu0 %v3401
        %4229 = vmatprep.subr.bf16.mxu0 %v3410
        %4230 = vmatpush1.bf16.msra.mxu0 %v3409
        %4231 = vmatprep.subr.bf16.mxu0 %v3418
        %4232 = vmatpush1.bf16.msra.mxu0 %v3417
        %4233 = vmatprep.subr.bf16.mxu0 %v3426
        %4234 = vmatpush1.bf16.msra.mxu0 %v3425
        %4235 = vmatprep.subr.bf16.mxu0 %v3434
        %4236 = vmatpush1.bf16.msra.mxu0 %v3433
        %4237 = vmatprep.subr.bf16.mxu0 %v3442
        %4238 = vmatpush1.bf16.msra.mxu0 %v3441
        %4239 = vmatprep.subr.bf16.mxu0 %v3450
        %4240 = vmatpush1.bf16.msra.mxu0 %v3449
        %4241 = vmatprep.subr.bf16.mxu0 %v3458
        %4242 = vmatpush1.bf16.msra.mxu0 %v3457
        %4243 = vmatprep.subr.bf16.mxu0 %v3466
        %4244 = vmatpush1.bf16.msra.mxu0 %v3465
        %4245 = vmatprep.subr.bf16.mxu0 %v3474
        %4246 = vmatpush1.bf16.msra.mxu0 %v3473
        %4247 = vmatprep.subr.bf16.mxu0 %v3482
        %4248 = vmatpush1.bf16.msra.mxu0 %v3481
        %4249 = vmatprep.subr.bf16.mxu0 %v3490
        %4250 = vmatpush1.bf16.msra.mxu0 %v3489
        %4251 = vmatprep.mubr.bf16.mxu0 %v1020
        %4252 = vmatmul.mubr.bf16.gmra.mrb[0].mxu0 %v1019
        %v4253 = vpop.f32.mrb[0].mxu0
        %v4254 = vadd.f32 %v4213, %v4253
        %v4255 = vpop.f32.mrb[0].mxu0
        %v4256 = vadd.f32 %v4215, %v4255
        %v4257 = vpop.f32.mrb[0].mxu0
        %v4258 = vpop.f32.mrb[0].mxu0
        %4259 = vdwg.mxu0
        %4260 = vmatprep.subr.bf16.mxu0 %v3498
        %4261 = vmatpush1.bf16.msra.mxu0 %v3497
        %4262 = vmatprep.subr.bf16.mxu0 %v3506
        %4263 = vmatpush1.bf16.msra.mxu0 %v3505
        %4264 = vmatprep.subr.bf16.mxu0 %v3514
        %4265 = vmatpush1.bf16.msra.mxu0 %v3513
        %4266 = vmatprep.subr.bf16.mxu0 %v3522
        %4267 = vmatpush1.bf16.msra.mxu0 %v3521
        %4268 = vmatprep.subr.bf16.mxu0 %v3530
        %4269 = vmatpush1.bf16.msra.mxu0 %v3529
        %4270 = vmatprep.subr.bf16.mxu0 %v3538
        %4271 = vmatpush1.bf16.msra.mxu0 %v3537
        %4272 = vmatprep.subr.bf16.mxu0 %v3546
        %4273 = vmatpush1.bf16.msra.mxu0 %v3545
        %4274 = vmatprep.subr.bf16.mxu0 %v3554
        %4275 = vmatpush1.bf16.msra.mxu0 %v3553
        %4276 = vmatprep.subr.bf16.mxu0 %v3562
        %4277 = vmatpush1.bf16.msra.mxu0 %v3561
        %4278 = vmatprep.subr.bf16.mxu0 %v3570
        %4279 = vmatpush1.bf16.msra.mxu0 %v3569
        %4280 = vmatprep.subr.bf16.mxu0 %v3578
        %4281 = vmatpush1.bf16.msra.mxu0 %v3577
        %4282 = vmatprep.subr.bf16.mxu0 %v3586
        %4283 = vmatpush1.bf16.msra.mxu0 %v3585
        %4284 = vmatprep.subr.bf16.mxu0 %v3594
        %4285 = vmatpush1.bf16.msra.mxu0 %v3593
        %4286 = vmatprep.subr.bf16.mxu0 %v3602
        %4287 = vmatpush1.bf16.msra.mxu0 %v3601
        %4288 = vmatprep.subr.bf16.mxu0 %v3610
        %4289 = vmatpush1.bf16.msra.mxu0 %v3609
        %4290 = vmatprep.subr.bf16.mxu0 %v3618
        %4291 = vmatpush1.bf16.msra.mxu0 %v3617
        %4292 = vmatprep.mubr.bf16.mxu0 %v1022
        %4293 = vmatmul.mubr.bf16.gmra.mrb[0].mxu0 %v1021
        %v4294 = vpop.f32.mrb[0].mxu0
        %v4295 = vadd.f32 %v4254, %v4294
        %v4296 = vpop.f32.mrb[0].mxu0
        %v4297 = vadd.f32 %v4256, %v4296
        %v4298 = vpop.f32.mrb[0].mxu0
        %v4299 = vpop.f32.mrb[0].mxu0
        %4300 = vdwg.mxu0
        %4301 = vmatprep.subr.bf16.mxu0 %v3116
        %4302 = vmatpush1.bf16.msra.mxu0 %v3115
        %4303 = vmatprep.subr.bf16.mxu0 %v3124
        %4304 = vmatpush1.bf16.msra.mxu0 %v3123
        %4305 = vmatprep.subr.bf16.mxu0 %v3132
        %4306 = vmatpush1.bf16.msra.mxu0 %v3131
        %4307 = vmatprep.subr.bf16.mxu0 %v3140
        %4308 = vmatpush1.bf16.msra.mxu0 %v3139
        %4309 = vmatprep.subr.bf16.mxu0 %v3148
        %4310 = vmatpush1.bf16.msra.mxu0 %v3147
        %4311 = vmatprep.subr.bf16.mxu0 %v3156
        %4312 = vmatpush1.bf16.msra.mxu0 %v3155
        %4313 = vmatprep.subr.bf16.mxu0 %v3164
        %4314 = vmatpush1.bf16.msra.mxu0 %v3163
        %4315 = vmatprep.subr.bf16.mxu0 %v3172
        %4316 = vmatpush1.bf16.msra.mxu0 %v3171
        %4317 = vmatprep.subr.bf16.mxu0 %v3180
        %4318 = vmatpush1.bf16.msra.mxu0 %v3179
        %4319 = vmatprep.subr.bf16.mxu0 %v3188
        %4320 = vmatpush1.bf16.msra.mxu0 %v3187
        %4321 = vmatprep.subr.bf16.mxu0 %v3196
        %4322 = vmatpush1.bf16.msra.mxu0 %v3195
        %4323 = vmatprep.subr.bf16.mxu0 %v3204
        %4324 = vmatpush1.bf16.msra.mxu0 %v3203
        %4325 = vmatprep.subr.bf16.mxu0 %v3212
        %4326 = vmatpush1.bf16.msra.mxu0 %v3211
        %4327 = vmatprep.subr.bf16.mxu0 %v3220
        %4328 = vmatpush1.bf16.msra.mxu0 %v3219
        %4329 = vmatprep.subr.bf16.mxu0 %v3228
        %4330 = vmatpush1.bf16.msra.mxu0 %v3227
        %4331 = vmatprep.subr.bf16.mxu0 %v3236
        %4332 = vmatpush1.bf16.msra.mxu0 %v3235
        %4333 = vmatprep.mubr.bf16.mxu0 %v1016
        %4334 = vmatmul.mubr.bf16.gmra.mrb[0].mxu0 %v1015
        %v4335 = vpop.f32.mrb[0].mxu0
        %v4336 = vadd.f32 %v1548, %v4335
        %v4337 = vpop.f32.mrb[0].mxu0
        %v4338 = vadd.f32 %v1552, %v4337
        %v4339 = vpop.f32.mrb[0].mxu0
        %v4340 = vpop.f32.mrb[0].mxu0
        %4341 = vdwg.mxu0
        %4342 = vmatprep.subr.bf16.mxu0 %v3244
        %4343 = vmatpush1.bf16.msra.mxu0 %v3243
        %4344 = vmatprep.subr.bf16.mxu0 %v3252
        %4345 = vmatpush1.bf16.msra.mxu0 %v3251
        %4346 = vmatprep.subr.bf16.mxu0 %v3260
        %4347 = vmatpush1.bf16.msra.mxu0 %v3259
        %4348 = vmatprep.subr.bf16.mxu0 %v3268
        %4349 = vmatpush1.bf16.msra.mxu0 %v3267
        %4350 = vmatprep.subr.bf16.mxu0 %v3276
        %4351 = vmatpush1.bf16.msra.mxu0 %v3275
        %4352 = vmatprep.subr.bf16.mxu0 %v3284
        %4353 = vmatpush1.bf16.msra.mxu0 %v3283
        %4354 = vmatprep.subr.bf16.mxu0 %v3292
        %4355 = vmatpush1.bf16.msra.mxu0 %v3291
        %4356 = vmatprep.subr.bf16.mxu0 %v3300
        %4357 = vmatpush1.bf16.msra.mxu0 %v3299
        %4358 = vmatprep.subr.bf16.mxu0 %v3308
        %4359 = vmatpush1.bf16.msra.mxu0 %v3307
        %4360 = vmatprep.subr.bf16.mxu0 %v3316
        %4361 = vmatpush1.bf16.msra.mxu0 %v3315
        %4362 = vmatprep.subr.bf16.mxu0 %v3324
        %4363 = vmatpush1.bf16.msra.mxu0 %v3323
        %4364 = vmatprep.subr.bf16.mxu0 %v3332
        %4365 = vmatpush1.bf16.msra.mxu0 %v3331
        %4366 = vmatprep.subr.bf16.mxu0 %v3340
        %4367 = vmatpush1.bf16.msra.mxu0 %v3339
        %4368 = vmatprep.subr.bf16.mxu0 %v3348
        %4369 = vmatpush1.bf16.msra.mxu0 %v3347
        %4370 = vmatprep.subr.bf16.mxu0 %v3356
        %4371 = vmatpush1.bf16.msra.mxu0 %v3355
        %4372 = vmatprep.subr.bf16.mxu0 %v3364
        %4373 = vmatpush1.bf16.msra.mxu0 %v3363
        %4374 = vmatprep.mubr.bf16.mxu0 %v1018
        %4375 = vmatmul.mubr.bf16.gmra.mrb[0].mxu0 %v1017
        %v4376 = vpop.f32.mrb[0].mxu0
        %v4377 = vadd.f32 %v4336, %v4376
        %v4378 = vpop.f32.mrb[0].mxu0
        %v4379 = vadd.f32 %v4338, %v4378
        %v4380 = vpop.f32.mrb[0].mxu0
        %v4381 = vpop.f32.mrb[0].mxu0
        %4382 = vdwg.mxu0
        %4383 = vmatprep.subr.bf16.mxu0 %v3372
        %4384 = vmatpush1.bf16.msra.mxu0 %v3371
        %4385 = vmatprep.subr.bf16.mxu0 %v3380
        %4386 = vmatpush1.bf16.msra.mxu0 %v3379
        %4387 = vmatprep.subr.bf16.mxu0 %v3388
        %4388 = vmatpush1.bf16.msra.mxu0 %v3387
        %4389 = vmatprep.subr.bf16.mxu0 %v3396
        %4390 = vmatpush1.bf16.msra.mxu0 %v3395
        %4391 = vmatprep.subr.bf16.mxu0 %v3404
        %4392 = vmatpush1.bf16.msra.mxu0 %v3403
        %4393 = vmatprep.subr.bf16.mxu0 %v3412
        %4394 = vmatpush1.bf16.msra.mxu0 %v3411
        %4395 = vmatprep.subr.bf16.mxu0 %v3420
        %4396 = vmatpush1.bf16.msra.mxu0 %v3419
        %4397 = vmatprep.subr.bf16.mxu0 %v3428
        %4398 = vmatpush1.bf16.msra.mxu0 %v3427
        %4399 = vmatprep.subr.bf16.mxu0 %v3436
        %4400 = vmatpush1.bf16.msra.mxu0 %v3435
        %4401 = vmatprep.subr.bf16.mxu0 %v3444
        %4402 = vmatpush1.bf16.msra.mxu0 %v3443
        %4403 = vmatprep.subr.bf16.mxu0 %v3452
        %4404 = vmatpush1.bf16.msra.mxu0 %v3451
        %4405 = vmatprep.subr.bf16.mxu0 %v3460
        %4406 = vmatpush1.bf16.msra.mxu0 %v3459
        %4407 = vmatprep.subr.bf16.mxu0 %v3468
        %4408 = vmatpush1.bf16.msra.mxu0 %v3467
        %4409 = vmatprep.subr.bf16.mxu0 %v3476
        %4410 = vmatpush1.bf16.msra.mxu0 %v3475
        %4411 = vmatprep.subr.bf16.mxu0 %v3484
        %4412 = vmatpush1.bf16.msra.mxu0 %v3483
        %4413 = vmatprep.subr.bf16.mxu0 %v3492
        %4414 = vmatpush1.bf16.msra.mxu0 %v3491
        %4415 = vmatprep.mubr.bf16.mxu0 %v1020
        %4416 = vmatmul.mubr.bf16.gmra.mrb[0].mxu0 %v1019
        %v4417 = vpop.f32.mrb[0].mxu0
        %v4418 = vadd.f32 %v4377, %v4417
        %v4419 = vpop.f32.mrb[0].mxu0
        %v4420 = vadd.f32 %v4379, %v4419
        %v4421 = vpop.f32.mrb[0].mxu0
        %v4422 = vpop.f32.mrb[0].mxu0
        %4423 = vdwg.mxu0
        %4424 = vmatprep.subr.bf16.mxu0 %v3500
        %4425 = vmatpush1.bf16.msra.mxu0 %v3499
        %4426 = vmatprep.subr.bf16.mxu0 %v3508
        %4427 = vmatpush1.bf16.msra.mxu0 %v3507
        %4428 = vmatprep.subr.bf16.mxu0 %v3516
        %4429 = vmatpush1.bf16.msra.mxu0 %v3515
        %4430 = vmatprep.subr.bf16.mxu0 %v3524
        %4431 = vmatpush1.bf16.msra.mxu0 %v3523
        %4432 = vmatprep.subr.bf16.mxu0 %v3532
        %4433 = vmatpush1.bf16.msra.mxu0 %v3531
        %4434 = vmatprep.subr.bf16.mxu0 %v3540
        %4435 = vmatpush1.bf16.msra.mxu0 %v3539
        %4436 = vmatprep.subr.bf16.mxu0 %v3548
        %4437 = vmatpush1.bf16.msra.mxu0 %v3547
        %4438 = vmatprep.subr.bf16.mxu0 %v3556
        %4439 = vmatpush1.bf16.msra.mxu0 %v3555
        %4440 = vmatprep.subr.bf16.mxu0 %v3564
        %4441 = vmatpush1.bf16.msra.mxu0 %v3563
        %4442 = vmatprep.subr.bf16.mxu0 %v3572
        %4443 = vmatpush1.bf16.msra.mxu0 %v3571
        %4444 = vmatprep.subr.bf16.mxu0 %v3580
        %4445 = vmatpush1.bf16.msra.mxu0 %v3579
        %4446 = vmatprep.subr.bf16.mxu0 %v3588
        %4447 = vmatpush1.bf16.msra.mxu0 %v3587
        %4448 = vmatprep.subr.bf16.mxu0 %v3596
        %4449 = vmatpush1.bf16.msra.mxu0 %v3595
        %4450 = vmatprep.subr.bf16.mxu0 %v3604
        %4451 = vmatpush1.bf16.msra.mxu0 %v3603
        %4452 = vmatprep.subr.bf16.mxu0 %v3612
        %4453 = vmatpush1.bf16.msra.mxu0 %v3611
        %4454 = vmatprep.subr.bf16.mxu0 %v3620
        %4455 = vmatpush1.bf16.msra.mxu0 %v3619
        %4456 = vmatprep.mubr.bf16.mxu0 %v1022
        %4457 = vmatmul.mubr.bf16.gmra.mrb[0].mxu0 %v1021
        %v4458 = vpop.f32.mrb[0].mxu0
        %v4459 = vadd.f32 %v4418, %v4458
        %v4460 = vpop.f32.mrb[0].mxu0
        %v4461 = vadd.f32 %v4420, %v4460
        %v4462 = vpop.f32.mrb[0].mxu0
        %v4463 = vpop.f32.mrb[0].mxu0
        %4464 = vdwg.mxu0
        %4465 = vmatprep.subr.bf16.mxu0 %v3118
        %4466 = vmatpush1.bf16.msra.mxu0 %v3117
        %4467 = vmatprep.subr.bf16.mxu0 %v3126
        %4468 = vmatpush1.bf16.msra.mxu0 %v3125
        %4469 = vmatprep.subr.bf16.mxu0 %v3134
        %4470 = vmatpush1.bf16.msra.mxu0 %v3133
        %4471 = vmatprep.subr.bf16.mxu0 %v3142
        %4472 = vmatpush1.bf16.msra.mxu0 %v3141
        %4473 = vmatprep.subr.bf16.mxu0 %v3150
        %4474 = vmatpush1.bf16.msra.mxu0 %v3149
        %4475 = vmatprep.subr.bf16.mxu0 %v3158
        %4476 = vmatpush1.bf16.msra.mxu0 %v3157
        %4477 = vmatprep.subr.bf16.mxu0 %v3166
        %4478 = vmatpush1.bf16.msra.mxu0 %v3165
        %4479 = vmatprep.subr.bf16.mxu0 %v3174
        %4480 = vmatpush1.bf16.msra.mxu0 %v3173
        %4481 = vmatprep.subr.bf16.mxu0 %v3182
        %4482 = vmatpush1.bf16.msra.mxu0 %v3181
        %4483 = vmatprep.subr.bf16.mxu0 %v3190
        %4484 = vmatpush1.bf16.msra.mxu0 %v3189
        %4485 = vmatprep.subr.bf16.mxu0 %v3198
        %4486 = vmatpush1.bf16.msra.mxu0 %v3197
        %4487 = vmatprep.subr.bf16.mxu0 %v3206
        %4488 = vmatpush1.bf16.msra.mxu0 %v3205
        %4489 = vmatprep.subr.bf16.mxu0 %v3214
        %4490 = vmatpush1.bf16.msra.mxu0 %v3213
        %4491 = vmatprep.subr.bf16.mxu0 %v3222
        %4492 = vmatpush1.bf16.msra.mxu0 %v3221
        %4493 = vmatprep.subr.bf16.mxu0 %v3230
        %4494 = vmatpush1.bf16.msra.mxu0 %v3229
        %4495 = vmatprep.subr.bf16.mxu0 %v3238
        %4496 = vmatpush1.bf16.msra.mxu0 %v3237
        %4497 = vmatprep.mubr.bf16.mxu0 %v1016
        %4498 = vmatmul.mubr.bf16.gmra.mrb[0].mxu0 %v1015
        %v4499 = vpop.f32.mrb[0].mxu0
        %v4500 = vadd.f32 %v1556, %v4499
        %v4501 = vpop.f32.mrb[0].mxu0
        %v4502 = vadd.f32 %v1560, %v4501
        %v4503 = vpop.f32.mrb[0].mxu0
        %v4504 = vpop.f32.mrb[0].mxu0
        %4505 = vdwg.mxu0
        %4506 = vmatprep.subr.bf16.mxu0 %v3246
        %4507 = vmatpush1.bf16.msra.mxu0 %v3245
        %4508 = vmatprep.subr.bf16.mxu0 %v3254
        %4509 = vmatpush1.bf16.msra.mxu0 %v3253
        %4510 = vmatprep.subr.bf16.mxu0 %v3262
        %4511 = vmatpush1.bf16.msra.mxu0 %v3261
        %4512 = vmatprep.subr.bf16.mxu0 %v3270
        %4513 = vmatpush1.bf16.msra.mxu0 %v3269
        %4514 = vmatprep.subr.bf16.mxu0 %v3278
        %4515 = vmatpush1.bf16.msra.mxu0 %v3277
        %4516 = vmatprep.subr.bf16.mxu0 %v3286
        %4517 = vmatpush1.bf16.msra.mxu0 %v3285
        %4518 = vmatprep.subr.bf16.mxu0 %v3294
        %4519 = vmatpush1.bf16.msra.mxu0 %v3293
        %4520 = vmatprep.subr.bf16.mxu0 %v3302
        %4521 = vmatpush1.bf16.msra.mxu0 %v3301
        %4522 = vmatprep.subr.bf16.mxu0 %v3310
        %4523 = vmatpush1.bf16.msra.mxu0 %v3309
        %4524 = vmatprep.subr.bf16.mxu0 %v3318
        %4525 = vmatpush1.bf16.msra.mxu0 %v3317
        %4526 = vmatprep.subr.bf16.mxu0 %v3326
        %4527 = vmatpush1.bf16.msra.mxu0 %v3325
        %4528 = vmatprep.subr.bf16.mxu0 %v3334
        %4529 = vmatpush1.bf16.msra.mxu0 %v3333
        %4530 = vmatprep.subr.bf16.mxu0 %v3342
        %4531 = vmatpush1.bf16.msra.mxu0 %v3341
        %4532 = vmatprep.subr.bf16.mxu0 %v3350
        %4533 = vmatpush1.bf16.msra.mxu0 %v3349
        %4534 = vmatprep.subr.bf16.mxu0 %v3358
        %4535 = vmatpush1.bf16.msra.mxu0 %v3357
        %4536 = vmatprep.subr.bf16.mxu0 %v3366
        %4537 = vmatpush1.bf16.msra.mxu0 %v3365
        %4538 = vmatprep.mubr.bf16.mxu0 %v1018
        %4539 = vmatmul.mubr.bf16.gmra.mrb[0].mxu0 %v1017
        %v4540 = vpop.f32.mrb[0].mxu0
        %v4541 = vadd.f32 %v4500, %v4540
        %v4542 = vpop.f32.mrb[0].mxu0
        %v4543 = vadd.f32 %v4502, %v4542
        %v4544 = vpop.f32.mrb[0].mxu0
        %v4545 = vpop.f32.mrb[0].mxu0
        %4546 = vdwg.mxu0
        %4547 = vmatprep.subr.bf16.mxu0 %v3374
        %4548 = vmatpush1.bf16.msra.mxu0 %v3373
        %4549 = vmatprep.subr.bf16.mxu0 %v3382
        %4550 = vmatpush1.bf16.msra.mxu0 %v3381
        %4551 = vmatprep.subr.bf16.mxu0 %v3390
        %4552 = vmatpush1.bf16.msra.mxu0 %v3389
        %4553 = vmatprep.subr.bf16.mxu0 %v3398
        %4554 = vmatpush1.bf16.msra.mxu0 %v3397
        %4555 = vmatprep.subr.bf16.mxu0 %v3406
        %4556 = vmatpush1.bf16.msra.mxu0 %v3405
        %4557 = vmatprep.subr.bf16.mxu0 %v3414
        %4558 = vmatpush1.bf16.msra.mxu0 %v3413
        %4559 = vmatprep.subr.bf16.mxu0 %v3422
        %4560 = vmatpush1.bf16.msra.mxu0 %v3421
        %4561 = vmatprep.subr.bf16.mxu0 %v3430
        %4562 = vmatpush1.bf16.msra.mxu0 %v3429
        %4563 = vmatprep.subr.bf16.mxu0 %v3438
        %4564 = vmatpush1.bf16.msra.mxu0 %v3437
        %4565 = vmatprep.subr.bf16.mxu0 %v3446
        %4566 = vmatpush1.bf16.msra.mxu0 %v3445
        %4567 = vmatprep.subr.bf16.mxu0 %v3454
        %4568 = vmatpush1.bf16.msra.mxu0 %v3453
        %4569 = vmatprep.subr.bf16.mxu0 %v3462
        %4570 = vmatpush1.bf16.msra.mxu0 %v3461
        %4571 = vmatprep.subr.bf16.mxu0 %v3470
        %4572 = vmatpush1.bf16.msra.mxu0 %v3469
        %4573 = vmatprep.subr.bf16.mxu0 %v3478
        %4574 = vmatpush1.bf16.msra.mxu0 %v3477
        %4575 = vmatprep.subr.bf16.mxu0 %v3486
        %4576 = vmatpush1.bf16.msra.mxu0 %v3485
        %4577 = vmatprep.subr.bf16.mxu0 %v3494
        %4578 = vmatpush1.bf16.msra.mxu0 %v3493
        %4579 = vmatprep.mubr.bf16.mxu0 %v1020
        %4580 = vmatmul.mubr.bf16.gmra.mrb[0].mxu0 %v1019
        %v4581 = vpop.f32.mrb[0].mxu0
        %v4582 = vadd.f32 %v4541, %v4581
        %v4583 = vpop.f32.mrb[0].mxu0
        %v4584 = vadd.f32 %v4543, %v4583
        %v4585 = vpop.f32.mrb[0].mxu0
        %v4586 = vpop.f32.mrb[0].mxu0
        %4587 = vdwg.mxu0
        %4588 = vmatprep.subr.bf16.mxu0 %v3502
        %4589 = vmatpush1.bf16.msra.mxu0 %v3501
        %4590 = vmatprep.subr.bf16.mxu0 %v3510
        %4591 = vmatpush1.bf16.msra.mxu0 %v3509
        %4592 = vmatprep.subr.bf16.mxu0 %v3518
        %4593 = vmatpush1.bf16.msra.mxu0 %v3517
        %4594 = vmatprep.subr.bf16.mxu0 %v3526
        %4595 = vmatpush1.bf16.msra.mxu0 %v3525
        %4596 = vmatprep.subr.bf16.mxu0 %v3534
        %4597 = vmatpush1.bf16.msra.mxu0 %v3533
        %4598 = vmatprep.subr.bf16.mxu0 %v3542
        %4599 = vmatpush1.bf16.msra.mxu0 %v3541
        %4600 = vmatprep.subr.bf16.mxu0 %v3550
        %4601 = vmatpush1.bf16.msra.mxu0 %v3549
        %4602 = vmatprep.subr.bf16.mxu0 %v3558
        %4603 = vmatpush1.bf16.msra.mxu0 %v3557
        %4604 = vmatprep.subr.bf16.mxu0 %v3566
        %4605 = vmatpush1.bf16.msra.mxu0 %v3565
        %4606 = vmatprep.subr.bf16.mxu0 %v3574
        %4607 = vmatpush1.bf16.msra.mxu0 %v3573
        %4608 = vmatprep.subr.bf16.mxu0 %v3582
        %4609 = vmatpush1.bf16.msra.mxu0 %v3581
        %4610 = vmatprep.subr.bf16.mxu0 %v3590
        %4611 = vmatpush1.bf16.msra.mxu0 %v3589
        %4612 = vmatprep.subr.bf16.mxu0 %v3598
        %4613 = vmatpush1.bf16.msra.mxu0 %v3597
        %4614 = vmatprep.subr.bf16.mxu0 %v3606
        %4615 = vmatpush1.bf16.msra.mxu0 %v3605
        %4616 = vmatprep.subr.bf16.mxu0 %v3614
        %4617 = vmatpush1.bf16.msra.mxu0 %v3613
        %4618 = vmatprep.subr.bf16.mxu0 %v3622
        %4619 = vmatpush1.bf16.msra.mxu0 %v3621
        %4620 = vmatprep.mubr.bf16.mxu0 %v1022
        %4621 = vmatmul.mubr.bf16.gmra.mrb[0].mxu0 %v1021
        %v4622 = vpop.f32.mrb[0].mxu0
        %v4623 = vadd.f32 %v4582, %v4622
        %v4624 = vpop.f32.mrb[0].mxu0
        %v4625 = vadd.f32 %v4584, %v4624
        %v4626 = vpop.f32.mrb[0].mxu0
        %v4627 = vpop.f32.mrb[0].mxu0
        %4628 = vdwg.mxu0
        %4629 = vmatprep.subr.bf16.mxu0 %v3120
        %4630 = vmatpush1.bf16.msra.mxu0 %v3119
        %4631 = vmatprep.subr.bf16.mxu0 %v3128
        %4632 = vmatpush1.bf16.msra.mxu0 %v3127
        %4633 = vmatprep.subr.bf16.mxu0 %v3136
        %4634 = vmatpush1.bf16.msra.mxu0 %v3135
        %4635 = vmatprep.subr.bf16.mxu0 %v3144
        %4636 = vmatpush1.bf16.msra.mxu0 %v3143
        %4637 = vmatprep.subr.bf16.mxu0 %v3152
        %4638 = vmatpush1.bf16.msra.mxu0 %v3151
        %4639 = vmatprep.subr.bf16.mxu0 %v3160
        %4640 = vmatpush1.bf16.msra.mxu0 %v3159
        %4641 = vmatprep.subr.bf16.mxu0 %v3168
        %4642 = vmatpush1.bf16.msra.mxu0 %v3167
        %4643 = vmatprep.subr.bf16.mxu0 %v3176
        %4644 = vmatpush1.bf16.msra.mxu0 %v3175
        %4645 = vmatprep.subr.bf16.mxu0 %v3184
        %4646 = vmatpush1.bf16.msra.mxu0 %v3183
        %4647 = vmatprep.subr.bf16.mxu0 %v3192
        %4648 = vmatpush1.bf16.msra.mxu0 %v3191
        %4649 = vmatprep.subr.bf16.mxu0 %v3200
        %4650 = vmatpush1.bf16.msra.mxu0 %v3199
        %4651 = vmatprep.subr.bf16.mxu0 %v3208
        %4652 = vmatpush1.bf16.msra.mxu0 %v3207
        %4653 = vmatprep.subr.bf16.mxu0 %v3216
        %4654 = vmatpush1.bf16.msra.mxu0 %v3215
        %4655 = vmatprep.subr.bf16.mxu0 %v3224
        %4656 = vmatpush1.bf16.msra.mxu0 %v3223
        %4657 = vmatprep.subr.bf16.mxu0 %v3232
        %4658 = vmatpush1.bf16.msra.mxu0 %v3231
        %4659 = vmatprep.subr.bf16.mxu0 %v3240
        %4660 = vmatpush1.bf16.msra.mxu0 %v3239
        %4661 = vmatprep.mubr.bf16.mxu0 %v1016
        %4662 = vmatmul.mubr.bf16.gmra.mrb[0].mxu0 %v1015
        %v4663 = vpop.f32.mrb[0].mxu0
        %v4664 = vadd.f32 %v1564, %v4663
        %v4665 = vpop.f32.mrb[0].mxu0
        %v4666 = vadd.f32 %v1568, %v4665
        %v4667 = vpop.f32.mrb[0].mxu0
        %v4668 = vpop.f32.mrb[0].mxu0
        %4669 = vdwg.mxu0
        %4670 = vmatprep.subr.bf16.mxu0 %v3248
        %4671 = vmatpush1.bf16.msra.mxu0 %v3247
        %4672 = vmatprep.subr.bf16.mxu0 %v3256
        %4673 = vmatpush1.bf16.msra.mxu0 %v3255
        %4674 = vmatprep.subr.bf16.mxu0 %v3264
        %4675 = vmatpush1.bf16.msra.mxu0 %v3263
        %4676 = vmatprep.subr.bf16.mxu0 %v3272
        %4677 = vmatpush1.bf16.msra.mxu0 %v3271
        %4678 = vmatprep.subr.bf16.mxu0 %v3280
        %4679 = vmatpush1.bf16.msra.mxu0 %v3279
        %4680 = vmatprep.subr.bf16.mxu0 %v3288
        %4681 = vmatpush1.bf16.msra.mxu0 %v3287
        %4682 = vmatprep.subr.bf16.mxu0 %v3296
        %4683 = vmatpush1.bf16.msra.mxu0 %v3295
        %4684 = vmatprep.subr.bf16.mxu0 %v3304
        %4685 = vmatpush1.bf16.msra.mxu0 %v3303
        %4686 = vmatprep.subr.bf16.mxu0 %v3312
        %4687 = vmatpush1.bf16.msra.mxu0 %v3311
        %4688 = vmatprep.subr.bf16.mxu0 %v3320
        %4689 = vmatpush1.bf16.msra.mxu0 %v3319
        %4690 = vmatprep.subr.bf16.mxu0 %v3328
        %4691 = vmatpush1.bf16.msra.mxu0 %v3327
        %4692 = vmatprep.subr.bf16.mxu0 %v3336
        %4693 = vmatpush1.bf16.msra.mxu0 %v3335
        %4694 = vmatprep.subr.bf16.mxu0 %v3344
        %4695 = vmatpush1.bf16.msra.mxu0 %v3343
        %4696 = vmatprep.subr.bf16.mxu0 %v3352
        %4697 = vmatpush1.bf16.msra.mxu0 %v3351
        %4698 = vmatprep.subr.bf16.mxu0 %v3360
        %4699 = vmatpush1.bf16.msra.mxu0 %v3359
        %4700 = vmatprep.subr.bf16.mxu0 %v3368
        %4701 = vmatpush1.bf16.msra.mxu0 %v3367
        %4702 = vmatprep.mubr.bf16.mxu0 %v1018
        %4703 = vmatmul.mubr.bf16.gmra.mrb[0].mxu0 %v1017
        %v4704 = vpop.f32.mrb[0].mxu0
        %v4705 = vadd.f32 %v4664, %v4704
        %v4706 = vpop.f32.mrb[0].mxu0
        %v4707 = vadd.f32 %v4666, %v4706
        %v4708 = vpop.f32.mrb[0].mxu0
        %v4709 = vpop.f32.mrb[0].mxu0
        %4710 = vdwg.mxu0
        %4711 = vmatprep.subr.bf16.mxu0 %v3376
        %4712 = vmatpush1.bf16.msra.mxu0 %v3375
        %4713 = vmatprep.subr.bf16.mxu0 %v3384
        %4714 = vmatpush1.bf16.msra.mxu0 %v3383
        %4715 = vmatprep.subr.bf16.mxu0 %v3392
        %4716 = vmatpush1.bf16.msra.mxu0 %v3391
        %4717 = vmatprep.subr.bf16.mxu0 %v3400
        %4718 = vmatpush1.bf16.msra.mxu0 %v3399
        %4719 = vmatprep.subr.bf16.mxu0 %v3408
        %4720 = vmatpush1.bf16.msra.mxu0 %v3407
        %4721 = vmatprep.subr.bf16.mxu0 %v3416
        %4722 = vmatpush1.bf16.msra.mxu0 %v3415
        %4723 = vmatprep.subr.bf16.mxu0 %v3424
        %4724 = vmatpush1.bf16.msra.mxu0 %v3423
        %4725 = vmatprep.subr.bf16.mxu0 %v3432
        %4726 = vmatpush1.bf16.msra.mxu0 %v3431
        %4727 = vmatprep.subr.bf16.mxu0 %v3440
        %4728 = vmatpush1.bf16.msra.mxu0 %v3439
        %4729 = vmatprep.subr.bf16.mxu0 %v3448
        %4730 = vmatpush1.bf16.msra.mxu0 %v3447
        %4731 = vmatprep.subr.bf16.mxu0 %v3456
        %4732 = vmatpush1.bf16.msra.mxu0 %v3455
        %4733 = vmatprep.subr.bf16.mxu0 %v3464
        %4734 = vmatpush1.bf16.msra.mxu0 %v3463
        %4735 = vmatprep.subr.bf16.mxu0 %v3472
        %4736 = vmatpush1.bf16.msra.mxu0 %v3471
        %4737 = vmatprep.subr.bf16.mxu0 %v3480
        %4738 = vmatpush1.bf16.msra.mxu0 %v3479
        %4739 = vmatprep.subr.bf16.mxu0 %v3488
        %4740 = vmatpush1.bf16.msra.mxu0 %v3487
        %4741 = vmatprep.subr.bf16.mxu0 %v3496
        %4742 = vmatpush1.bf16.msra.mxu0 %v3495
        %4743 = vmatprep.mubr.bf16.mxu0 %v1020
        %4744 = vmatmul.mubr.bf16.gmra.mrb[0].mxu0 %v1019
        %v4745 = vpop.f32.mrb[0].mxu0
        %v4746 = vadd.f32 %v4705, %v4745
        %v4747 = vpop.f32.mrb[0].mxu0
        %v4748 = vadd.f32 %v4707, %v4747
        %v4749 = vpop.f32.mrb[0].mxu0
        %v4750 = vpop.f32.mrb[0].mxu0
        %4751 = vdwg.mxu0
        %4752 = vmatprep.subr.bf16.mxu0 %v3504
        %4753 = vmatpush1.bf16.msra.mxu0 %v3503
        %4754 = vmatprep.subr.bf16.mxu0 %v3512
        %4755 = vmatpush1.bf16.msra.mxu0 %v3511
        %4756 = vmatprep.subr.bf16.mxu0 %v3520
        %4757 = vmatpush1.bf16.msra.mxu0 %v3519
        %4758 = vmatprep.subr.bf16.mxu0 %v3528
        %4759 = vmatpush1.bf16.msra.mxu0 %v3527
        %4760 = vmatprep.subr.bf16.mxu0 %v3536
        %4761 = vmatpush1.bf16.msra.mxu0 %v3535
        %4762 = vmatprep.subr.bf16.mxu0 %v3544
        %4763 = vmatpush1.bf16.msra.mxu0 %v3543
        %4764 = vmatprep.subr.bf16.mxu0 %v3552
        %4765 = vmatpush1.bf16.msra.mxu0 %v3551
        %4766 = vmatprep.subr.bf16.mxu0 %v3560
        %4767 = vmatpush1.bf16.msra.mxu0 %v3559
        %4768 = vmatprep.subr.bf16.mxu0 %v3568
        %4769 = vmatpush1.bf16.msra.mxu0 %v3567
        %4770 = vmatprep.subr.bf16.mxu0 %v3576
        %4771 = vmatpush1.bf16.msra.mxu0 %v3575
        %4772 = vmatprep.subr.bf16.mxu0 %v3584
        %4773 = vmatpush1.bf16.msra.mxu0 %v3583
        %4774 = vmatprep.subr.bf16.mxu0 %v3592
        %4775 = vmatpush1.bf16.msra.mxu0 %v3591
        %4776 = vmatprep.subr.bf16.mxu0 %v3600
        %4777 = vmatpush1.bf16.msra.mxu0 %v3599
        %4778 = vmatprep.subr.bf16.mxu0 %v3608
        %4779 = vmatpush1.bf16.msra.mxu0 %v3607
        %4780 = vmatprep.subr.bf16.mxu0 %v3616
        %4781 = vmatpush1.bf16.msra.mxu0 %v3615
        %4782 = vmatprep.subr.bf16.mxu0 %v3624
        %4783 = vmatpush1.bf16.msra.mxu0 %v3623
        %4784 = vmatprep.mubr.bf16.mxu0 %v1022
        %4785 = vmatmul.mubr.bf16.gmra.mrb[0].mxu0 %v1021
        %v4786 = vpop.f32.mrb[0].mxu0
        %v4787 = vadd.f32 %v4746, %v4786
        %v4788 = vpop.f32.mrb[0].mxu0
        %v4789 = vadd.f32 %v4748, %v4788
        %v4790 = vpop.f32.mrb[0].mxu0
        %v4791 = vpop.f32.mrb[0].mxu0
        %4792 = vdwg.mxu0
        %v4793 = vmax.f32 %v4295, 0.0
        %v4794 = vmax.f32 %v4297, 0.0
        %v4795 = vmax.f32 %v4459, 0.0
        %v4796 = vmax.f32 %v4461, 0.0
        %v4797 = vmax.f32 %v4623, 0.0
        %v4798 = vmax.f32 %v4625, 0.0
        %v4799 = vmax.f32 %v4787, 0.0
        %v4800 = vmax.f32 %v4789, 0.0
        %s4801 = sld [smem:[#allocation2]]
        %s4802 = sld [smem:[#allocation2 + $0x1]]
        %s4803 = sld [smem:[#allocation2 + $0x2]]
        %v4804 = vstv %s4801
        %v4805 = vadd.f32 %v4793, %v4804
        %v4806 = vadd.f32 %v4794, %v4804
        %v4807 = vadd.f32 %v4795, %v4804
        %v4808 = vadd.f32 %v4796, %v4804
        %v4809 = vadd.f32 %v4797, %v4804
        %v4810 = vadd.f32 %v4798, %v4804
        %v4811 = vadd.f32 %v4799, %v4804
        %v4812 = vadd.f32 %v4800, %v4804
        %v4813 = vmul.f32 %v4805, 0.05263158
        %v4814 = vmul.f32 %v4806, 0.05263158
        %v4815 = vmul.f32 %v4807, 0.05263158
        %v4816 = vmul.f32 %v4808, 0.05263158
        %v4817 = vmul.f32 %v4809, 0.05263158
        %v4818 = vmul.f32 %v4810, 0.05263158
        %v4819 = vmul.f32 %v4811, 0.05263158
        %v4820 = vmul.f32 %v4812, 0.05263158
        %v4821 = vstv %s4802
        %v4822 = vadd.f32 %v4821, 0.0
        %v4823 = vadd.f32 %v4822, %v4813
        %v4824 = vadd.f32 %v4822, %v4814
        %v4825 = vadd.f32 %v4822, %v4815
        %v4826 = vadd.f32 %v4822, %v4816
        %v4827 = vadd.f32 %v4822, %v4817
        %v4828 = vadd.f32 %v4822, %v4818
        %v4829 = vadd.f32 %v4822, %v4819
        %v4830 = vadd.f32 %v4822, %v4820
        %v4831 = vmul.f32 %v4822, %v4813
        %v4832 = vmul.f32 %v4822, %v4814
        %v4833 = vmul.f32 %v4822, %v4815
        %v4834 = vmul.f32 %v4822, %v4816
        %v4835 = vmul.f32 %v4822, %v4817
        %v4836 = vmul.f32 %v4822, %v4818
        %v4837 = vmul.f32 %v4822, %v4819
        %v4838 = vmul.f32 %v4822, %v4820
        %v4839 = vsub.f32 %v4813, %v4831
        %v4840 = vsub.f32 %v4814, %v4832
        %v4841 = vsub.f32 %v4815, %v4833
        %v4842 = vsub.f32 %v4816, %v4834
        %v4843 = vsub.f32 %v4817, %v4835
        %v4844 = vsub.f32 %v4818, %v4836
        %v4845 = vsub.f32 %v4819, %v4837
        %v4846 = vsub.f32 %v4820, %v4838
        %v4847 = vadd.f32 %v4823, %v4839
        %v4848 = vadd.f32 %v4824, %v4840
        %v4849 = vadd.f32 %v4825, %v4841
        %v4850 = vadd.f32 %v4826, %v4842
        %v4851 = vadd.f32 %v4827, %v4843
        %v4852 = vadd.f32 %v4828, %v4844
        %v4853 = vadd.f32 %v4829, %v4845
        %v4854 = vadd.f32 %v4830, %v4846
        %v4855 = vmul.f32 %v4823, %v4813
        %v4856 = vmul.f32 %v4824, %v4814
        %v4857 = vmul.f32 %v4825, %v4815
        %v4858 = vmul.f32 %v4826, %v4816
        %v4859 = vmul.f32 %v4827, %v4817
        %v4860 = vmul.f32 %v4828, %v4818
        %v4861 = vmul.f32 %v4829, %v4819
        %v4862 = vmul.f32 %v4830, %v4820
        %v4863 = vsub.f32 %v4839, %v4855
        %v4864 = vsub.f32 %v4840, %v4856
        %v4865 = vsub.f32 %v4841, %v4857
        %v4866 = vsub.f32 %v4842, %v4858
        %v4867 = vsub.f32 %v4843, %v4859
        %v4868 = vsub.f32 %v4844, %v4860
        %v4869 = vsub.f32 %v4845, %v4861
        %v4870 = vsub.f32 %v4846, %v4862
        %v4871 = vadd.f32 %v4847, %v4863
        %v4872 = vadd.f32 %v4848, %v4864
        %v4873 = vadd.f32 %v4849, %v4865
        %v4874 = vadd.f32 %v4850, %v4866
        %v4875 = vadd.f32 %v4851, %v4867
        %v4876 = vadd.f32 %v4852, %v4868
        %v4877 = vadd.f32 %v4853, %v4869
        %v4878 = vadd.f32 %v4854, %v4870
        %v4879 = vmul.f32 %v4847, %v4813
        %v4880 = vmul.f32 %v4848, %v4814
        %v4881 = vmul.f32 %v4849, %v4815
        %v4882 = vmul.f32 %v4850, %v4816
        %v4883 = vmul.f32 %v4851, %v4817
        %v4884 = vmul.f32 %v4852, %v4818
        %v4885 = vmul.f32 %v4853, %v4819
        %v4886 = vmul.f32 %v4854, %v4820
        %v4887 = vsub.f32 %v4863, %v4879
        %v4888 = vsub.f32 %v4864, %v4880
        %v4889 = vsub.f32 %v4865, %v4881
        %v4890 = vsub.f32 %v4866, %v4882
        %v4891 = vsub.f32 %v4867, %v4883
        %v4892 = vsub.f32 %v4868, %v4884
        %v4893 = vsub.f32 %v4869, %v4885
        %v4894 = vsub.f32 %v4870, %v4886
        %v4895 = vadd.f32 %v4871, %v4887
        %v4896 = vadd.f32 %v4872, %v4888
        %v4897 = vadd.f32 %v4873, %v4889
        %v4898 = vadd.f32 %v4874, %v4890
        %v4899 = vadd.f32 %v4875, %v4891
        %v4900 = vadd.f32 %v4876, %v4892
        %v4901 = vadd.f32 %v4877, %v4893
        %v4902 = vadd.f32 %v4878, %v4894
        %v4903 = vmul.f32 %v4871, %v4813
        %v4904 = vmul.f32 %v4872, %v4814
        %v4905 = vmul.f32 %v4873, %v4815
        %v4906 = vmul.f32 %v4874, %v4816
        %v4907 = vmul.f32 %v4875, %v4817
        %v4908 = vmul.f32 %v4876, %v4818
        %v4909 = vmul.f32 %v4877, %v4819
        %v4910 = vmul.f32 %v4878, %v4820
        %v4911 = vsub.f32 %v4887, %v4903
        %v4912 = vsub.f32 %v4888, %v4904
        %v4913 = vsub.f32 %v4889, %v4905
        %v4914 = vsub.f32 %v4890, %v4906
        %v4915 = vsub.f32 %v4891, %v4907
        %v4916 = vsub.f32 %v4892, %v4908
        %v4917 = vsub.f32 %v4893, %v4909
        %v4918 = vsub.f32 %v4894, %v4910
        %v4919 = vadd.f32 %v4895, %v4911
        %v4920 = vadd.f32 %v4896, %v4912
        %v4921 = vadd.f32 %v4897, %v4913
        %v4922 = vadd.f32 %v4898, %v4914
        %v4923 = vadd.f32 %v4899, %v4915
        %v4924 = vadd.f32 %v4900, %v4916
        %v4925 = vadd.f32 %v4901, %v4917
        %v4926 = vadd.f32 %v4902, %v4918
        %v4927 = vmul.f32 %v4895, %v4813
        %v4928 = vmul.f32 %v4896, %v4814
        %v4929 = vmul.f32 %v4897, %v4815
        %v4930 = vmul.f32 %v4898, %v4816
        %v4931 = vmul.f32 %v4899, %v4817
        %v4932 = vmul.f32 %v4900, %v4818
        %v4933 = vmul.f32 %v4901, %v4819
        %v4934 = vmul.f32 %v4902, %v4820
        %v4935 = vsub.f32 %v4911, %v4927
        %v4936 = vsub.f32 %v4912, %v4928
        %v4937 = vsub.f32 %v4913, %v4929
        %v4938 = vsub.f32 %v4914, %v4930
        %v4939 = vsub.f32 %v4915, %v4931
        %v4940 = vsub.f32 %v4916, %v4932
        %v4941 = vsub.f32 %v4917, %v4933
        %v4942 = vsub.f32 %v4918, %v4934
        %v4943 = vadd.f32 %v4919, %v4935
        %v4944 = vadd.f32 %v4920, %v4936
        %v4945 = vadd.f32 %v4921, %v4937
        %v4946 = vadd.f32 %v4922, %v4938
        %v4947 = vadd.f32 %v4923, %v4939
        %v4948 = vadd.f32 %v4924, %v4940
        %v4949 = vadd.f32 %v4925, %v4941
        %v4950 = vadd.f32 %v4926, %v4942
        %v4951 = vmul.f32 %v4919, %v4813
        %v4952 = vmul.f32 %v4920, %v4814
        %v4953 = vmul.f32 %v4921, %v4815
        %v4954 = vmul.f32 %v4922, %v4816
        %v4955 = vmul.f32 %v4923, %v4817
        %v4956 = vmul.f32 %v4924, %v4818
        %v4957 = vmul.f32 %v4925, %v4819
        %v4958 = vmul.f32 %v4926, %v4820
        %v4959 = vsub.f32 %v4935, %v4951
        %v4960 = vsub.f32 %v4936, %v4952
        %v4961 = vsub.f32 %v4937, %v4953
        %v4962 = vsub.f32 %v4938, %v4954
        %v4963 = vsub.f32 %v4939, %v4955
        %v4964 = vsub.f32 %v4940, %v4956
        %v4965 = vsub.f32 %v4941, %v4957
        %v4966 = vsub.f32 %v4942, %v4958
        %v4967 = vadd.f32 %v4943, %v4959
        %v4968 = vadd.f32 %v4944, %v4960
        %v4969 = vadd.f32 %v4945, %v4961
        %v4970 = vadd.f32 %v4946, %v4962
        %v4971 = vadd.f32 %v4947, %v4963
        %v4972 = vadd.f32 %v4948, %v4964
        %v4973 = vadd.f32 %v4949, %v4965
        %v4974 = vadd.f32 %v4950, %v4966
        %v4975 = vmul.f32 %v4943, %v4813
        %v4976 = vmul.f32 %v4944, %v4814
        %v4977 = vmul.f32 %v4945, %v4815
        %v4978 = vmul.f32 %v4946, %v4816
        %v4979 = vmul.f32 %v4947, %v4817
        %v4980 = vmul.f32 %v4948, %v4818
        %v4981 = vmul.f32 %v4949, %v4819
        %v4982 = vmul.f32 %v4950, %v4820
        %v4983 = vsub.f32 %v4959, %v4975
        %v4984 = vsub.f32 %v4960, %v4976
        %v4985 = vsub.f32 %v4961, %v4977
        %v4986 = vsub.f32 %v4962, %v4978
        %v4987 = vsub.f32 %v4963, %v4979
        %v4988 = vsub.f32 %v4964, %v4980
        %v4989 = vsub.f32 %v4965, %v4981
        %v4990 = vsub.f32 %v4966, %v4982
        %v4991 = vadd.f32 %v4967, %v4983
        %v4992 = vadd.f32 %v4968, %v4984
        %v4993 = vadd.f32 %v4969, %v4985
        %v4994 = vadd.f32 %v4970, %v4986
        %v4995 = vadd.f32 %v4971, %v4987
        %v4996 = vadd.f32 %v4972, %v4988
        %v4997 = vadd.f32 %v4973, %v4989
        %v4998 = vadd.f32 %v4974, %v4990
        %v4999 = vmul.f32 %v4967, %v4813
        %v5000 = vmul.f32 %v4968, %v4814
        %v5001 = vmul.f32 %v4969, %v4815
        %v5002 = vmul.f32 %v4970, %v4816
        %v5003 = vmul.f32 %v4971, %v4817
        %v5004 = vmul.f32 %v4972, %v4818
        %v5005 = vmul.f32 %v4973, %v4819
        %v5006 = vmul.f32 %v4974, %v4820
        %v5007 = vsub.f32 %v4983, %v4999
        %v5008 = vsub.f32 %v4984, %v5000
        %v5009 = vsub.f32 %v4985, %v5001
        %v5010 = vsub.f32 %v4986, %v5002
        %v5011 = vsub.f32 %v4987, %v5003
        %v5012 = vsub.f32 %v4988, %v5004
        %v5013 = vsub.f32 %v4989, %v5005
        %v5014 = vsub.f32 %v4990, %v5006
        %v5015 = vadd.f32 %v4991, %v5007
        %v5016 = vadd.f32 %v4992, %v5008
        %v5017 = vadd.f32 %v4993, %v5009
        %v5018 = vadd.f32 %v4994, %v5010
        %v5019 = vadd.f32 %v4995, %v5011
        %v5020 = vadd.f32 %v4996, %v5012
        %v5021 = vadd.f32 %v4997, %v5013
        %v5022 = vadd.f32 %v4998, %v5014
        %v5023 = vmul.f32 %v4991, %v4813
        %v5024 = vmul.f32 %v4992, %v4814
        %v5025 = vmul.f32 %v4993, %v4815
        %v5026 = vmul.f32 %v4994, %v4816
        %v5027 = vmul.f32 %v4995, %v4817
        %v5028 = vmul.f32 %v4996, %v4818
        %v5029 = vmul.f32 %v4997, %v4819
        %v5030 = vmul.f32 %v4998, %v4820
        %v5031 = vsub.f32 %v5007, %v5023
        %v5032 = vsub.f32 %v5008, %v5024
        %v5033 = vsub.f32 %v5009, %v5025
        %v5034 = vsub.f32 %v5010, %v5026
        %v5035 = vsub.f32 %v5011, %v5027
        %v5036 = vsub.f32 %v5012, %v5028
        %v5037 = vsub.f32 %v5013, %v5029
        %v5038 = vsub.f32 %v5014, %v5030
        %v5039 = vadd.f32 %v5015, %v5031
        %v5040 = vadd.f32 %v5016, %v5032
        %v5041 = vadd.f32 %v5017, %v5033
        %v5042 = vadd.f32 %v5018, %v5034
        %v5043 = vadd.f32 %v5019, %v5035
        %v5044 = vadd.f32 %v5020, %v5036
        %v5045 = vadd.f32 %v5021, %v5037
        %v5046 = vadd.f32 %v5022, %v5038
        %v5047 = vmul.f32 %v5015, %v4813
        %v5048 = vmul.f32 %v5016, %v4814
        %v5049 = vmul.f32 %v5017, %v4815
        %v5050 = vmul.f32 %v5018, %v4816
        %v5051 = vmul.f32 %v5019, %v4817
        %v5052 = vmul.f32 %v5020, %v4818
        %v5053 = vmul.f32 %v5021, %v4819
        %v5054 = vmul.f32 %v5022, %v4820
        %v5055 = vsub.f32 %v5031, %v5047
        %v5056 = vsub.f32 %v5032, %v5048
        %v5057 = vsub.f32 %v5033, %v5049
        %v5058 = vsub.f32 %v5034, %v5050
        %v5059 = vsub.f32 %v5035, %v5051
        %v5060 = vsub.f32 %v5036, %v5052
        %v5061 = vsub.f32 %v5037, %v5053
        %v5062 = vsub.f32 %v5038, %v5054
        %v5063 = vadd.f32 %v5039, %v5055
        %v5064 = vadd.f32 %v5040, %v5056
        %v5065 = vadd.f32 %v5041, %v5057
        %v5066 = vadd.f32 %v5042, %v5058
        %v5067 = vadd.f32 %v5043, %v5059
        %v5068 = vadd.f32 %v5044, %v5060
        %v5069 = vadd.f32 %v5045, %v5061
        %v5070 = vadd.f32 %v5046, %v5062
        %v5071 = vmul.f32 %v5039, %v4813
        %v5072 = vmul.f32 %v5040, %v4814
        %v5073 = vmul.f32 %v5041, %v4815
        %v5074 = vmul.f32 %v5042, %v4816
        %v5075 = vmul.f32 %v5043, %v4817
        %v5076 = vmul.f32 %v5044, %v4818
        %v5077 = vmul.f32 %v5045, %v4819
        %v5078 = vmul.f32 %v5046, %v4820
        %v5079 = vsub.f32 %v5055, %v5071
        %v5080 = vsub.f32 %v5056, %v5072
        %v5081 = vsub.f32 %v5057, %v5073
        %v5082 = vsub.f32 %v5058, %v5074
        %v5083 = vsub.f32 %v5059, %v5075
        %v5084 = vsub.f32 %v5060, %v5076
        %v5085 = vsub.f32 %v5061, %v5077
        %v5086 = vsub.f32 %v5062, %v5078
        %v5087 = vadd.f32 %v5063, %v5079
        %v5088 = vadd.f32 %v5064, %v5080
        %v5089 = vadd.f32 %v5065, %v5081
        %v5090 = vadd.f32 %v5066, %v5082
        %v5091 = vadd.f32 %v5067, %v5083
        %v5092 = vadd.f32 %v5068, %v5084
        %v5093 = vadd.f32 %v5069, %v5085
        %v5094 = vadd.f32 %v5070, %v5086
        %v5095 = vmul.f32 %v5063, %v4813
        %v5096 = vmul.f32 %v5064, %v4814
        %v5097 = vmul.f32 %v5065, %v4815
        %v5098 = vmul.f32 %v5066, %v4816
        %v5099 = vmul.f32 %v5067, %v4817
        %v5100 = vmul.f32 %v5068, %v4818
        %v5101 = vmul.f32 %v5069, %v4819
        %v5102 = vmul.f32 %v5070, %v4820
        %v5103 = vsub.f32 %v5079, %v5095
        %v5104 = vsub.f32 %v5080, %v5096
        %v5105 = vsub.f32 %v5081, %v5097
        %v5106 = vsub.f32 %v5082, %v5098
        %v5107 = vsub.f32 %v5083, %v5099
        %v5108 = vsub.f32 %v5084, %v5100
        %v5109 = vsub.f32 %v5085, %v5101
        %v5110 = vsub.f32 %v5086, %v5102
        %v5111 = vadd.f32 %v5087, %v5103
        %v5112 = vadd.f32 %v5088, %v5104
        %v5113 = vadd.f32 %v5089, %v5105
        %v5114 = vadd.f32 %v5090, %v5106
        %v5115 = vadd.f32 %v5091, %v5107
        %v5116 = vadd.f32 %v5092, %v5108
        %v5117 = vadd.f32 %v5093, %v5109
        %v5118 = vadd.f32 %v5094, %v5110
        %v5119 = vmul.f32 %v5087, %v4813
        %v5120 = vmul.f32 %v5088, %v4814
        %v5121 = vmul.f32 %v5089, %v4815
        %v5122 = vmul.f32 %v5090, %v4816
        %v5123 = vmul.f32 %v5091, %v4817
        %v5124 = vmul.f32 %v5092, %v4818
        %v5125 = vmul.f32 %v5093, %v4819
        %v5126 = vmul.f32 %v5094, %v4820
        %v5127 = vsub.f32 %v5103, %v5119
        %v5128 = vsub.f32 %v5104, %v5120
        %v5129 = vsub.f32 %v5105, %v5121
        %v5130 = vsub.f32 %v5106, %v5122
        %v5131 = vsub.f32 %v5107, %v5123
        %v5132 = vsub.f32 %v5108, %v5124
        %v5133 = vsub.f32 %v5109, %v5125
        %v5134 = vsub.f32 %v5110, %v5126
        %v5135 = vadd.f32 %v5111, %v5127
        %v5136 = vadd.f32 %v5112, %v5128
        %v5137 = vadd.f32 %v5113, %v5129
        %v5138 = vadd.f32 %v5114, %v5130
        %v5139 = vadd.f32 %v5115, %v5131
        %v5140 = vadd.f32 %v5116, %v5132
        %v5141 = vadd.f32 %v5117, %v5133
        %v5142 = vadd.f32 %v5118, %v5134
        %v5143 = vmul.f32 %v5111, %v4813
        %v5144 = vmul.f32 %v5112, %v4814
        %v5145 = vmul.f32 %v5113, %v4815
        %v5146 = vmul.f32 %v5114, %v4816
        %v5147 = vmul.f32 %v5115, %v4817
        %v5148 = vmul.f32 %v5116, %v4818
        %v5149 = vmul.f32 %v5117, %v4819
        %v5150 = vmul.f32 %v5118, %v4820
        %v5151 = vsub.f32 %v5127, %v5143
        %v5152 = vsub.f32 %v5128, %v5144
        %v5153 = vsub.f32 %v5129, %v5145
        %v5154 = vsub.f32 %v5130, %v5146
        %v5155 = vsub.f32 %v5131, %v5147
        %v5156 = vsub.f32 %v5132, %v5148
        %v5157 = vsub.f32 %v5133, %v5149
        %v5158 = vsub.f32 %v5134, %v5150
        %v5159 = vadd.f32 %v5135, %v5151
        %v5160 = vadd.f32 %v5136, %v5152
        %v5161 = vadd.f32 %v5137, %v5153
        %v5162 = vadd.f32 %v5138, %v5154
        %v5163 = vadd.f32 %v5139, %v5155
        %v5164 = vadd.f32 %v5140, %v5156
        %v5165 = vadd.f32 %v5141, %v5157
        %v5166 = vadd.f32 %v5142, %v5158
        %v5167 = vmul.f32 %v5135, %v4813
        %v5168 = vmul.f32 %v5136, %v4814
        %v5169 = vmul.f32 %v5137, %v4815
        %v5170 = vmul.f32 %v5138, %v4816
        %v5171 = vmul.f32 %v5139, %v4817
        %v5172 = vmul.f32 %v5140, %v4818
        %v5173 = vmul.f32 %v5141, %v4819
        %v5174 = vmul.f32 %v5142, %v4820
        %v5175 = vsub.f32 %v5151, %v5167
        %v5176 = vsub.f32 %v5152, %v5168
        %v5177 = vsub.f32 %v5153, %v5169
        %v5178 = vsub.f32 %v5154, %v5170
        %v5179 = vsub.f32 %v5155, %v5171
        %v5180 = vsub.f32 %v5156, %v5172
        %v5181 = vsub.f32 %v5157, %v5173
        %v5182 = vsub.f32 %v5158, %v5174
        %v5183 = vadd.f32 %v5159, %v5175
        %v5184 = vadd.f32 %v5160, %v5176
        %v5185 = vadd.f32 %v5161, %v5177
        %v5186 = vadd.f32 %v5162, %v5178
        %v5187 = vadd.f32 %v5163, %v5179
        %v5188 = vadd.f32 %v5164, %v5180
        %v5189 = vadd.f32 %v5165, %v5181
        %v5190 = vadd.f32 %v5166, %v5182
        %v5191 = vmul.f32 %v5159, %v4813
        %v5192 = vmul.f32 %v5160, %v4814
        %v5193 = vmul.f32 %v5161, %v4815
        %v5194 = vmul.f32 %v5162, %v4816
        %v5195 = vmul.f32 %v5163, %v4817
        %v5196 = vmul.f32 %v5164, %v4818
        %v5197 = vmul.f32 %v5165, %v4819
        %v5198 = vmul.f32 %v5166, %v4820
        %v5199 = vsub.f32 %v5175, %v5191
        %v5200 = vsub.f32 %v5176, %v5192
        %v5201 = vsub.f32 %v5177, %v5193
        %v5202 = vsub.f32 %v5178, %v5194
        %v5203 = vsub.f32 %v5179, %v5195
        %v5204 = vsub.f32 %v5180, %v5196
        %v5205 = vsub.f32 %v5181, %v5197
        %v5206 = vsub.f32 %v5182, %v5198
        %v5207 = vadd.f32 %v5183, %v5199
        %v5208 = vadd.f32 %v5184, %v5200
        %v5209 = vadd.f32 %v5185, %v5201
        %v5210 = vadd.f32 %v5186, %v5202
        %v5211 = vadd.f32 %v5187, %v5203
        %v5212 = vadd.f32 %v5188, %v5204
        %v5213 = vadd.f32 %v5189, %v5205
        %v5214 = vadd.f32 %v5190, %v5206
        %v5215 = vmul.f32 %v5183, %v4813
        %v5216 = vmul.f32 %v5184, %v4814
        %v5217 = vmul.f32 %v5185, %v4815
        %v5218 = vmul.f32 %v5186, %v4816
        %v5219 = vmul.f32 %v5187, %v4817
        %v5220 = vmul.f32 %v5188, %v4818
        %v5221 = vmul.f32 %v5189, %v4819
        %v5222 = vmul.f32 %v5190, %v4820
        %v5223 = vsub.f32 %v5199, %v5215
        %v5224 = vsub.f32 %v5200, %v5216
        %v5225 = vsub.f32 %v5201, %v5217
        %v5226 = vsub.f32 %v5202, %v5218
        %v5227 = vsub.f32 %v5203, %v5219
        %v5228 = vsub.f32 %v5204, %v5220
        %v5229 = vsub.f32 %v5205, %v5221
        %v5230 = vsub.f32 %v5206, %v5222
        %v5231 = vadd.f32 %v5207, %v5223
        %v5232 = vadd.f32 %v5208, %v5224
        %v5233 = vadd.f32 %v5209, %v5225
        %v5234 = vadd.f32 %v5210, %v5226
        %v5235 = vadd.f32 %v5211, %v5227
        %v5236 = vadd.f32 %v5212, %v5228
        %v5237 = vadd.f32 %v5213, %v5229
        %v5238 = vadd.f32 %v5214, %v5230
        %v5239 = vmul.f32 %v5207, %v4813
        %v5240 = vmul.f32 %v5208, %v4814
        %v5241 = vmul.f32 %v5209, %v4815
        %v5242 = vmul.f32 %v5210, %v4816
        %v5243 = vmul.f32 %v5211, %v4817
        %v5244 = vmul.f32 %v5212, %v4818
        %v5245 = vmul.f32 %v5213, %v4819
        %v5246 = vmul.f32 %v5214, %v4820
        %v5247 = vsub.f32 %v5223, %v5239
        %v5248 = vsub.f32 %v5224, %v5240
        %v5249 = vsub.f32 %v5225, %v5241
        %v5250 = vsub.f32 %v5226, %v5242
        %v5251 = vsub.f32 %v5227, %v5243
        %v5252 = vsub.f32 %v5228, %v5244
        %v5253 = vsub.f32 %v5229, %v5245
        %v5254 = vsub.f32 %v5230, %v5246
        %v5255 = vadd.f32 %v5231, %v5247
        %v5256 = vadd.f32 %v5232, %v5248
        %v5257 = vadd.f32 %v5233, %v5249
        %v5258 = vadd.f32 %v5234, %v5250
        %v5259 = vadd.f32 %v5235, %v5251
        %v5260 = vadd.f32 %v5236, %v5252
        %v5261 = vadd.f32 %v5237, %v5253
        %v5262 = vadd.f32 %v5238, %v5254
        %v5263 = vstv %s4803
        %v5264 = vmul.f32 %v5255, %v5263
        %v5265 = vmul.f32 %v5256, %v5263
        %v5266 = vmul.f32 %v5257, %v5263
        %v5267 = vmul.f32 %v5258, %v5263
        %v5268 = vmul.f32 %v5259, %v5263
        %v5269 = vmul.f32 %v5260, %v5263
        %v5270 = vmul.f32 %v5261, %v5263
        %v5271 = vmul.f32 %v5262, %v5263
        %v5272 = vpack.c.bf16 %v5264, %v5264
        %v5273 = vpack.c.bf16 %v5265, %v5265
        %v5274 = vpack.c.bf16 %v5266, %v5266
        %v5275 = vpack.c.bf16 %v5267, %v5267
        %v5276 = vpack.c.bf16 %v5268, %v5268
        %v5277 = vpack.c.bf16 %v5269, %v5269
        %v5278 = vpack.c.bf16 %v5270, %v5270
        %v5279 = vpack.c.bf16 %v5271, %v5271
        %v5280 = vld [vmem:[#allocation13] sm:$0xf]
        %v5281 = vld [vmem:[#allocation13 + $0x4] sm:$0xf]
        %v5282 = vld [vmem:[#allocation13 + $0x8] sm:$0xf]
        %v5283 = vld [vmem:[#allocation13 + $0xc] sm:$0xf]
        %v5284 = vld [vmem:[#allocation13 + $0x10] sm:$0xf]
        %v5285 = vld [vmem:[#allocation13 + $0x14] sm:$0xf]
        %v5286 = vld [vmem:[#allocation13 + $0x18] sm:$0xf]
        %v5287 = vld [vmem:[#allocation13 + $0x1c] sm:$0xf]
        %v5288 = vld [vmem:[#allocation13 + $0x20] sm:$0xf]
        %v5289 = vld [vmem:[#allocation13 + $0x24] sm:$0xf]
        %v5290 = vld [vmem:[#allocation13 + $0x28] sm:$0xf]
        %v5291 = vld [vmem:[#allocation13 + $0x2c] sm:$0xf]
        %v5292 = vld [vmem:[#allocation13 + $0x30] sm:$0xf]
        %v5293 = vld [vmem:[#allocation13 + $0x34] sm:$0xf]
        %v5294 = vld [vmem:[#allocation13 + $0x38] sm:$0xf]
        %v5295 = vld [vmem:[#allocation13 + $0x3c] sm:$0xf]
        %v5296 = vld [vmem:[#allocation13 + $0x40] sm:$0xf]
        %v5297 = vld [vmem:[#allocation13 + $0x44] sm:$0xf]
        %v5298 = vld [vmem:[#allocation13 + $0x48] sm:$0xf]
        %v5299 = vld [vmem:[#allocation13 + $0x4c] sm:$0xf]
        %v5300 = vld [vmem:[#allocation13 + $0x50] sm:$0xf]
        %v5301 = vld [vmem:[#allocation13 + $0x54] sm:$0xf]
        %v5302 = vld [vmem:[#allocation13 + $0x58] sm:$0xf]
        %v5303 = vld [vmem:[#allocation13 + $0x5c] sm:$0xf]
        %v5304 = vld [vmem:[#allocation13 + $0x60] sm:$0xf]
        %v5305 = vld [vmem:[#allocation13 + $0x64] sm:$0xf]
        %v5306 = vld [vmem:[#allocation13 + $0x68] sm:$0xf]
        %v5307 = vld [vmem:[#allocation13 + $0x6c] sm:$0xf]
        %v5308 = vld [vmem:[#allocation13 + $0x70] sm:$0xf]
        %v5309 = vld [vmem:[#allocation13 + $0x74] sm:$0xf]
        %v5310 = vld [vmem:[#allocation13 + $0x78] sm:$0xf]
        %v5311 = vld [vmem:[#allocation13 + $0x7c] sm:$0xf]
        %v5312 = vld [vmem:[#allocation13 + $0x80] sm:$0xf]
        %v5313 = vld [vmem:[#allocation13 + $0x84] sm:$0xf]
        %v5314 = vld [vmem:[#allocation13 + $0x88] sm:$0xf]
        %v5315 = vld [vmem:[#allocation13 + $0x8c] sm:$0xf]
        %v5316 = vld [vmem:[#allocation13 + $0x90] sm:$0xf]
        %v5317 = vld [vmem:[#allocation13 + $0x94] sm:$0xf]
        %v5318 = vld [vmem:[#allocation13 + $0x98] sm:$0xf]
        %v5319 = vld [vmem:[#allocation13 + $0x9c] sm:$0xf]
        %v5320 = vld [vmem:[#allocation13 + $0xa0] sm:$0xf]
        %v5321 = vld [vmem:[#allocation13 + $0xa4] sm:$0xf]
        %v5322 = vld [vmem:[#allocation13 + $0xa8] sm:$0xf]
        %v5323 = vld [vmem:[#allocation13 + $0xac] sm:$0xf]
        %v5324 = vld [vmem:[#allocation13 + $0xb0] sm:$0xf]
        %v5325 = vld [vmem:[#allocation13 + $0xb4] sm:$0xf]
        %v5326 = vld [vmem:[#allocation13 + $0xb8] sm:$0xf]
        %v5327 = vld [vmem:[#allocation13 + $0xbc] sm:$0xf]
        %v5328 = vld [vmem:[#allocation13 + $0xc0] sm:$0xf]
        %v5329 = vld [vmem:[#allocation13 + $0xc4] sm:$0xf]
        %v5330 = vld [vmem:[#allocation13 + $0xc8] sm:$0xf]
        %v5331 = vld [vmem:[#allocation13 + $0xcc] sm:$0xf]
        %v5332 = vld [vmem:[#allocation13 + $0xd0] sm:$0xf]
        %v5333 = vld [vmem:[#allocation13 + $0xd4] sm:$0xf]
        %v5334 = vld [vmem:[#allocation13 + $0xd8] sm:$0xf]
        %v5335 = vld [vmem:[#allocation13 + $0xdc] sm:$0xf]
        %v5336 = vld [vmem:[#allocation13 + $0xe0] sm:$0xf]
        %v5337 = vld [vmem:[#allocation13 + $0xe4] sm:$0xf]
        %v5338 = vld [vmem:[#allocation13 + $0xe8] sm:$0xf]
        %v5339 = vld [vmem:[#allocation13 + $0xec] sm:$0xf]
        %v5340 = vld [vmem:[#allocation13 + $0xf0] sm:$0xf]
        %v5341 = vld [vmem:[#allocation13 + $0xf4] sm:$0xf]
        %v5342 = vld [vmem:[#allocation13 + $0xf8] sm:$0xf]
        %v5343 = vld [vmem:[#allocation13 + $0xfc] sm:$0xf]
        %v5344 = vld [vmem:[#allocation13 + $0x100] sm:$0xf]
        %v5345 = vld [vmem:[#allocation13 + $0x104] sm:$0xf]
        %v5346 = vld [vmem:[#allocation13 + $0x108] sm:$0xf]
        %v5347 = vld [vmem:[#allocation13 + $0x10c] sm:$0xf]
        %v5348 = vld [vmem:[#allocation13 + $0x110] sm:$0xf]
        %v5349 = vld [vmem:[#allocation13 + $0x114] sm:$0xf]
        %v5350 = vld [vmem:[#allocation13 + $0x118] sm:$0xf]
        %v5351 = vld [vmem:[#allocation13 + $0x11c] sm:$0xf]
        %v5352 = vld [vmem:[#allocation13 + $0x120] sm:$0xf]
        %v5353 = vld [vmem:[#allocation13 + $0x124] sm:$0xf]
        %v5354 = vld [vmem:[#allocation13 + $0x128] sm:$0xf]
        %v5355 = vld [vmem:[#allocation13 + $0x12c] sm:$0xf]
        %v5356 = vld [vmem:[#allocation13 + $0x130] sm:$0xf]
        %v5357 = vld [vmem:[#allocation13 + $0x134] sm:$0xf]
        %v5358 = vld [vmem:[#allocation13 + $0x138] sm:$0xf]
        %v5359 = vld [vmem:[#allocation13 + $0x13c] sm:$0xf]
        %v5360 = vld [vmem:[#allocation13 + $0x140] sm:$0xf]
        %v5361 = vld [vmem:[#allocation13 + $0x144] sm:$0xf]
        %v5362 = vld [vmem:[#allocation13 + $0x148] sm:$0xf]
        %v5363 = vld [vmem:[#allocation13 + $0x14c] sm:$0xf]
        %v5364 = vld [vmem:[#allocation13 + $0x150] sm:$0xf]
        %v5365 = vld [vmem:[#allocation13 + $0x154] sm:$0xf]
        %v5366 = vld [vmem:[#allocation13 + $0x158] sm:$0xf]
        %v5367 = vld [vmem:[#allocation13 + $0x15c] sm:$0xf]
        %v5368 = vld [vmem:[#allocation13 + $0x160] sm:$0xf]
        %v5369 = vld [vmem:[#allocation13 + $0x164] sm:$0xf]
        %v5370 = vld [vmem:[#allocation13 + $0x168] sm:$0xf]
        %v5371 = vld [vmem:[#allocation13 + $0x16c] sm:$0xf]
        %v5372 = vld [vmem:[#allocation13 + $0x170] sm:$0xf]
        %v5373 = vld [vmem:[#allocation13 + $0x174] sm:$0xf]
        %v5374 = vld [vmem:[#allocation13 + $0x178] sm:$0xf]
        %v5375 = vld [vmem:[#allocation13 + $0x17c] sm:$0xf]
        %v5376 = vld [vmem:[#allocation13 + $0x180] sm:$0xf]
        %v5377 = vld [vmem:[#allocation13 + $0x184] sm:$0xf]
        %v5378 = vld [vmem:[#allocation13 + $0x188] sm:$0xf]
        %v5379 = vld [vmem:[#allocation13 + $0x18c] sm:$0xf]
        %v5380 = vld [vmem:[#allocation13 + $0x190] sm:$0xf]
        %v5381 = vld [vmem:[#allocation13 + $0x194] sm:$0xf]
        %v5382 = vld [vmem:[#allocation13 + $0x198] sm:$0xf]
        %v5383 = vld [vmem:[#allocation13 + $0x19c] sm:$0xf]
        %v5384 = vld [vmem:[#allocation13 + $0x1a0] sm:$0xf]
        %v5385 = vld [vmem:[#allocation13 + $0x1a4] sm:$0xf]
        %v5386 = vld [vmem:[#allocation13 + $0x1a8] sm:$0xf]
        %v5387 = vld [vmem:[#allocation13 + $0x1ac] sm:$0xf]
        %v5388 = vld [vmem:[#allocation13 + $0x1b0] sm:$0xf]
        %v5389 = vld [vmem:[#allocation13 + $0x1b4] sm:$0xf]
        %v5390 = vld [vmem:[#allocation13 + $0x1b8] sm:$0xf]
        %v5391 = vld [vmem:[#allocation13 + $0x1bc] sm:$0xf]
        %v5392 = vld [vmem:[#allocation13 + $0x1c0] sm:$0xf]
        %v5393 = vld [vmem:[#allocation13 + $0x1c4] sm:$0xf]
        %v5394 = vld [vmem:[#allocation13 + $0x1c8] sm:$0xf]
        %v5395 = vld [vmem:[#allocation13 + $0x1cc] sm:$0xf]
        %v5396 = vld [vmem:[#allocation13 + $0x1d0] sm:$0xf]
        %v5397 = vld [vmem:[#allocation13 + $0x1d4] sm:$0xf]
        %v5398 = vld [vmem:[#allocation13 + $0x1d8] sm:$0xf]
        %v5399 = vld [vmem:[#allocation13 + $0x1dc] sm:$0xf]
        %v5400 = vld [vmem:[#allocation13 + $0x1e0] sm:$0xf]
        %v5401 = vld [vmem:[#allocation13 + $0x1e4] sm:$0xf]
        %v5402 = vld [vmem:[#allocation13 + $0x1e8] sm:$0xf]
        %v5403 = vld [vmem:[#allocation13 + $0x1ec] sm:$0xf]
        %v5404 = vld [vmem:[#allocation13 + $0x1f0] sm:$0xf]
        %v5405 = vld [vmem:[#allocation13 + $0x1f4] sm:$0xf]
        %v5406 = vld [vmem:[#allocation13 + $0x1f8] sm:$0xf]
        %v5407 = vld [vmem:[#allocation13 + $0x1fc] sm:$0xf]
        %v5408 = vld [vmem:[#allocation15] sm:$0x1]
        %v5410 = vlaneseq
        %v5411 = vshrl.u32 %v5410, 7
        %v5412 = vsub.s32 0, %v5411
        %v5413 = vrot.slane %v5408, %v5412
        %v5543 = vunpack.c.l.b16 %v5280
        %v5544 = vunpack.c.l.b16 %v5281
        %v5545 = vunpack.c.l.b16 %v5282
        %v5546 = vunpack.c.l.b16 %v5283
        %v5547 = vunpack.c.l.b16 %v5284
        %v5548 = vunpack.c.l.b16 %v5285
        %v5549 = vunpack.c.l.b16 %v5286
        %v5550 = vunpack.c.l.b16 %v5287
        %v5551 = vunpack.c.l.b16 %v5288
        %v5552 = vunpack.c.l.b16 %v5289
        %v5553 = vunpack.c.l.b16 %v5290
        %v5554 = vunpack.c.l.b16 %v5291
        %v5555 = vunpack.c.l.b16 %v5292
        %v5556 = vunpack.c.l.b16 %v5293
        %v5557 = vunpack.c.l.b16 %v5294
        %v5558 = vunpack.c.l.b16 %v5295
        %v5559 = vunpack.c.l.b16 %v5296
        %v5560 = vunpack.c.l.b16 %v5297
        %v5561 = vunpack.c.l.b16 %v5298
        %v5562 = vunpack.c.l.b16 %v5299
        %v5563 = vunpack.c.l.b16 %v5300
        %v5564 = vunpack.c.l.b16 %v5301
        %v5565 = vunpack.c.l.b16 %v5302
        %v5566 = vunpack.c.l.b16 %v5303
        %v5567 = vunpack.c.l.b16 %v5304
        %v5568 = vunpack.c.l.b16 %v5305
        %v5569 = vunpack.c.l.b16 %v5306
        %v5570 = vunpack.c.l.b16 %v5307
        %v5571 = vunpack.c.l.b16 %v5308
        %v5572 = vunpack.c.l.b16 %v5309
        %v5573 = vunpack.c.l.b16 %v5310
        %v5574 = vunpack.c.l.b16 %v5311
        %v5575 = vunpack.c.l.b16 %v5312
        %v5576 = vunpack.c.l.b16 %v5313
        %v5577 = vunpack.c.l.b16 %v5314
        %v5578 = vunpack.c.l.b16 %v5315
        %v5579 = vunpack.c.l.b16 %v5316
        %v5580 = vunpack.c.l.b16 %v5317
        %v5581 = vunpack.c.l.b16 %v5318
        %v5582 = vunpack.c.l.b16 %v5319
        %v5583 = vunpack.c.l.b16 %v5320
        %v5584 = vunpack.c.l.b16 %v5321
        %v5585 = vunpack.c.l.b16 %v5322
        %v5586 = vunpack.c.l.b16 %v5323
        %v5587 = vunpack.c.l.b16 %v5324
        %v5588 = vunpack.c.l.b16 %v5325
        %v5589 = vunpack.c.l.b16 %v5326
        %v5590 = vunpack.c.l.b16 %v5327
        %v5591 = vunpack.c.l.b16 %v5328
        %v5592 = vunpack.c.l.b16 %v5329
        %v5593 = vunpack.c.l.b16 %v5330
        %v5594 = vunpack.c.l.b16 %v5331
        %v5595 = vunpack.c.l.b16 %v5332
        %v5596 = vunpack.c.l.b16 %v5333
        %v5597 = vunpack.c.l.b16 %v5334
        %v5598 = vunpack.c.l.b16 %v5335
        %v5599 = vunpack.c.l.b16 %v5336
        %v5600 = vunpack.c.l.b16 %v5337
        %v5601 = vunpack.c.l.b16 %v5338
        %v5602 = vunpack.c.l.b16 %v5339
        %v5603 = vunpack.c.l.b16 %v5340
        %v5604 = vunpack.c.l.b16 %v5341
        %v5605 = vunpack.c.l.b16 %v5342
        %v5606 = vunpack.c.l.b16 %v5343
        %v5607 = vunpack.c.l.b16 %v5344
        %v5608 = vunpack.c.l.b16 %v5345
        %v5609 = vunpack.c.l.b16 %v5346
        %v5610 = vunpack.c.l.b16 %v5347
        %v5611 = vunpack.c.l.b16 %v5348
        %v5612 = vunpack.c.l.b16 %v5349
        %v5613 = vunpack.c.l.b16 %v5350
        %v5614 = vunpack.c.l.b16 %v5351
        %v5615 = vunpack.c.l.b16 %v5352
        %v5616 = vunpack.c.l.b16 %v5353
        %v5617 = vunpack.c.l.b16 %v5354
        %v5618 = vunpack.c.l.b16 %v5355
        %v5619 = vunpack.c.l.b16 %v5356
        %v5620 = vunpack.c.l.b16 %v5357
        %v5621 = vunpack.c.l.b16 %v5358
        %v5622 = vunpack.c.l.b16 %v5359
        %v5623 = vunpack.c.l.b16 %v5360
        %v5624 = vunpack.c.l.b16 %v5361
        %v5625 = vunpack.c.l.b16 %v5362
        %v5626 = vunpack.c.l.b16 %v5363
        %v5627 = vunpack.c.l.b16 %v5364
        %v5628 = vunpack.c.l.b16 %v5365
        %v5629 = vunpack.c.l.b16 %v5366
        %v5630 = vunpack.c.l.b16 %v5367
        %v5631 = vunpack.c.l.b16 %v5368
        %v5632 = vunpack.c.l.b16 %v5369
        %v5633 = vunpack.c.l.b16 %v5370
        %v5634 = vunpack.c.l.b16 %v5371
        %v5635 = vunpack.c.l.b16 %v5372
        %v5636 = vunpack.c.l.b16 %v5373
        %v5637 = vunpack.c.l.b16 %v5374
        %v5638 = vunpack.c.l.b16 %v5375
        %v5639 = vunpack.c.l.b16 %v5376
        %v5640 = vunpack.c.l.b16 %v5377
        %v5641 = vunpack.c.l.b16 %v5378
        %v5642 = vunpack.c.l.b16 %v5379
        %v5643 = vunpack.c.l.b16 %v5380
        %v5644 = vunpack.c.l.b16 %v5381
        %v5645 = vunpack.c.l.b16 %v5382
        %v5646 = vunpack.c.l.b16 %v5383
        %v5647 = vunpack.c.l.b16 %v5384
        %v5648 = vunpack.c.l.b16 %v5385
        %v5649 = vunpack.c.l.b16 %v5386
        %v5650 = vunpack.c.l.b16 %v5387
        %v5651 = vunpack.c.l.b16 %v5388
        %v5652 = vunpack.c.l.b16 %v5389
        %v5653 = vunpack.c.l.b16 %v5390
        %v5654 = vunpack.c.l.b16 %v5391
        %v5655 = vunpack.c.l.b16 %v5392
        %v5656 = vunpack.c.l.b16 %v5393
        %v5657 = vunpack.c.l.b16 %v5394
        %v5658 = vunpack.c.l.b16 %v5395
        %v5659 = vunpack.c.l.b16 %v5396
        %v5660 = vunpack.c.l.b16 %v5397
        %v5661 = vunpack.c.l.b16 %v5398
        %v5662 = vunpack.c.l.b16 %v5399
        %v5663 = vunpack.c.l.b16 %v5400
        %v5664 = vunpack.c.l.b16 %v5401
        %v5665 = vunpack.c.l.b16 %v5402
        %v5666 = vunpack.c.l.b16 %v5403
        %v5667 = vunpack.c.l.b16 %v5404
        %v5668 = vunpack.c.l.b16 %v5405
        %v5669 = vunpack.c.l.b16 %v5406
        %v5670 = vunpack.c.l.b16 %v5407
        %v5671 = vpack.c.b16 %v5544, %v5543
        %v5672 = vpack.c.b16 %v5546, %v5545
        %v5673 = vpack.c.b16 %v5548, %v5547
        %v5674 = vpack.c.b16 %v5550, %v5549
        %v5675 = vpack.c.b16 %v5552, %v5551
        %v5676 = vpack.c.b16 %v5554, %v5553
        %v5677 = vpack.c.b16 %v5556, %v5555
        %v5678 = vpack.c.b16 %v5558, %v5557
        %v5679 = vpack.c.b16 %v5560, %v5559
        %v5680 = vpack.c.b16 %v5562, %v5561
        %v5681 = vpack.c.b16 %v5564, %v5563
        %v5682 = vpack.c.b16 %v5566, %v5565
        %v5683 = vpack.c.b16 %v5568, %v5567
        %v5684 = vpack.c.b16 %v5570, %v5569
        %v5685 = vpack.c.b16 %v5572, %v5571
        %v5686 = vpack.c.b16 %v5574, %v5573
        %v5687 = vpack.c.b16 %v5576, %v5575
        %v5688 = vpack.c.b16 %v5578, %v5577
        %v5689 = vpack.c.b16 %v5580, %v5579
        %v5690 = vpack.c.b16 %v5582, %v5581
        %v5691 = vpack.c.b16 %v5584, %v5583
        %v5692 = vpack.c.b16 %v5586, %v5585
        %v5693 = vpack.c.b16 %v5588, %v5587
        %v5694 = vpack.c.b16 %v5590, %v5589
        %v5695 = vpack.c.b16 %v5592, %v5591
        %v5696 = vpack.c.b16 %v5594, %v5593
        %v5697 = vpack.c.b16 %v5596, %v5595
        %v5698 = vpack.c.b16 %v5598, %v5597
        %v5699 = vpack.c.b16 %v5600, %v5599
        %v5700 = vpack.c.b16 %v5602, %v5601
        %v5701 = vpack.c.b16 %v5604, %v5603
        %v5702 = vpack.c.b16 %v5606, %v5605
        %v5703 = vpack.c.b16 %v5608, %v5607
        %v5704 = vpack.c.b16 %v5610, %v5609
        %v5705 = vpack.c.b16 %v5612, %v5611
        %v5706 = vpack.c.b16 %v5614, %v5613
        %v5707 = vpack.c.b16 %v5616, %v5615
        %v5708 = vpack.c.b16 %v5618, %v5617
        %v5709 = vpack.c.b16 %v5620, %v5619
        %v5710 = vpack.c.b16 %v5622, %v5621
        %v5711 = vpack.c.b16 %v5624, %v5623
        %v5712 = vpack.c.b16 %v5626, %v5625
        %v5713 = vpack.c.b16 %v5628, %v5627
        %v5714 = vpack.c.b16 %v5630, %v5629
        %v5715 = vpack.c.b16 %v5632, %v5631
        %v5716 = vpack.c.b16 %v5634, %v5633
        %v5717 = vpack.c.b16 %v5636, %v5635
        %v5718 = vpack.c.b16 %v5638, %v5637
        %v5719 = vpack.c.b16 %v5640, %v5639
        %v5720 = vpack.c.b16 %v5642, %v5641
        %v5721 = vpack.c.b16 %v5644, %v5643
        %v5722 = vpack.c.b16 %v5646, %v5645
        %v5723 = vpack.c.b16 %v5648, %v5647
        %v5724 = vpack.c.b16 %v5650, %v5649
        %v5725 = vpack.c.b16 %v5652, %v5651
        %v5726 = vpack.c.b16 %v5654, %v5653
        %v5727 = vpack.c.b16 %v5656, %v5655
        %v5728 = vpack.c.b16 %v5658, %v5657
        %v5729 = vpack.c.b16 %v5660, %v5659
        %v5730 = vpack.c.b16 %v5662, %v5661
        %v5731 = vpack.c.b16 %v5664, %v5663
        %v5732 = vpack.c.b16 %v5666, %v5665
        %v5733 = vpack.c.b16 %v5668, %v5667
        %v5734 = vpack.c.b16 %v5670, %v5669
        %5799 = vmatprep.subr.bf16.mxu0 0
        %5800 = vmatpush1.bf16.msra.mxu0 %v5671
        %5801 = vmatprep.subr.bf16.mxu0 0
        %5802 = vmatpush1.bf16.msra.mxu0 %v5672
        %5803 = vmatprep.subr.bf16.mxu0 0
        %5804 = vmatpush1.bf16.msra.mxu0 %v5673
        %5805 = vmatprep.subr.bf16.mxu0 0
        %5806 = vmatpush1.bf16.msra.mxu0 %v5674
        %5807 = vmatprep.subr.bf16.mxu0 0
        %5808 = vmatpush1.bf16.msra.mxu0 %v5675
        %5809 = vmatprep.subr.bf16.mxu0 0
        %5810 = vmatpush1.bf16.msra.mxu0 %v5676
        %5811 = vmatprep.subr.bf16.mxu0 0
        %5812 = vmatpush1.bf16.msra.mxu0 %v5677
        %5813 = vmatprep.subr.bf16.mxu0 0
        %5814 = vmatpush1.bf16.msra.mxu0 %v5678
        %5815 = vmatprep.subr.bf16.mxu0 0
        %5816 = vmatpush1.bf16.msra.mxu0 %v5679
        %5817 = vmatprep.subr.bf16.mxu0 0
        %5818 = vmatpush1.bf16.msra.mxu0 %v5680
        %5819 = vmatprep.subr.bf16.mxu0 0
        %5820 = vmatpush1.bf16.msra.mxu0 %v5681
        %5821 = vmatprep.subr.bf16.mxu0 0
        %5822 = vmatpush1.bf16.msra.mxu0 %v5682
        %5823 = vmatprep.subr.bf16.mxu0 0
        %5824 = vmatpush1.bf16.msra.mxu0 %v5683
        %5825 = vmatprep.subr.bf16.mxu0 0
        %5826 = vmatpush1.bf16.msra.mxu0 %v5684
        %5827 = vmatprep.subr.bf16.mxu0 0
        %5828 = vmatpush1.bf16.msra.mxu0 %v5685
        %5829 = vmatprep.subr.bf16.mxu0 0
        %5830 = vmatpush1.bf16.msra.mxu0 %v5686
        %5831 = vmatprep.mubr.bf16.mxu0 %v5273
        %5832 = vmatmul.mubr.bf16.gmra.mrb[0].mxu0 %v5272
        %v5833 = vpop.f32.mrb[0].mxu0
        %v5834 = vadd.f32 %v5413, %v5833
        %v5835 = vpop.f32.mrb[0].mxu0
        %v5836 = vpop.f32.mrb[0].mxu0
        %v5837 = vpop.f32.mrb[0].mxu0
        %5838 = vdwg.mxu0
        %5839 = vmatprep.subr.bf16.mxu0 0
        %5840 = vmatpush1.bf16.msra.mxu0 %v5687
        %5841 = vmatprep.subr.bf16.mxu0 0
        %5842 = vmatpush1.bf16.msra.mxu0 %v5688
        %5843 = vmatprep.subr.bf16.mxu0 0
        %5844 = vmatpush1.bf16.msra.mxu0 %v5689
        %5845 = vmatprep.subr.bf16.mxu0 0
        %5846 = vmatpush1.bf16.msra.mxu0 %v5690
        %5847 = vmatprep.subr.bf16.mxu0 0
        %5848 = vmatpush1.bf16.msra.mxu0 %v5691
        %5849 = vmatprep.subr.bf16.mxu0 0
        %5850 = vmatpush1.bf16.msra.mxu0 %v5692
        %5851 = vmatprep.subr.bf16.mxu0 0
        %5852 = vmatpush1.bf16.msra.mxu0 %v5693
        %5853 = vmatprep.subr.bf16.mxu0 0
        %5854 = vmatpush1.bf16.msra.mxu0 %v5694
        %5855 = vmatprep.subr.bf16.mxu0 0
        %5856 = vmatpush1.bf16.msra.mxu0 %v5695
        %5857 = vmatprep.subr.bf16.mxu0 0
        %5858 = vmatpush1.bf16.msra.mxu0 %v5696
        %5859 = vmatprep.subr.bf16.mxu0 0
        %5860 = vmatpush1.bf16.msra.mxu0 %v5697
        %5861 = vmatprep.subr.bf16.mxu0 0
        %5862 = vmatpush1.bf16.msra.mxu0 %v5698
        %5863 = vmatprep.subr.bf16.mxu0 0
        %5864 = vmatpush1.bf16.msra.mxu0 %v5699
        %5865 = vmatprep.subr.bf16.mxu0 0
        %5866 = vmatpush1.bf16.msra.mxu0 %v5700
        %5867 = vmatprep.subr.bf16.mxu0 0
        %5868 = vmatpush1.bf16.msra.mxu0 %v5701
        %5869 = vmatprep.subr.bf16.mxu0 0
        %5870 = vmatpush1.bf16.msra.mxu0 %v5702
        %5871 = vmatprep.mubr.bf16.mxu0 %v5275
        %5872 = vmatmul.mubr.bf16.gmra.mrb[0].mxu0 %v5274
        %v5873 = vpop.f32.mrb[0].mxu0
        %v5874 = vadd.f32 %v5834, %v5873
        %v5875 = vpop.f32.mrb[0].mxu0
        %v5876 = vpop.f32.mrb[0].mxu0
        %v5877 = vpop.f32.mrb[0].mxu0
        %5878 = vdwg.mxu0
        %5879 = vmatprep.subr.bf16.mxu0 0
        %5880 = vmatpush1.bf16.msra.mxu0 %v5703
        %5881 = vmatprep.subr.bf16.mxu0 0
        %5882 = vmatpush1.bf16.msra.mxu0 %v5704
        %5883 = vmatprep.subr.bf16.mxu0 0
        %5884 = vmatpush1.bf16.msra.mxu0 %v5705
        %5885 = vmatprep.subr.bf16.mxu0 0
        %5886 = vmatpush1.bf16.msra.mxu0 %v5706
        %5887 = vmatprep.subr.bf16.mxu0 0
        %5888 = vmatpush1.bf16.msra.mxu0 %v5707
        %5889 = vmatprep.subr.bf16.mxu0 0
        %5890 = vmatpush1.bf16.msra.mxu0 %v5708
        %5891 = vmatprep.subr.bf16.mxu0 0
        %5892 = vmatpush1.bf16.msra.mxu0 %v5709
        %5893 = vmatprep.subr.bf16.mxu0 0
        %5894 = vmatpush1.bf16.msra.mxu0 %v5710
        %5895 = vmatprep.subr.bf16.mxu0 0
        %5896 = vmatpush1.bf16.msra.mxu0 %v5711
        %5897 = vmatprep.subr.bf16.mxu0 0
        %5898 = vmatpush1.bf16.msra.mxu0 %v5712
        %5899 = vmatprep.subr.bf16.mxu0 0
        %5900 = vmatpush1.bf16.msra.mxu0 %v5713
        %5901 = vmatprep.subr.bf16.mxu0 0
        %5902 = vmatpush1.bf16.msra.mxu0 %v5714
        %5903 = vmatprep.subr.bf16.mxu0 0
        %5904 = vmatpush1.bf16.msra.mxu0 %v5715
        %5905 = vmatprep.subr.bf16.mxu0 0
        %5906 = vmatpush1.bf16.msra.mxu0 %v5716
        %5907 = vmatprep.subr.bf16.mxu0 0
        %5908 = vmatpush1.bf16.msra.mxu0 %v5717
        %5909 = vmatprep.subr.bf16.mxu0 0
        %5910 = vmatpush1.bf16.msra.mxu0 %v5718
        %5911 = vmatprep.mubr.bf16.mxu0 %v5277
        %5912 = vmatmul.mubr.bf16.gmra.mrb[0].mxu0 %v5276
        %v5913 = vpop.f32.mrb[0].mxu0
        %v5914 = vadd.f32 %v5874, %v5913
        %v5915 = vpop.f32.mrb[0].mxu0
        %v5916 = vpop.f32.mrb[0].mxu0
        %v5917 = vpop.f32.mrb[0].mxu0
        %5918 = vdwg.mxu0
        %5919 = vmatprep.subr.bf16.mxu0 0
        %5920 = vmatpush1.bf16.msra.mxu0 %v5719
        %5921 = vmatprep.subr.bf16.mxu0 0
        %5922 = vmatpush1.bf16.msra.mxu0 %v5720
        %5923 = vmatprep.subr.bf16.mxu0 0
        %5924 = vmatpush1.bf16.msra.mxu0 %v5721
        %5925 = vmatprep.subr.bf16.mxu0 0
        %5926 = vmatpush1.bf16.msra.mxu0 %v5722
        %5927 = vmatprep.subr.bf16.mxu0 0
        %5928 = vmatpush1.bf16.msra.mxu0 %v5723
        %5929 = vmatprep.subr.bf16.mxu0 0
        %5930 = vmatpush1.bf16.msra.mxu0 %v5724
        %5931 = vmatprep.subr.bf16.mxu0 0
        %5932 = vmatpush1.bf16.msra.mxu0 %v5725
        %5933 = vmatprep.subr.bf16.mxu0 0
        %5934 = vmatpush1.bf16.msra.mxu0 %v5726
        %5935 = vmatprep.subr.bf16.mxu0 0
        %5936 = vmatpush1.bf16.msra.mxu0 %v5727
        %5937 = vmatprep.subr.bf16.mxu0 0
        %5938 = vmatpush1.bf16.msra.mxu0 %v5728
        %5939 = vmatprep.subr.bf16.mxu0 0
        %5940 = vmatpush1.bf16.msra.mxu0 %v5729
        %5941 = vmatprep.subr.bf16.mxu0 0
        %5942 = vmatpush1.bf16.msra.mxu0 %v5730
        %5943 = vmatprep.subr.bf16.mxu0 0
        %5944 = vmatpush1.bf16.msra.mxu0 %v5731
        %5945 = vmatprep.subr.bf16.mxu0 0
        %5946 = vmatpush1.bf16.msra.mxu0 %v5732
        %5947 = vmatprep.subr.bf16.mxu0 0
        %5948 = vmatpush1.bf16.msra.mxu0 %v5733
        %5949 = vmatprep.subr.bf16.mxu0 0
        %5950 = vmatpush1.bf16.msra.mxu0 %v5734
        %5951 = vmatprep.mubr.bf16.mxu0 %v5279
        %5952 = vmatmul.mubr.bf16.gmra.mrb[0].mxu0 %v5278
        %v5953 = vpop.f32.mrb[0].mxu0
        %v5954 = vadd.f32 %v5914, %v5953
        %v5955 = vpop.f32.mrb[0].mxu0
        %v5956 = vpop.f32.mrb[0].mxu0
        %v5957 = vpop.f32.mrb[0].mxu0
        %5958 = vdwg.mxu0
        %5959 = vst [vmem:[%s413] sm:$0xff] %v5954
        %s5960 = sand.u32 %s210, 1
        %s5961 = scalar_lea.sflag [#allocation4], %s5960
        %s5962 = sand.u32 %s210, 1
        %s5963 = smul.addr %s5962, 8
        %s5964 = scalar_lea.vmem [#allocation16], %s5963
        // Predicated region
        $region85: #{net_forward.1} parent=51 // pred_check
          %p5965 = pneg %p220
        $region86: #{net_forward.1} parent=51 // pred_check_branch
          %5967 = sbr.rel (%p5965) target = $region88
        $region87: #{net_forward.1} parent=51 // pred_region
          %s5969 = ssub.s32 128, 128
          %5970 = vsyncadd %s5961, %s5969
          %s5971 = smul.addr %s29, 128
          %s5972 = scalar_lea.hbm %s8, %s5971
          %s5974 = sshll.u32 %s5964, 4
          %s5975 = int_to_ptr.vmem [resolvable:$true] %s5974
          %5977 = dma.vmem_to_hbm [thread:$0]  %s5975, 128, %s5972, %s5961
        $region88: #{net_forward.1} parent=51 // pred_fallthru
          _
      $region52: #{net_forward.1} parent=5 // pred_fallthru
        _
      %p5978 = scmp.le.s32.totalorder 2, %s24
      // Predicated region
      $region89: #{net_forward.1} parent=5 // pred_check
        %p5979 = pneg %p5978
      $region90: #{net_forward.1} parent=5 // pred_check_branch
        %5981 = sbr.rel (%p5979) target = $region92
      $region91: #{net_forward.1} parent=5 // pred_region
        %s5982 = ssub.s32 %s24, 2
        // Predicated region
        $region93: #{net_forward.1} parent=91 // pred_check
          %p5983 = pneg %p226
        $region94: #{net_forward.1} parent=91 // pred_check_branch
          %5985 = sbr.rel (%p5983) target = $region96
        $region95: #{net_forward.1} parent=91 // pred_region
          %s5986 = sand.u32 %s211, 1
          %s5987 = scalar_lea.sflag [#allocation4], %s5986
          %s5988 = sand.u32 %s211, 1
          %s5989 = smul.addr %s5988, 8
          %s5990 = scalar_lea.vmem [#allocation16], %s5989
          %5991 = dma.done %s5987, 128
        $region96: #{net_forward.1} parent=91 // pred_fallthru
          _
      $region92: #{net_forward.1} parent=5 // pred_fallthru
        _
    $region6: #{net_forward.1} parent=1 // loop_footer
      %s28 = sadd.s32 1, %s24
    $region7: #{net_forward.1} parent=1 // loop_footer_branch
      %23 = sbr.rel target = $region3
    $region8: #{net_forward.1} parent=1 // loop_exit
      _
    %5992 = vsyncpa [#allocation3], 1
    %s5993 = scalar_lea.sflag [#allocation3], 1
    %5994 = vsyncpa %s5993, 1
    %5995 = vsyncpa [#allocation8], 1
    %5996 = vsyncpa [#allocation11], 1
    %5997 = vsyncpa [#allocation14], 1
    %5998 = vsyncpa [#allocation4], 1
    %s5999 = scalar_lea.sflag [#allocation4], 1
    %6000 = vsyncpa %s5999, 1
    %6001 = vsyncpa [#allocation5], 1
    %s6002 = scalar_lea.sflag [#allocation5], 1
    %6003 = vsyncpa %s6002, 1

</llo_original>
